<compile_context>
chip_gen: v7x
topology: tpu7x:2x2x1
jax: 0.10.0
libtpu: 0.0.40
codegen_flags: <defaults>
</compile_context>

<pallas_src>
import functools

import jax
import jax.numpy as jnp
from jax.experimental import pallas as pl
from jax.experimental.pallas import tpu as pltpu


def _gelu_exact(x):
    # matches torch.nn.GELU() default (erf-based, not tanh approximation)
    return 0.5 * x * (1.0 + jax.lax.erf(x * 0.7071067811865476))


def classifier_head_kernel(cls_ref, patch_ref,
                           w1a_ref, w1b_ref, b1_ref,
                           w2_ref, b2_ref,
                           w3_ref, b3_ref,
                           out_ref, acc_ref, *, inv_n):
    n = pl.program_id(1)

    @pl.when(n == 0)
    def _init():
        acc_ref[...] = jnp.zeros_like(acc_ref)

    # Hot loop: accumulate the patch-token SUM only (single divide at the end).
    acc_ref[...] += jnp.sum(patch_ref[...].astype(jnp.float32), axis=1)

    @pl.when(n == pl.num_programs(1) - 1)
    def _finalize():
        cdt = w1a_ref.dtype  # compute (MXU input) dtype, e.g. bf16
        avg = (acc_ref[...] * inv_n).astype(cdt)        # [TB, E]
        cls_tok = cls_ref[...].astype(cdt)              # [TB, E]

        # concat([cls, avg]) @ W1 + b1  ==  cls @ W1[:E] + avg @ W1[E:] + b1
        h = (jnp.dot(cls_tok, w1a_ref[...], preferred_element_type=jnp.float32)
             + jnp.dot(avg, w1b_ref[...], preferred_element_type=jnp.float32)
             + b1_ref[...])
        h = _gelu_exact(h)

        h = (jnp.dot(h.astype(cdt), w2_ref[...], preferred_element_type=jnp.float32)
             + b2_ref[...])
        h = _gelu_exact(h)

        out = (jnp.dot(h.astype(cdt), w3_ref[...], preferred_element_type=jnp.float32)
               + b3_ref[...])
        out_ref[...] = out.astype(out_ref.dtype)


def _largest_divisor_le(n, target):
    t = max(1, min(n, target))
    while n % t != 0:
        t -= 1
    return t


def classifier_head(cls_tok, patches, params, *, compute_dtype=None,
                    tb_target=256, tn_target=512):
    """cls_tok: [B, E]  patches: [B, N, E]  -> logits [B, C] (float32)."""
    B, E = cls_tok.shape
    Bp, N, Ep = patches.shape
    assert Bp == B and Ep == E
    w1, b1, w2, b2, w3, b3 = params
    H = w1.shape[1]
    C = w3.shape[1]

    if compute_dtype is None:
        compute_dtype = cls_tok.dtype
    compute_dtype = jnp.dtype(compute_dtype)

    # Split W1 so the kernel never needs an explicit lane-concat.
    w1a = w1[:E].astype(compute_dtype)   # acts on the cls token
    w1b = w1[E:].astype(compute_dtype)   # acts on the averaged patch tokens
    w2c = w2.astype(compute_dtype)

    # Pad the logits lane dim to a multiple of 128 -> unmasked full-width stores.
    Cp = max(128, ((C + 127) // 128) * 128)
    w3p = jnp.zeros((H, Cp), compute_dtype).at[:, :C].set(w3.astype(compute_dtype))

    # Biases kept in f32 (they add onto the f32 accumulators), shaped (1, X).
    b1_2d = b1.reshape(1, H).astype(jnp.float32)
    b2_2d = b2.reshape(1, H).astype(jnp.float32)
    b3_2d = jnp.zeros((1, Cp), jnp.float32).at[:, :C].set(b3.astype(jnp.float32))

    cls_c = cls_tok.astype(compute_dtype)
    patch_c = patches.astype(compute_dtype)

    # Tile sizes: TB targets the MXU M dimension (256 on v6e/v7x, 128 on v5e);
    # TN sized so the double-buffered patch tile stays within the VMEM budget.
    TB = _largest_divisor_le(B, tb_target)
    TN = _largest_divisor_le(N, tn_target)
    grid = (B // TB, N // TN)

    # Explicit per-generation-safe VMEM budget (re-derive for v7x's 64 MiB).
    isz = compute_dtype.itemsize
    tile_bytes = 2 * (TB * E + TB * TN * E) * isz + 2 * TB * Cp * 4
    weight_bytes = 2 * ((2 * E * H + H * H + H * Cp) * isz + (2 * H + Cp) * 4)
    acc_bytes = TB * E * 4
    vmem_limit = int(min(max(2 * (tile_bytes + weight_bytes + acc_bytes),
                             32 * 1024 * 1024),
                         64 * 1024 * 1024))

    const = lambda i, n: (0, 0)  # weights/biases: DMA'd once, resident across grid
    kernel = functools.partial(classifier_head_kernel, inv_n=1.0 / N)

    out_padded = pl.pallas_call(
        kernel,
        out_shape=jax.ShapeDtypeStruct((B, Cp), jnp.float32),
        grid_spec=pltpu.PrefetchScalarGridSpec(
            num_scalar_prefetch=0,
            grid=grid,
            in_specs=[
                pl.BlockSpec((TB, E), lambda i, n: (i, 0)),       # cls tokens
                pl.BlockSpec((TB, TN, E), lambda i, n: (i, n, 0)),  # patch tokens
                pl.BlockSpec((E, H), const),                      # W1[:E]
                pl.BlockSpec((E, H), const),                      # W1[E:]
                pl.BlockSpec((1, H), const),                      # b1
                pl.BlockSpec((H, H), const),                      # W2
                pl.BlockSpec((1, H), const),                      # b2
                pl.BlockSpec((H, Cp), const),                     # W3 (lane-padded)
                pl.BlockSpec((1, Cp), const),                     # b3 (lane-padded)
            ],
            out_specs=pl.BlockSpec((TB, Cp), lambda i, n: (i, 0)),
            scratch_shapes=[pltpu.VMEM((TB, E), jnp.float32)],    # patch-sum acc
        ),
        compiler_params=pltpu.CompilerParams(
            dimension_semantics=("parallel", "arbitrary"),
            vmem_limit_bytes=vmem_limit,
        ),
    )(cls_c, patch_c, w1a, w1b, b1_2d, w2c, b2_2d, w3p, b3_2d)

    return out_padded[:, :C]


def init_params(key, embed_dim, hidden_dim, num_classes):
    """Deterministic torch.nn.Linear-style init (U(-1/sqrt(fan_in), 1/sqrt(fan_in)))."""
    ks = jax.random.split(key, 6)

    def lin(kw, kb, fan_in, fan_out):
        bound = 1.0 / jnp.sqrt(fan_in)
        w = jax.random.uniform(kw, (fan_in, fan_out), jnp.float32, -bound, bound)
        b = jax.random.uniform(kb, (fan_out,), jnp.float32, -bound, bound)
        return w, b

    w1, b1 = lin(ks[0], ks[1], 2 * embed_dim, hidden_dim)
    w2, b2 = lin(ks[2], ks[3], hidden_dim, hidden_dim)
    w3, b3 = lin(ks[4], ks[5], hidden_dim, num_classes)
    return (w1, b1, w2, b2, w3, b3)


def reference(cls_tok, patches, params):
    w1, b1, w2, b2, w3, b3 = params
    avg = jnp.mean(patches.astype(jnp.float32), axis=1)
    x = jnp.concatenate([cls_tok.astype(jnp.float32), avg], axis=1)
    x = jax.nn.gelu(x @ w1 + b1, approximate=False)
    x = jax.nn.gelu(x @ w2 + b2, approximate=False)
    return x @ w3 + b3


if __name__ == "__main__":
    B, N, E = 2, 8, 64          # batch, patch tokens, embed dim (small test sizes)
    H = 1024                    # hidden_dim hardcoded in the module
    C = 10                      # num_classes

    key = jax.random.PRNGKey(0)
    k_cls, k_patch, k_params = jax.random.split(key, 3)

    cls_tok = jax.random.normal(k_cls, (B, E), jnp.float32)
    patches = jax.random.normal(k_patch, (B, N, E), jnp.float32)
    params = init_params(k_params, E, H, C)

    ref = reference(cls_tok, patches, params)

    # f32 path: exact correctness check against the JAX reference.
    out = classifier_head(cls_tok, patches, params)
    out = jax.block_until_ready(out)
    assert out.shape == (B, C)
    assert jnp.allclose(out, ref, atol=1e-4, rtol=1e-4), "mismatch vs JAX reference"

    # bf16 compute path (halves HBM DMA; what production would use) — sanity check.
    out_bf16 = classifier_head(cls_tok, patches, params, compute_dtype=jnp.bfloat16)
    out_bf16 = jax.block_until_ready(out_bf16)
    assert out_bf16.shape == (B, C)
    assert bool(jnp.all(jnp.isfinite(out_bf16))), "bf16 path produced non-finite values"

    print("KERNEL_OK")
</pallas_src>

<mosaic_0001>
module attributes {stable_mosaic.version = 11 : i64} {
  func.func @classifier_head_kernel(%arg0: i32, %arg1: i32, %arg2: memref<2x64xf32, #tpu.memory_space<vmem>>, %arg3: memref<2x8x64xf32, #tpu.memory_space<vmem>>, %arg4: memref<64x1024xf32, #tpu.memory_space<vmem>>, %arg5: memref<64x1024xf32, #tpu.memory_space<vmem>>, %arg6: memref<1x1024xf32, #tpu.memory_space<vmem>>, %arg7: memref<1024x1024xf32, #tpu.memory_space<vmem>>, %arg8: memref<1x1024xf32, #tpu.memory_space<vmem>>, %arg9: memref<1024x128xf32, #tpu.memory_space<vmem>>, %arg10: memref<1x128xf32, #tpu.memory_space<vmem>>, %arg11: memref<2x128xf32, #tpu.memory_space<vmem>>, %arg12: memref<2x64xf32, #tpu.memory_space<vmem>>) attributes {dimension_semantics = [#tpu.dimension_semantics<parallel>, #tpu.dimension_semantics<arbitrary>], iteration_bounds = array<i64: 1, 1>, scalar_prefetch = 0 : i64, scratch_operands = 1 : i64, tpu.core_type = #tpu.core_type<tc>, window_params = [{transform_indices = @transform_0, window_bounds = array<i64: 2, 64>}, {transform_indices = @transform_1, window_bounds = array<i64: 2, 8, 64>}, {pipeline_mode = #tpu.pipeline_mode<synchronous>, transform_indices = @transform_2, window_bounds = array<i64: 64, 1024>}, {pipeline_mode = #tpu.pipeline_mode<synchronous>, transform_indices = @transform_3, window_bounds = array<i64: 64, 1024>}, {pipeline_mode = #tpu.pipeline_mode<synchronous>, transform_indices = @transform_4, window_bounds = array<i64: 1, 1024>}, {pipeline_mode = #tpu.pipeline_mode<synchronous>, transform_indices = @transform_5, window_bounds = array<i64: 1024, 1024>}, {pipeline_mode = #tpu.pipeline_mode<synchronous>, transform_indices = @transform_6, window_bounds = array<i64: 1, 1024>}, {pipeline_mode = #tpu.pipeline_mode<synchronous>, transform_indices = @transform_7, window_bounds = array<i64: 1024, 128>}, {pipeline_mode = #tpu.pipeline_mode<synchronous>, transform_indices = @transform_8, window_bounds = array<i64: 1, 128>}, {transform_indices = @transform_9, window_bounds = array<i64: 2, 128>}]} {
    %c0_i32 = arith.constant 0 : i32
    %0 = arith.cmpi eq, %arg1, %c0_i32 : i32
    %1 = arith.extui %0 : i1 to i32
    %c0_i32_0 = arith.constant 0 : i32
    %2 = arith.cmpi ne, %1, %c0_i32_0 : i32
    scf.if %2 {
      %cst_9 = arith.constant 0.000000e+00 : f32
      %11 = vector.broadcast %cst_9 : f32 to vector<2x64xf32>
      %c0_10 = arith.constant 0 : index
      %c0_11 = arith.constant 0 : index
      %12 = vector.load %arg12[%c0_10, %c0_11] : memref<2x64xf32, #tpu.memory_space<vmem>>, vector<2x64xf32>
      tpu.vector_store %arg12[%c0_10, %c0_11], %11 {strides = array<i32>} : memref<2x64xf32, #tpu.memory_space<vmem>>, vector<2x64xf32>,
    } else {
    }
    %c0 = arith.constant 0 : index
    %c0_1 = arith.constant 0 : index
    %3 = vector.load %arg12[%c0, %c0_1] : memref<2x64xf32, #tpu.memory_space<vmem>>, vector<2x64xf32>
    %c0_2 = arith.constant 0 : index
    %c0_3 = arith.constant 0 : index
    %c0_4 = arith.constant 0 : index
    %4 = vector.load %arg3[%c0_2, %c0_3, %c0_4] : memref<2x8x64xf32, #tpu.memory_space<vmem>>, vector<2x8x64xf32>
    %cst = arith.constant dense<0.000000e+00> : vector<2x64xf32>
    %5 = vector.multi_reduction <add>, %4, %cst [1] : vector<2x8x64xf32> to vector<2x64xf32>
    %6 = arith.addf %3, %5 : vector<2x64xf32>
    %c0_5 = arith.constant 0 : index
    %c0_6 = arith.constant 0 : index
    %7 = vector.load %arg12[%c0_5, %c0_6] : memref<2x64xf32, #tpu.memory_space<vmem>>, vector<2x64xf32>
    tpu.vector_store %arg12[%c0_5, %c0_6], %6 {strides = array<i32>} : memref<2x64xf32, #tpu.memory_space<vmem>>, vector<2x64xf32>,
    %c0_i32_7 = arith.constant 0 : i32
    %8 = arith.cmpi eq, %arg1, %c0_i32_7 : i32
    %9 = arith.extui %8 : i1 to i32
    %c0_i32_8 = arith.constant 0 : i32
    %10 = arith.cmpi ne, %9, %c0_i32_8 : i32
    scf.if %10 {
      %c0_9 = arith.constant 0 : index
      %c0_10 = arith.constant 0 : index
      %11 = vector.load %arg12[%c0_9, %c0_10] : memref<2x64xf32, #tpu.memory_space<vmem>>, vector<2x64xf32>
      %cst_11 = arith.constant 1.250000e-01 : f32
      %12 = vector.broadcast %cst_11 : f32 to vector<2x64xf32>
      %13 = arith.mulf %11, %12 : vector<2x64xf32>
      %c0_12 = arith.constant 0 : index
      %c0_13 = arith.constant 0 : index
      %14 = vector.load %arg2[%c0_12, %c0_13] : memref<2x64xf32, #tpu.memory_space<vmem>>, vector<2x64xf32>
      %c0_14 = arith.constant 0 : index
      %c0_15 = arith.constant 0 : index
      %15 = vector.load %arg4[%c0_14, %c0_15] : memref<64x1024xf32, #tpu.memory_space<vmem>>, vector<64x1024xf32>
      %cst_16 = arith.constant dense<0.000000e+00> : vector<2x1024xf32>
      %16 = tpu.matmul %14, %15, %cst_16 {dimension_numbers = #tpu.dot_dimension_numbers<[1], [0], [0], [1], [0, 0, 1, 1], [], []>} : vector<2x64xf32>, vector<64x1024xf32>, vector<2x1024xf32> -> vector<2x1024xf32>
      %c0_17 = arith.constant 0 : index
      %c0_18 = arith.constant 0 : index
      %17 = vector.load %arg5[%c0_17, %c0_18] : memref<64x1024xf32, #tpu.memory_space<vmem>>, vector<64x1024xf32>
      %cst_19 = arith.constant dense<0.000000e+00> : vector<2x1024xf32>
      %18 = tpu.matmul %13, %17, %cst_19 {dimension_numbers = #tpu.dot_dimension_numbers<[1], [0], [0], [1], [0, 0, 1, 1], [], []>} : vector<2x64xf32>, vector<64x1024xf32>, vector<2x1024xf32> -> vector<2x1024xf32>
      %19 = arith.addf %16, %18 : vector<2x1024xf32>
      %c0_20 = arith.constant 0 : index
      %c0_21 = arith.constant 0 : index
      %20 = vector.load %arg6[%c0_20, %c0_21] : memref<1x1024xf32, #tpu.memory_space<vmem>>, vector<1x1024xf32>
      %21 = vector.broadcast %20 : vector<1x1024xf32> to vector<2x1024xf32>
      %22 = arith.addf %19, %21 : vector<2x1024xf32>
      %cst_22 = arith.constant 5.000000e-01 : f32
      %23 = vector.broadcast %cst_22 : f32 to vector<2x1024xf32>
      %24 = arith.mulf %23, %22 : vector<2x1024xf32>
      %cst_23 = arith.constant 0.707106769 : f32
      %25 = vector.broadcast %cst_23 : f32 to vector<2x1024xf32>
      %26 = arith.mulf %22, %25 : vector<2x1024xf32>
      %27 = math.erf %26 : vector<2x1024xf32>
      %cst_24 = arith.constant 1.000000e+00 : f32
      %28 = vector.broadcast %cst_24 : f32 to vector<2x1024xf32>
      %29 = arith.addf %28, %27 : vector<2x1024xf32>
      %30 = arith.mulf %24, %29 : vector<2x1024xf32>
      %c0_25 = arith.constant 0 : index
      %c0_26 = arith.constant 0 : index
      %31 = vector.load %arg7[%c0_25, %c0_26] : memref<1024x1024xf32, #tpu.memory_space<vmem>>, vector<1024x1024xf32>
      %cst_27 = arith.constant dense<0.000000e+00> : vector<2x1024xf32>
      %32 = tpu.matmul %30, %31, %cst_27 {dimension_numbers = #tpu.dot_dimension_numbers<[1], [0], [0], [1], [0, 0, 1, 1], [], []>} : vector<2x1024xf32>, vector<1024x1024xf32>, vector<2x1024xf32> -> vector<2x1024xf32>
      %c0_28 = arith.constant 0 : index
      %c0_29 = arith.constant 0 : index
      %33 = vector.load %arg8[%c0_28, %c0_29] : memref<1x1024xf32, #tpu.memory_space<vmem>>, vector<1x1024xf32>
      %34 = vector.broadcast %33 : vector<1x1024xf32> to vector<2x1024xf32>
      %35 = arith.addf %32, %34 : vector<2x1024xf32>
      %cst_30 = arith.constant 5.000000e-01 : f32
      %36 = vector.broadcast %cst_30 : f32 to vector<2x1024xf32>
      %37 = arith.mulf %36, %35 : vector<2x1024xf32>
      %cst_31 = arith.constant 0.707106769 : f32
      %38 = vector.broadcast %cst_31 : f32 to vector<2x1024xf32>
      %39 = arith.mulf %35, %38 : vector<2x1024xf32>
      %40 = math.erf %39 : vector<2x1024xf32>
      %cst_32 = arith.constant 1.000000e+00 : f32
      %41 = vector.broadcast %cst_32 : f32 to vector<2x1024xf32>
      %42 = arith.addf %41, %40 : vector<2x1024xf32>
      %43 = arith.mulf %37, %42 : vector<2x1024xf32>
      %c0_33 = arith.constant 0 : index
      %c0_34 = arith.constant 0 : index
      %44 = vector.load %arg9[%c0_33, %c0_34] : memref<1024x128xf32, #tpu.memory_space<vmem>>, vector<1024x128xf32>
      %cst_35 = arith.constant dense<0.000000e+00> : vector<2x128xf32>
      %45 = tpu.matmul %43, %44, %cst_35 {dimension_numbers = #tpu.dot_dimension_numbers<[1], [0], [0], [1], [0, 0, 1, 1], [], []>} : vector<2x1024xf32>, vector<1024x128xf32>, vector<2x128xf32> -> vector<2x128xf32>
      %c0_36 = arith.constant 0 : index
      %c0_37 = arith.constant 0 : index
      %46 = vector.load %arg10[%c0_36, %c0_37] : memref<1x128xf32, #tpu.memory_space<vmem>>, vector<1x128xf32>
      %47 = vector.broadcast %46 : vector<1x128xf32> to vector<2x128xf32>
      %48 = arith.addf %45, %47 : vector<2x128xf32>
      %c0_38 = arith.constant 0 : index
      %c0_39 = arith.constant 0 : index
      %49 = vector.load %arg11[%c0_38, %c0_39] : memref<2x128xf32, #tpu.memory_space<vmem>>, vector<2x128xf32>
      tpu.vector_store %arg11[%c0_38, %c0_39], %48 {strides = array<i32>} : memref<2x128xf32, #tpu.memory_space<vmem>>, vector<2x128xf32>,
    } else {
    }
    return
  }
  func.func @transform_0(%arg0: i32, %arg1: i32) -> (i32, i32) {
    %c0_i32 = arith.constant 0 : i32
    %c0_i32_0 = arith.constant 0 : i32
    return %arg0, %c0_i32 : i32, i32
  }
  func.func @transform_1(%arg0: i32, %arg1: i32) -> (i32, i32, i32) {
    %c0_i32 = arith.constant 0 : i32
    %c0_i32_0 = arith.constant 0 : i32
    return %arg0, %arg1, %c0_i32 : i32, i32, i32
  }
  func.func @transform_2(%arg0: i32, %arg1: i32) -> (i32, i32) {
    %c0_i32 = arith.constant 0 : i32
    %c0_i32_0 = arith.constant 0 : i32
    %c0_i32_1 = arith.constant 0 : i32
    return %c0_i32, %c0_i32_0 : i32, i32
  }
  func.func @transform_3(%arg0: i32, %arg1: i32) -> (i32, i32) {
    %c0_i32 = arith.constant 0 : i32
    %c0_i32_0 = arith.constant 0 : i32
    %c0_i32_1 = arith.constant 0 : i32
    return %c0_i32, %c0_i32_0 : i32, i32
  }
  func.func @transform_4(%arg0: i32, %arg1: i32) -> (i32, i32) {
    %c0_i32 = arith.constant 0 : i32
    %c0_i32_0 = arith.constant 0 : i32
    %c0_i32_1 = arith.constant 0 : i32
    return %c0_i32, %c0_i32_0 : i32, i32
  }
  func.func @transform_5(%arg0: i32, %arg1: i32) -> (i32, i32) {
    %c0_i32 = arith.constant 0 : i32
    %c0_i32_0 = arith.constant 0 : i32
    %c0_i32_1 = arith.constant 0 : i32
    return %c0_i32, %c0_i32_0 : i32, i32
  }
  func.func @transform_6(%arg0: i32, %arg1: i32) -> (i32, i32) {
    %c0_i32 = arith.constant 0 : i32
    %c0_i32_0 = arith.constant 0 : i32
    %c0_i32_1 = arith.constant 0 : i32
    return %c0_i32, %c0_i32_0 : i32, i32
  }
  func.func @transform_7(%arg0: i32, %arg1: i32) -> (i32, i32) {
    %c0_i32 = arith.constant 0 : i32
    %c0_i32_0 = arith.constant 0 : i32
    %c0_i32_1 = arith.constant 0 : i32
    return %c0_i32, %c0_i32_0 : i32, i32
  }
  func.func @transform_8(%arg0: i32, %arg1: i32) -> (i32, i32) {
    %c0_i32 = arith.constant 0 : i32
    %c0_i32_0 = arith.constant 0 : i32
    %c0_i32_1 = arith.constant 0 : i32
    return %c0_i32, %c0_i32_0 : i32, i32
  }
  func.func @transform_9(%arg0: i32, %arg1: i32) -> (i32, i32) {
    %c0_i32 = arith.constant 0 : i32
    %c0_i32_0 = arith.constant 0 : i32
    return %arg0, %c0_i32 : i32, i32
  }
}

</mosaic_0001>

<llo_original>
// kernel: tpu_custom_call.1
$region0: #{tpu_custom_call.1}
  #allocation0 [shape = 'u32[]', space=smem, size = 0x4, offset = 0x4, fixed_abs, tag = 'smem constant byte address 0x4 - core index']
  #allocation1 [shape = 'u32[144,128]{1,0:T(1,128)}', space=vmem, size = 0x12000, scoped, tag = 'internal scratch']
  #allocation2 [shape = 'f32[2,64]{1,0:T(2,128)}', space=vmem, size = 0x400, scoped, tag = 'scratch operand']
  %s0 = inlined_call_operand.hbm [shape: f32[2,64], index: 0, kind: input, shape index: {}]
  %s1 = inlined_call_operand.hbm [shape: f32[2,8,64], index: 1, kind: input, shape index: {}]
  %s2 = inlined_call_operand.hbm [shape: f32[64,1024], index: 2, kind: input, shape index: {}]
  %s3 = inlined_call_operand.hbm [shape: f32[64,1024], index: 3, kind: input, shape index: {}]
  %s4 = inlined_call_operand.hbm [shape: f32[1,1024], index: 4, kind: input, shape index: {}]
  %s5 = inlined_call_operand.hbm [shape: f32[1024,1024], index: 5, kind: input, shape index: {}]
  %s6 = inlined_call_operand.hbm [shape: f32[1,1024], index: 6, kind: input, shape index: {}]
  %s7 = inlined_call_operand.hbm [shape: f32[1024,128], index: 7, kind: input, shape index: {}]
  %s8 = inlined_call_operand.hbm [shape: f32[1,128], index: 8, kind: input, shape index: {}]
  %s9 = inlined_call_operand.hbm [shape: f32[2,128], index: 9, kind: output, shape index: {}]
  %s10 = sld [smem:[#allocation0]]
  $region90: #{tpu_custom_call.1} parent=0
    _
  %s12 = ssub.s32 1, %s10
  %s13 = scalar_select 0, %s12, %s10
  $region1: #{tpu_custom_call.1} parent=0
    #allocation3 [shape = 'u8[1024]{0}', space=vmem, size = 0x400, scoped, tag = 'input window, operand 0, single buffered']
    #allocation4 [shape = 's32[1]{0}', space=sflag, size = 0x4, scoped, tag = 'scoped memory for tpu_custom_call.1']
    #allocation5 [shape = 's32[1]{0}', space=sflag, size = 0x4, scoped, tag = 'scoped memory for tpu_custom_call.1']
    #allocation6 [shape = 'u8[8192]{0}', space=vmem, size = 0x2000, scoped, tag = 'input window, operand 1, single buffered']
    #allocation7 [shape = 's32[1]{0}', space=sflag, size = 0x4, scoped, tag = 'scoped memory for tpu_custom_call.1']
    #allocation8 [shape = 'u8[262144]{0}', space=vmem, size = 0x40000, scoped, tag = 'input window, operand 2, single buffered']
    #allocation9 [shape = 'u8[262144]{0}', space=vmem, size = 0x40000, scoped, tag = 'input window, operand 3, single buffered']
    #allocation10 [shape = 's32[1]{0}', space=sflag, size = 0x4, scoped, tag = 'scoped memory for tpu_custom_call.1']
    #allocation11 [shape = 'u8[4096]{0}', space=vmem, size = 0x1000, scoped, tag = 'input window, operand 4, single buffered']
    #allocation12 [shape = 'u8[4194304]{0}', space=vmem, size = 0x400000, scoped, tag = 'input window, operand 5, single buffered']
    #allocation13 [shape = 's32[1]{0}', space=sflag, size = 0x4, scoped, tag = 'scoped memory for tpu_custom_call.1']
    #allocation14 [shape = 'u8[4096]{0}', space=vmem, size = 0x1000, scoped, tag = 'input window, operand 6, single buffered']
    #allocation15 [shape = 'u8[524288]{0}', space=vmem, size = 0x80000, scoped, tag = 'input window, operand 7, single buffered']
    #allocation16 [shape = 's32[1]{0}', space=sflag, size = 0x4, scoped, tag = 'scoped memory for tpu_custom_call.1']
    #allocation17 [shape = 'u8[512]{0}', space=vmem, size = 0x400, scoped, tag = 'input window, operand 8, single buffered']
    #allocation18 [shape = 'u8[1024]{0}', space=vmem, size = 0x400, scoped, tag = 'output window, operand 0, single buffered']
    %14 = vsyncpa [#allocation4], 0
    %15 = vsyncpa [#allocation7], 0
    %16 = vsyncpa [#allocation10], 0
    %17 = vsyncpa [#allocation13], 0
    %18 = vsyncpa [#allocation16], 0
    %19 = vsyncpa [#allocation5], 0
    // Predicated region
    $region2: #{tpu_custom_call.1} parent=1 // pred_check
      _
    $region3: #{tpu_custom_call.1} parent=1 // pred_check_branch
      %21 = sbr.rel (0) target = $region5
    $region4: #{tpu_custom_call.1} parent=1 // pred_region
      %s23 = ssub.s32 32, 32
      %24 = vsyncadd [#allocation4], %s23
      %s26 = sshll.u32 [#allocation3], 4
      %s27 = int_to_ptr.vmem [resolvable:$true] %s26
      %29 = dma.hbm_to_vmem [thread:$0]  %s0, 32, %s27, [#allocation4]
    $region5: #{tpu_custom_call.1} parent=1 // pred_fallthru
      _
    // Predicated region
    $region6: #{tpu_custom_call.1} parent=1 // pred_check
      _
    $region7: #{tpu_custom_call.1} parent=1 // pred_check_branch
      %31 = sbr.rel (0) target = $region9
    $region8: #{tpu_custom_call.1} parent=1 // pred_region
      %s33 = ssub.s32 256, 256
      %34 = vsyncadd [#allocation7], %s33
      %s35 = sshll.u32 [#allocation6], 4
      %s36 = int_to_ptr.vmem [resolvable:$true] %s35
      %41 = dma.hbm_to_vmem [thread:$0]  %s1, 256, %s36, [#allocation7], 128, 128, 8
    $region9: #{tpu_custom_call.1} parent=1 // pred_fallthru
      _
    // Predicated region
    $region10: #{tpu_custom_call.1} parent=1 // pred_check
      _
    $region11: #{tpu_custom_call.1} parent=1 // pred_check_branch
      %43 = sbr.rel (0) target = $region13
    $region12: #{tpu_custom_call.1} parent=1 // pred_region
      %s45 = ssub.s32 8192, 8192
      %46 = vsyncadd [#allocation7], %s45
      %s47 = sshll.u32 [#allocation8], 4
      %s48 = int_to_ptr.vmem [resolvable:$true] %s47
      %53 = dma.hbm_to_vmem [thread:$0]  %s2, 8192, %s48, [#allocation7], 1024, 1024, 64
    $region13: #{tpu_custom_call.1} parent=1 // pred_fallthru
      _
    // Predicated region
    $region14: #{tpu_custom_call.1} parent=1 // pred_check
      _
    $region15: #{tpu_custom_call.1} parent=1 // pred_check_branch
      %55 = sbr.rel (0) target = $region17
    $region16: #{tpu_custom_call.1} parent=1 // pred_region
      %s57 = ssub.s32 8192, 8192
      %58 = vsyncadd [#allocation10], %s57
      %s59 = sshll.u32 [#allocation9], 4
      %s60 = int_to_ptr.vmem [resolvable:$true] %s59
      %65 = dma.hbm_to_vmem [thread:$0]  %s3, 8192, %s60, [#allocation10], 1024, 1024, 64
    $region17: #{tpu_custom_call.1} parent=1 // pred_fallthru
      _
    // Predicated region
    $region18: #{tpu_custom_call.1} parent=1 // pred_check
      _
    $region19: #{tpu_custom_call.1} parent=1 // pred_check_branch
      %67 = sbr.rel (0) target = $region21
    $region20: #{tpu_custom_call.1} parent=1 // pred_region
      %s69 = ssub.s32 128, 128
      %70 = vsyncadd [#allocation10], %s69
      %s72 = sshll.u32 [#allocation11], 4
      %s73 = int_to_ptr.vmem [resolvable:$true] %s72
      %75 = dma.hbm_to_vmem [thread:$0]  %s4, 128, %s73, [#allocation10]
    $region21: #{tpu_custom_call.1} parent=1 // pred_fallthru
      _
    // Predicated region
    $region22: #{tpu_custom_call.1} parent=1 // pred_check
      _
    $region23: #{tpu_custom_call.1} parent=1 // pred_check_branch
      %77 = sbr.rel (0) target = $region25
    $region24: #{tpu_custom_call.1} parent=1 // pred_region
      %s79 = ssub.s32 131072, 131072
      %80 = vsyncadd [#allocation13], %s79
      %s81 = sshll.u32 [#allocation12], 4
      %s82 = int_to_ptr.vmem [resolvable:$true] %s81
      %87 = dma.hbm_to_vmem [thread:$0]  %s5, 131072, %s82, [#allocation13], 1024, 1024, 64
    $region25: #{tpu_custom_call.1} parent=1 // pred_fallthru
      _
    // Predicated region
    $region26: #{tpu_custom_call.1} parent=1 // pred_check
      _
    $region27: #{tpu_custom_call.1} parent=1 // pred_check_branch
      %89 = sbr.rel (0) target = $region29
    $region28: #{tpu_custom_call.1} parent=1 // pred_region
      %s91 = ssub.s32 128, 128
      %92 = vsyncadd [#allocation13], %s91
      %s94 = sshll.u32 [#allocation14], 4
      %s95 = int_to_ptr.vmem [resolvable:$true] %s94
      %97 = dma.hbm_to_vmem [thread:$0]  %s6, 128, %s95, [#allocation13]
    $region29: #{tpu_custom_call.1} parent=1 // pred_fallthru
      _
    // Predicated region
    $region30: #{tpu_custom_call.1} parent=1 // pred_check
      _
    $region31: #{tpu_custom_call.1} parent=1 // pred_check_branch
      %99 = sbr.rel (0) target = $region33
    $region32: #{tpu_custom_call.1} parent=1 // pred_region
      %s101 = ssub.s32 16384, 16384
      %102 = vsyncadd [#allocation16], %s101
      %s103 = sshll.u32 [#allocation15], 4
      %s104 = int_to_ptr.vmem [resolvable:$true] %s103
      %109 = dma.hbm_to_vmem [thread:$0]  %s7, 16384, %s104, [#allocation16], 128, 128, 8
    $region33: #{tpu_custom_call.1} parent=1 // pred_fallthru
      _
    // Predicated region
    $region34: #{tpu_custom_call.1} parent=1 // pred_check
      _
    $region35: #{tpu_custom_call.1} parent=1 // pred_check_branch
      %111 = sbr.rel (0) target = $region37
    $region36: #{tpu_custom_call.1} parent=1 // pred_region
      %s113 = ssub.s32 16, 16
      %114 = vsyncadd [#allocation16], %s113
      %s116 = sshll.u32 [#allocation17], 4
      %s117 = int_to_ptr.vmem [resolvable:$true] %s116
      %119 = dma.hbm_to_vmem [thread:$0]  %s8, 16, %s117, [#allocation16]
    $region37: #{tpu_custom_call.1} parent=1 // pred_fallthru
      _
    // Predicated region
    $region38: #{tpu_custom_call.1} parent=1 // pred_check
      _
    $region39: #{tpu_custom_call.1} parent=1 // pred_check_branch
      %121 = sbr.rel (0) target = $region41
    $region40: #{tpu_custom_call.1} parent=1 // pred_region
      %122 = dma.done [#allocation4], 32
    $region41: #{tpu_custom_call.1} parent=1 // pred_fallthru
      _
    // Predicated region
    $region42: #{tpu_custom_call.1} parent=1 // pred_check
      _
    $region43: #{tpu_custom_call.1} parent=1 // pred_check_branch
      %124 = sbr.rel (0) target = $region45
    $region44: #{tpu_custom_call.1} parent=1 // pred_region
      %125 = dma.done [#allocation7], 256
    $region45: #{tpu_custom_call.1} parent=1 // pred_fallthru
      _
    // Predicated region
    $region46: #{tpu_custom_call.1} parent=1 // pred_check
      _
    $region47: #{tpu_custom_call.1} parent=1 // pred_check_branch
      %127 = sbr.rel (0) target = $region49
    $region48: #{tpu_custom_call.1} parent=1 // pred_region
      %128 = dma.done [#allocation7], 8192
    $region49: #{tpu_custom_call.1} parent=1 // pred_fallthru
      _
    // Predicated region
    $region50: #{tpu_custom_call.1} parent=1 // pred_check
      _
    $region51: #{tpu_custom_call.1} parent=1 // pred_check_branch
      %130 = sbr.rel (0) target = $region53
    $region52: #{tpu_custom_call.1} parent=1 // pred_region
      %131 = dma.done [#allocation10], 8192
    $region53: #{tpu_custom_call.1} parent=1 // pred_fallthru
      _
    // Predicated region
    $region54: #{tpu_custom_call.1} parent=1 // pred_check
      _
    $region55: #{tpu_custom_call.1} parent=1 // pred_check_branch
      %133 = sbr.rel (0) target = $region57
    $region56: #{tpu_custom_call.1} parent=1 // pred_region
      %134 = dma.done [#allocation10], 128
    $region57: #{tpu_custom_call.1} parent=1 // pred_fallthru
      _
    // Predicated region
    $region58: #{tpu_custom_call.1} parent=1 // pred_check
      _
    $region59: #{tpu_custom_call.1} parent=1 // pred_check_branch
      %136 = sbr.rel (0) target = $region61
    $region60: #{tpu_custom_call.1} parent=1 // pred_region
      %137 = dma.done [#allocation13], 131072
    $region61: #{tpu_custom_call.1} parent=1 // pred_fallthru
      _
    // Predicated region
    $region62: #{tpu_custom_call.1} parent=1 // pred_check
      _
    $region63: #{tpu_custom_call.1} parent=1 // pred_check_branch
      %139 = sbr.rel (0) target = $region65
    $region64: #{tpu_custom_call.1} parent=1 // pred_region
      %140 = dma.done [#allocation13], 128
    $region65: #{tpu_custom_call.1} parent=1 // pred_fallthru
      _
    // Predicated region
    $region66: #{tpu_custom_call.1} parent=1 // pred_check
      _
    $region67: #{tpu_custom_call.1} parent=1 // pred_check_branch
      %142 = sbr.rel (0) target = $region69
    $region68: #{tpu_custom_call.1} parent=1 // pred_region
      %143 = dma.done [#allocation16], 16384
    $region69: #{tpu_custom_call.1} parent=1 // pred_fallthru
      _
    // Predicated region
    $region70: #{tpu_custom_call.1} parent=1 // pred_check
      _
    $region71: #{tpu_custom_call.1} parent=1 // pred_check_branch
      %145 = sbr.rel (0) target = $region73
    $region72: #{tpu_custom_call.1} parent=1 // pred_region
      %146 = dma.done [#allocation16], 16
    $region73: #{tpu_custom_call.1} parent=1 // pred_fallthru
      _
    %p147 = scmp.eq.s32.totalorder 0, 0
    // Predicated region
    $region74: #{tpu_custom_call.1} parent=1 // pred_check
      %p148 = pneg %p147
    $region75: #{tpu_custom_call.1} parent=1 // pred_check_branch
      %150 = sbr.rel (%p148) target = $region77
    $region76: #{tpu_custom_call.1} parent=1 // pred_region
      %vm151 = vcmask 517120
      %152 = vst.msk [vmem:[#allocation2] sm:$0x3] %vm151, 0.0
    $region77: #{tpu_custom_call.1} parent=1 // pred_fallthru
      _
    %v153 = vld [vmem:[#allocation2] sm:$0x3]
    %v154 = vld [vmem:[#allocation6] sm:$0xff]
    %v155 = vld [vmem:[#allocation6 + $0x8] sm:$0xff]
    %vm156 = vcmask 523264
    %v157 = vsel %vm156, %v154, 0.0
    %v158 = vrot.slane %v157, 4
    %v159 = vadd.f32 %v157, %v158
    %v160 = vrot.slane %v159, 2
    %v161 = vadd.f32 %v159, %v160
    %v162 = vrot.slane %v161, 1
    %v163 = vadd.f32 %v161, %v162
    %v164 = vsel %vm156, %v155, 0.0
    %v165 = vrot.slane %v164, 4
    %v166 = vadd.f32 %v164, %v165
    %v167 = vrot.slane %v166, 2
    %v168 = vadd.f32 %v166, %v167
    %v169 = vrot.slane %v168, 1
    %v170 = vadd.f32 %v168, %v169
    %vm173 = vcmask 1041409
    %v174 = vsel %vm173, %v170, %v163
    %v176 = vadd.f32 %v153, %v174
    %vm177 = vcmask 517120
    %178 = vst.msk [vmem:[#allocation2] sm:$0x3] %vm177, %v176
    // Predicated region
    $region78: #{tpu_custom_call.1} parent=1 // pred_check
      %p179 = pneg %p147
    $region79: #{tpu_custom_call.1} parent=1 // pred_check_branch
      %181 = sbr.rel (%p179) target = $region81
    $region80: #{tpu_custom_call.1} parent=1 // pred_region
      %v182 = vld [vmem:[#allocation2] sm:$0x3]
      %v183 = vmul.f32 %v182, 0.125
      %v184 = vld [vmem:[#allocation3] sm:$0x3]
      %v185 = vld [vmem:[#allocation8] sm:$0xff]
      %v186 = vld [vmem:[#allocation8 + $0x8] sm:$0xff]
      %v187 = vld [vmem:[#allocation8 + $0x10] sm:$0xff]
      %v188 = vld [vmem:[#allocation8 + $0x18] sm:$0xff]
      %v189 = vld [vmem:[#allocation8 + $0x20] sm:$0xff]
      %v190 = vld [vmem:[#allocation8 + $0x28] sm:$0xff]
      %v191 = vld [vmem:[#allocation8 + $0x30] sm:$0xff]
      %v192 = vld [vmem:[#allocation8 + $0x38] sm:$0xff]
      %v193 = vld [vmem:[#allocation8 + $0x40] sm:$0xff]
      %v194 = vld [vmem:[#allocation8 + $0x48] sm:$0xff]
      %v195 = vld [vmem:[#allocation8 + $0x50] sm:$0xff]
      %v196 = vld [vmem:[#allocation8 + $0x58] sm:$0xff]
      %v197 = vld [vmem:[#allocation8 + $0x60] sm:$0xff]
      %v198 = vld [vmem:[#allocation8 + $0x68] sm:$0xff]
      %v199 = vld [vmem:[#allocation8 + $0x70] sm:$0xff]
      %v200 = vld [vmem:[#allocation8 + $0x78] sm:$0xff]
      %v201 = vld [vmem:[#allocation8 + $0x80] sm:$0xff]
      %v202 = vld [vmem:[#allocation8 + $0x88] sm:$0xff]
      %v203 = vld [vmem:[#allocation8 + $0x90] sm:$0xff]
      %v204 = vld [vmem:[#allocation8 + $0x98] sm:$0xff]
      %v205 = vld [vmem:[#allocation8 + $0xa0] sm:$0xff]
      %v206 = vld [vmem:[#allocation8 + $0xa8] sm:$0xff]
      %v207 = vld [vmem:[#allocation8 + $0xb0] sm:$0xff]
      %v208 = vld [vmem:[#allocation8 + $0xb8] sm:$0xff]
      %v209 = vld [vmem:[#allocation8 + $0xc0] sm:$0xff]
      %v210 = vld [vmem:[#allocation8 + $0xc8] sm:$0xff]
      %v211 = vld [vmem:[#allocation8 + $0xd0] sm:$0xff]
      %v212 = vld [vmem:[#allocation8 + $0xd8] sm:$0xff]
      %v213 = vld [vmem:[#allocation8 + $0xe0] sm:$0xff]
      %v214 = vld [vmem:[#allocation8 + $0xe8] sm:$0xff]
      %v215 = vld [vmem:[#allocation8 + $0xf0] sm:$0xff]
      %v216 = vld [vmem:[#allocation8 + $0xf8] sm:$0xff]
      %v217 = vld [vmem:[#allocation8 + $0x100] sm:$0xff]
      %v218 = vld [vmem:[#allocation8 + $0x108] sm:$0xff]
      %v219 = vld [vmem:[#allocation8 + $0x110] sm:$0xff]
      %v220 = vld [vmem:[#allocation8 + $0x118] sm:$0xff]
      %v221 = vld [vmem:[#allocation8 + $0x120] sm:$0xff]
      %v222 = vld [vmem:[#allocation8 + $0x128] sm:$0xff]
      %v223 = vld [vmem:[#allocation8 + $0x130] sm:$0xff]
      %v224 = vld [vmem:[#allocation8 + $0x138] sm:$0xff]
      %v225 = vld [vmem:[#allocation8 + $0x140] sm:$0xff]
      %v226 = vld [vmem:[#allocation8 + $0x148] sm:$0xff]
      %v227 = vld [vmem:[#allocation8 + $0x150] sm:$0xff]
      %v228 = vld [vmem:[#allocation8 + $0x158] sm:$0xff]
      %v229 = vld [vmem:[#allocation8 + $0x160] sm:$0xff]
      %v230 = vld [vmem:[#allocation8 + $0x168] sm:$0xff]
      %v231 = vld [vmem:[#allocation8 + $0x170] sm:$0xff]
      %v232 = vld [vmem:[#allocation8 + $0x178] sm:$0xff]
      %v233 = vld [vmem:[#allocation8 + $0x180] sm:$0xff]
      %v234 = vld [vmem:[#allocation8 + $0x188] sm:$0xff]
      %v235 = vld [vmem:[#allocation8 + $0x190] sm:$0xff]
      %v236 = vld [vmem:[#allocation8 + $0x198] sm:$0xff]
      %v237 = vld [vmem:[#allocation8 + $0x1a0] sm:$0xff]
      %v238 = vld [vmem:[#allocation8 + $0x1a8] sm:$0xff]
      %v239 = vld [vmem:[#allocation8 + $0x1b0] sm:$0xff]
      %v240 = vld [vmem:[#allocation8 + $0x1b8] sm:$0xff]
      %v241 = vld [vmem:[#allocation8 + $0x1c0] sm:$0xff]
      %v242 = vld [vmem:[#allocation8 + $0x1c8] sm:$0xff]
      %v243 = vld [vmem:[#allocation8 + $0x1d0] sm:$0xff]
      %v244 = vld [vmem:[#allocation8 + $0x1d8] sm:$0xff]
      %v245 = vld [vmem:[#allocation8 + $0x1e0] sm:$0xff]
      %v246 = vld [vmem:[#allocation8 + $0x1e8] sm:$0xff]
      %v247 = vld [vmem:[#allocation8 + $0x1f0] sm:$0xff]
      %v248 = vld [vmem:[#allocation8 + $0x1f8] sm:$0xff]
      %v249 = vld [vmem:[#allocation9] sm:$0xff]
      %v250 = vld [vmem:[#allocation9 + $0x8] sm:$0xff]
      %v251 = vld [vmem:[#allocation9 + $0x10] sm:$0xff]
      %v252 = vld [vmem:[#allocation9 + $0x18] sm:$0xff]
      %v253 = vld [vmem:[#allocation9 + $0x20] sm:$0xff]
      %v254 = vld [vmem:[#allocation9 + $0x28] sm:$0xff]
      %v255 = vld [vmem:[#allocation9 + $0x30] sm:$0xff]
      %v256 = vld [vmem:[#allocation9 + $0x38] sm:$0xff]
      %v257 = vld [vmem:[#allocation9 + $0x40] sm:$0xff]
      %v258 = vld [vmem:[#allocation9 + $0x48] sm:$0xff]
      %v259 = vld [vmem:[#allocation9 + $0x50] sm:$0xff]
      %v260 = vld [vmem:[#allocation9 + $0x58] sm:$0xff]
      %v261 = vld [vmem:[#allocation9 + $0x60] sm:$0xff]
      %v262 = vld [vmem:[#allocation9 + $0x68] sm:$0xff]
      %v263 = vld [vmem:[#allocation9 + $0x70] sm:$0xff]
      %v264 = vld [vmem:[#allocation9 + $0x78] sm:$0xff]
      %v265 = vld [vmem:[#allocation9 + $0x80] sm:$0xff]
      %v266 = vld [vmem:[#allocation9 + $0x88] sm:$0xff]
      %v267 = vld [vmem:[#allocation9 + $0x90] sm:$0xff]
      %v268 = vld [vmem:[#allocation9 + $0x98] sm:$0xff]
      %v269 = vld [vmem:[#allocation9 + $0xa0] sm:$0xff]
      %v270 = vld [vmem:[#allocation9 + $0xa8] sm:$0xff]
      %v271 = vld [vmem:[#allocation9 + $0xb0] sm:$0xff]
      %v272 = vld [vmem:[#allocation9 + $0xb8] sm:$0xff]
      %v273 = vld [vmem:[#allocation9 + $0xc0] sm:$0xff]
      %v274 = vld [vmem:[#allocation9 + $0xc8] sm:$0xff]
      %v275 = vld [vmem:[#allocation9 + $0xd0] sm:$0xff]
      %v276 = vld [vmem:[#allocation9 + $0xd8] sm:$0xff]
      %v277 = vld [vmem:[#allocation9 + $0xe0] sm:$0xff]
      %v278 = vld [vmem:[#allocation9 + $0xe8] sm:$0xff]
      %v279 = vld [vmem:[#allocation9 + $0xf0] sm:$0xff]
      %v280 = vld [vmem:[#allocation9 + $0xf8] sm:$0xff]
      %v281 = vld [vmem:[#allocation9 + $0x100] sm:$0xff]
      %v282 = vld [vmem:[#allocation9 + $0x108] sm:$0xff]
      %v283 = vld [vmem:[#allocation9 + $0x110] sm:$0xff]
      %v284 = vld [vmem:[#allocation9 + $0x118] sm:$0xff]
      %v285 = vld [vmem:[#allocation9 + $0x120] sm:$0xff]
      %v286 = vld [vmem:[#allocation9 + $0x128] sm:$0xff]
      %v287 = vld [vmem:[#allocation9 + $0x130] sm:$0xff]
      %v288 = vld [vmem:[#allocation9 + $0x138] sm:$0xff]
      %v289 = vld [vmem:[#allocation9 + $0x140] sm:$0xff]
      %v290 = vld [vmem:[#allocation9 + $0x148] sm:$0xff]
      %v291 = vld [vmem:[#allocation9 + $0x150] sm:$0xff]
      %v292 = vld [vmem:[#allocation9 + $0x158] sm:$0xff]
      %v293 = vld [vmem:[#allocation9 + $0x160] sm:$0xff]
      %v294 = vld [vmem:[#allocation9 + $0x168] sm:$0xff]
      %v295 = vld [vmem:[#allocation9 + $0x170] sm:$0xff]
      %v296 = vld [vmem:[#allocation9 + $0x178] sm:$0xff]
      %v297 = vld [vmem:[#allocation9 + $0x180] sm:$0xff]
      %v298 = vld [vmem:[#allocation9 + $0x188] sm:$0xff]
      %v299 = vld [vmem:[#allocation9 + $0x190] sm:$0xff]
      %v300 = vld [vmem:[#allocation9 + $0x198] sm:$0xff]
      %v301 = vld [vmem:[#allocation9 + $0x1a0] sm:$0xff]
      %v302 = vld [vmem:[#allocation9 + $0x1a8] sm:$0xff]
      %v303 = vld [vmem:[#allocation9 + $0x1b0] sm:$0xff]
      %v304 = vld [vmem:[#allocation9 + $0x1b8] sm:$0xff]
      %v305 = vld [vmem:[#allocation9 + $0x1c0] sm:$0xff]
      %v306 = vld [vmem:[#allocation9 + $0x1c8] sm:$0xff]
      %v307 = vld [vmem:[#allocation9 + $0x1d0] sm:$0xff]
      %v308 = vld [vmem:[#allocation9 + $0x1d8] sm:$0xff]
      %v309 = vld [vmem:[#allocation9 + $0x1e0] sm:$0xff]
      %v310 = vld [vmem:[#allocation9 + $0x1e8] sm:$0xff]
      %v311 = vld [vmem:[#allocation9 + $0x1f0] sm:$0xff]
      %v312 = vld [vmem:[#allocation9 + $0x1f8] sm:$0xff]
      %v314 = vsel %vm156, %v183, 0
      %316 = vmatprep.subr.mxu0 %v250
      %317 = vmatpush1.msra.mxu0 %v249
      %318 = vmatprep.subr.mxu0 %v258
      %319 = vmatpush1.msra.mxu0 %v257
      %320 = vmatprep.subr.mxu0 %v266
      %321 = vmatpush1.msra.mxu0 %v265
      %322 = vmatprep.subr.mxu0 %v274
      %323 = vmatpush1.msra.mxu0 %v273
      %324 = vmatprep.subr.mxu0 %v282
      %325 = vmatpush1.msra.mxu0 %v281
      %326 = vmatprep.subr.mxu0 %v290
      %327 = vmatpush1.msra.mxu0 %v289
      %328 = vmatprep.subr.mxu0 %v298
      %329 = vmatpush1.msra.mxu0 %v297
      %330 = vmatprep.subr.mxu0 %v306
      %331 = vmatpush1.msra.mxu0 %v305
      %332 = vmatprep.subr.mxu0 0.0
      %333 = vmatpush1.msra.mxu0 0.0
      %334 = vmatprep.subr.mxu0 0.0
      %335 = vmatpush1.msra.mxu0 0.0
      %336 = vmatprep.subr.mxu0 0.0
      %337 = vmatpush1.msra.mxu0 0.0
      %338 = vmatprep.subr.mxu0 0.0
      %339 = vmatpush1.msra.mxu0 0.0
      %340 = vmatprep.subr.mxu0 0.0
      %341 = vmatpush1.msra.mxu0 0.0
      %342 = vmatprep.subr.mxu0 0.0
      %343 = vmatpush1.msra.mxu0 0.0
      %344 = vmatprep.subr.mxu0 0.0
      %345 = vmatpush1.msra.mxu0 0.0
      %346 = vmatprep.subr.mxu0 0.0
      %347 = vmatpush1.msra.mxu0 0.0
      %348 = vmatprep.subr.mxu0 0.0
      %349 = vmatpush1.msra.mxu0 0.0
      %350 = vmatprep.subr.mxu0 0.0
      %351 = vmatpush1.msra.mxu0 0.0
      %352 = vmatprep.subr.mxu0 0.0
      %353 = vmatpush1.msra.mxu0 0.0
      %354 = vmatprep.subr.mxu0 0.0
      %355 = vmatpush1.msra.mxu0 0.0
      %356 = vmatprep.subr.mxu0 0.0
      %357 = vmatpush1.msra.mxu0 0.0
      %358 = vmatprep.subr.mxu0 0.0
      %359 = vmatpush1.msra.mxu0 0.0
      %360 = vmatprep.subr.mxu0 0.0
      %361 = vmatpush1.msra.mxu0 0.0
      %362 = vmatprep.subr.mxu0 0.0
      %363 = vmatpush1.msra.mxu0 0.0
      %364 = vmatprep.subr.mxu0 0.0
      %365 = vmatpush1.msra.mxu0 0.0
      %366 = vmatprep.subr.mxu0 0.0
      %367 = vmatpush1.msra.mxu0 0.0
      %368 = vmatprep.subr.mxu0 0.0
      %369 = vmatpush1.msra.mxu0 0.0
      %370 = vmatprep.subr.mxu0 0.0
      %371 = vmatpush1.msra.mxu0 0.0
      %372 = vmatprep.subr.mxu0 0.0
      %373 = vmatpush1.msra.mxu0 0.0
      %374 = vmatprep.subr.mxu0 0.0
      %375 = vmatpush1.msra.mxu0 0.0
      %376 = vmatprep.subr.mxu0 0.0
      %377 = vmatpush1.msra.mxu0 0.0
      %378 = vmatprep.subr.mxu0 0.0
      %379 = vmatpush1.msra.mxu0 0.0
      %380 = vmatprep.mubr.f32.mxu0 0.0
      %381 = vmatmul.mubr.f32.gmra.mrb[0].mxu0 %v314
      %v382 = vpop.f32.mrb[0].mxu0
      %v383 = vadd.f32 0.0, %v382
      %v384 = vpop.f32.mrb[0].mxu0
      %v385 = vadd.f32 0.0, %v384
      %386 = vdwg.mxu0
      %387 = vmatprep.subr.mxu0 %v252
      %388 = vmatpush1.msra.mxu0 %v251
      %389 = vmatprep.subr.mxu0 %v260
      %390 = vmatpush1.msra.mxu0 %v259
      %391 = vmatprep.subr.mxu0 %v268
      %392 = vmatpush1.msra.mxu0 %v267
      %393 = vmatprep.subr.mxu0 %v276
      %394 = vmatpush1.msra.mxu0 %v275
      %395 = vmatprep.subr.mxu0 %v284
      %396 = vmatpush1.msra.mxu0 %v283
      %397 = vmatprep.subr.mxu0 %v292
      %398 = vmatpush1.msra.mxu0 %v291
      %399 = vmatprep.subr.mxu0 %v300
      %400 = vmatpush1.msra.mxu0 %v299
      %401 = vmatprep.subr.mxu0 %v308
      %402 = vmatpush1.msra.mxu0 %v307
      %403 = vmatprep.subr.mxu0 0.0
      %404 = vmatpush1.msra.mxu0 0.0
      %405 = vmatprep.subr.mxu0 0.0
      %406 = vmatpush1.msra.mxu0 0.0
      %407 = vmatprep.subr.mxu0 0.0
      %408 = vmatpush1.msra.mxu0 0.0
      %409 = vmatprep.subr.mxu0 0.0
      %410 = vmatpush1.msra.mxu0 0.0
      %411 = vmatprep.subr.mxu0 0.0
      %412 = vmatpush1.msra.mxu0 0.0
      %413 = vmatprep.subr.mxu0 0.0
      %414 = vmatpush1.msra.mxu0 0.0
      %415 = vmatprep.subr.mxu0 0.0
      %416 = vmatpush1.msra.mxu0 0.0
      %417 = vmatprep.subr.mxu0 0.0
      %418 = vmatpush1.msra.mxu0 0.0
      %419 = vmatprep.subr.mxu0 0.0
      %420 = vmatpush1.msra.mxu0 0.0
      %421 = vmatprep.subr.mxu0 0.0
      %422 = vmatpush1.msra.mxu0 0.0
      %423 = vmatprep.subr.mxu0 0.0
      %424 = vmatpush1.msra.mxu0 0.0
      %425 = vmatprep.subr.mxu0 0.0
      %426 = vmatpush1.msra.mxu0 0.0
      %427 = vmatprep.subr.mxu0 0.0
      %428 = vmatpush1.msra.mxu0 0.0
      %429 = vmatprep.subr.mxu0 0.0
      %430 = vmatpush1.msra.mxu0 0.0
      %431 = vmatprep.subr.mxu0 0.0
      %432 = vmatpush1.msra.mxu0 0.0
      %433 = vmatprep.subr.mxu0 0.0
      %434 = vmatpush1.msra.mxu0 0.0
      %435 = vmatprep.subr.mxu0 0.0
      %436 = vmatpush1.msra.mxu0 0.0
      %437 = vmatprep.subr.mxu0 0.0
      %438 = vmatpush1.msra.mxu0 0.0
      %439 = vmatprep.subr.mxu0 0.0
      %440 = vmatpush1.msra.mxu0 0.0
      %441 = vmatprep.subr.mxu0 0.0
      %442 = vmatpush1.msra.mxu0 0.0
      %443 = vmatprep.subr.mxu0 0.0
      %444 = vmatpush1.msra.mxu0 0.0
      %445 = vmatprep.subr.mxu0 0.0
      %446 = vmatpush1.msra.mxu0 0.0
      %447 = vmatprep.subr.mxu0 0.0
      %448 = vmatpush1.msra.mxu0 0.0
      %449 = vmatprep.subr.mxu0 0.0
      %450 = vmatpush1.msra.mxu0 0.0
      %451 = vmatprep.mubr.f32.mxu0 0.0
      %452 = vmatmul.mubr.f32.gmra.mrb[0].mxu0 %v314
      %v453 = vpop.f32.mrb[0].mxu0
      %v454 = vadd.f32 0.0, %v453
      %v455 = vpop.f32.mrb[0].mxu0
      %v456 = vadd.f32 0.0, %v455
      %457 = vdwg.mxu0
      %458 = vmatprep.subr.mxu0 %v254
      %459 = vmatpush1.msra.mxu0 %v253
      %460 = vmatprep.subr.mxu0 %v262
      %461 = vmatpush1.msra.mxu0 %v261
      %462 = vmatprep.subr.mxu0 %v270
      %463 = vmatpush1.msra.mxu0 %v269
      %464 = vmatprep.subr.mxu0 %v278
      %465 = vmatpush1.msra.mxu0 %v277
      %466 = vmatprep.subr.mxu0 %v286
      %467 = vmatpush1.msra.mxu0 %v285
      %468 = vmatprep.subr.mxu0 %v294
      %469 = vmatpush1.msra.mxu0 %v293
      %470 = vmatprep.subr.mxu0 %v302
      %471 = vmatpush1.msra.mxu0 %v301
      %472 = vmatprep.subr.mxu0 %v310
      %473 = vmatpush1.msra.mxu0 %v309
      %474 = vmatprep.subr.mxu0 0.0
      %475 = vmatpush1.msra.mxu0 0.0
      %476 = vmatprep.subr.mxu0 0.0
      %477 = vmatpush1.msra.mxu0 0.0
      %478 = vmatprep.subr.mxu0 0.0
      %479 = vmatpush1.msra.mxu0 0.0
      %480 = vmatprep.subr.mxu0 0.0
      %481 = vmatpush1.msra.mxu0 0.0
      %482 = vmatprep.subr.mxu0 0.0
      %483 = vmatpush1.msra.mxu0 0.0
      %484 = vmatprep.subr.mxu0 0.0
      %485 = vmatpush1.msra.mxu0 0.0
      %486 = vmatprep.subr.mxu0 0.0
      %487 = vmatpush1.msra.mxu0 0.0
      %488 = vmatprep.subr.mxu0 0.0
      %489 = vmatpush1.msra.mxu0 0.0
      %490 = vmatprep.subr.mxu0 0.0
      %491 = vmatpush1.msra.mxu0 0.0
      %492 = vmatprep.subr.mxu0 0.0
      %493 = vmatpush1.msra.mxu0 0.0
      %494 = vmatprep.subr.mxu0 0.0
      %495 = vmatpush1.msra.mxu0 0.0
      %496 = vmatprep.subr.mxu0 0.0
      %497 = vmatpush1.msra.mxu0 0.0
      %498 = vmatprep.subr.mxu0 0.0
      %499 = vmatpush1.msra.mxu0 0.0
      %500 = vmatprep.subr.mxu0 0.0
      %501 = vmatpush1.msra.mxu0 0.0
      %502 = vmatprep.subr.mxu0 0.0
      %503 = vmatpush1.msra.mxu0 0.0
      %504 = vmatprep.subr.mxu0 0.0
      %505 = vmatpush1.msra.mxu0 0.0
      %506 = vmatprep.subr.mxu0 0.0
      %507 = vmatpush1.msra.mxu0 0.0
      %508 = vmatprep.subr.mxu0 0.0
      %509 = vmatpush1.msra.mxu0 0.0
      %510 = vmatprep.subr.mxu0 0.0
      %511 = vmatpush1.msra.mxu0 0.0
      %512 = vmatprep.subr.mxu0 0.0
      %513 = vmatpush1.msra.mxu0 0.0
      %514 = vmatprep.subr.mxu0 0.0
      %515 = vmatpush1.msra.mxu0 0.0
      %516 = vmatprep.subr.mxu0 0.0
      %517 = vmatpush1.msra.mxu0 0.0
      %518 = vmatprep.subr.mxu0 0.0
      %519 = vmatpush1.msra.mxu0 0.0
      %520 = vmatprep.subr.mxu0 0.0
      %521 = vmatpush1.msra.mxu0 0.0
      %522 = vmatprep.mubr.f32.mxu0 0.0
      %523 = vmatmul.mubr.f32.gmra.mrb[0].mxu0 %v314
      %v524 = vpop.f32.mrb[0].mxu0
      %v525 = vadd.f32 0.0, %v524
      %v526 = vpop.f32.mrb[0].mxu0
      %v527 = vadd.f32 0.0, %v526
      %528 = vdwg.mxu0
      %529 = vmatprep.subr.mxu0 %v256
      %530 = vmatpush1.msra.mxu0 %v255
      %531 = vmatprep.subr.mxu0 %v264
      %532 = vmatpush1.msra.mxu0 %v263
      %533 = vmatprep.subr.mxu0 %v272
      %534 = vmatpush1.msra.mxu0 %v271
      %535 = vmatprep.subr.mxu0 %v280
      %536 = vmatpush1.msra.mxu0 %v279
      %537 = vmatprep.subr.mxu0 %v288
      %538 = vmatpush1.msra.mxu0 %v287
      %539 = vmatprep.subr.mxu0 %v296
      %540 = vmatpush1.msra.mxu0 %v295
      %541 = vmatprep.subr.mxu0 %v304
      %542 = vmatpush1.msra.mxu0 %v303
      %543 = vmatprep.subr.mxu0 %v312
      %544 = vmatpush1.msra.mxu0 %v311
      %545 = vmatprep.subr.mxu0 0.0
      %546 = vmatpush1.msra.mxu0 0.0
      %547 = vmatprep.subr.mxu0 0.0
      %548 = vmatpush1.msra.mxu0 0.0
      %549 = vmatprep.subr.mxu0 0.0
      %550 = vmatpush1.msra.mxu0 0.0
      %551 = vmatprep.subr.mxu0 0.0
      %552 = vmatpush1.msra.mxu0 0.0
      %553 = vmatprep.subr.mxu0 0.0
      %554 = vmatpush1.msra.mxu0 0.0
      %555 = vmatprep.subr.mxu0 0.0
      %556 = vmatpush1.msra.mxu0 0.0
      %557 = vmatprep.subr.mxu0 0.0
      %558 = vmatpush1.msra.mxu0 0.0
      %559 = vmatprep.subr.mxu0 0.0
      %560 = vmatpush1.msra.mxu0 0.0
      %561 = vmatprep.subr.mxu0 0.0
      %562 = vmatpush1.msra.mxu0 0.0
      %563 = vmatprep.subr.mxu0 0.0
      %564 = vmatpush1.msra.mxu0 0.0
      %565 = vmatprep.subr.mxu0 0.0
      %566 = vmatpush1.msra.mxu0 0.0
      %567 = vmatprep.subr.mxu0 0.0
      %568 = vmatpush1.msra.mxu0 0.0
      %569 = vmatprep.subr.mxu0 0.0
      %570 = vmatpush1.msra.mxu0 0.0
      %571 = vmatprep.subr.mxu0 0.0
      %572 = vmatpush1.msra.mxu0 0.0
      %573 = vmatprep.subr.mxu0 0.0
      %574 = vmatpush1.msra.mxu0 0.0
      %575 = vmatprep.subr.mxu0 0.0
      %576 = vmatpush1.msra.mxu0 0.0
      %577 = vmatprep.subr.mxu0 0.0
      %578 = vmatpush1.msra.mxu0 0.0
      %579 = vmatprep.subr.mxu0 0.0
      %580 = vmatpush1.msra.mxu0 0.0
      %581 = vmatprep.subr.mxu0 0.0
      %582 = vmatpush1.msra.mxu0 0.0
      %583 = vmatprep.subr.mxu0 0.0
      %584 = vmatpush1.msra.mxu0 0.0
      %585 = vmatprep.subr.mxu0 0.0
      %586 = vmatpush1.msra.mxu0 0.0
      %587 = vmatprep.subr.mxu0 0.0
      %588 = vmatpush1.msra.mxu0 0.0
      %589 = vmatprep.subr.mxu0 0.0
      %590 = vmatpush1.msra.mxu0 0.0
      %591 = vmatprep.subr.mxu0 0.0
      %592 = vmatpush1.msra.mxu0 0.0
      %593 = vmatprep.mubr.f32.mxu0 0.0
      %594 = vmatmul.mubr.f32.gmra.mrb[0].mxu0 %v314
      %v595 = vpop.f32.mrb[0].mxu0
      %v596 = vadd.f32 0.0, %v595
      %v597 = vpop.f32.mrb[0].mxu0
      %v598 = vadd.f32 0.0, %v597
      %599 = vdwg.mxu0
      %v601 = vsel %vm156, %v184, 0
      %603 = vmatprep.subr.mxu0 %v186
      %604 = vmatpush1.msra.mxu0 %v185
      %605 = vmatprep.subr.mxu0 %v194
      %606 = vmatpush1.msra.mxu0 %v193
      %607 = vmatprep.subr.mxu0 %v202
      %608 = vmatpush1.msra.mxu0 %v201
      %609 = vmatprep.subr.mxu0 %v210
      %610 = vmatpush1.msra.mxu0 %v209
      %611 = vmatprep.subr.mxu0 %v218
      %612 = vmatpush1.msra.mxu0 %v217
      %613 = vmatprep.subr.mxu0 %v226
      %614 = vmatpush1.msra.mxu0 %v225
      %615 = vmatprep.subr.mxu0 %v234
      %616 = vmatpush1.msra.mxu0 %v233
      %617 = vmatprep.subr.mxu0 %v242
      %618 = vmatpush1.msra.mxu0 %v241
      %619 = vmatprep.subr.mxu0 0.0
      %620 = vmatpush1.msra.mxu0 0.0
      %621 = vmatprep.subr.mxu0 0.0
      %622 = vmatpush1.msra.mxu0 0.0
      %623 = vmatprep.subr.mxu0 0.0
      %624 = vmatpush1.msra.mxu0 0.0
      %625 = vmatprep.subr.mxu0 0.0
      %626 = vmatpush1.msra.mxu0 0.0
      %627 = vmatprep.subr.mxu0 0.0
      %628 = vmatpush1.msra.mxu0 0.0
      %629 = vmatprep.subr.mxu0 0.0
      %630 = vmatpush1.msra.mxu0 0.0
      %631 = vmatprep.subr.mxu0 0.0
      %632 = vmatpush1.msra.mxu0 0.0
      %633 = vmatprep.subr.mxu0 0.0
      %634 = vmatpush1.msra.mxu0 0.0
      %635 = vmatprep.subr.mxu0 0.0
      %636 = vmatpush1.msra.mxu0 0.0
      %637 = vmatprep.subr.mxu0 0.0
      %638 = vmatpush1.msra.mxu0 0.0
      %639 = vmatprep.subr.mxu0 0.0
      %640 = vmatpush1.msra.mxu0 0.0
      %641 = vmatprep.subr.mxu0 0.0
      %642 = vmatpush1.msra.mxu0 0.0
      %643 = vmatprep.subr.mxu0 0.0
      %644 = vmatpush1.msra.mxu0 0.0
      %645 = vmatprep.subr.mxu0 0.0
      %646 = vmatpush1.msra.mxu0 0.0
      %647 = vmatprep.subr.mxu0 0.0
      %648 = vmatpush1.msra.mxu0 0.0
      %649 = vmatprep.subr.mxu0 0.0
      %650 = vmatpush1.msra.mxu0 0.0
      %651 = vmatprep.subr.mxu0 0.0
      %652 = vmatpush1.msra.mxu0 0.0
      %653 = vmatprep.subr.mxu0 0.0
      %654 = vmatpush1.msra.mxu0 0.0
      %655 = vmatprep.subr.mxu0 0.0
      %656 = vmatpush1.msra.mxu0 0.0
      %657 = vmatprep.subr.mxu0 0.0
      %658 = vmatpush1.msra.mxu0 0.0
      %659 = vmatprep.subr.mxu0 0.0
      %660 = vmatpush1.msra.mxu0 0.0
      %661 = vmatprep.subr.mxu0 0.0
      %662 = vmatpush1.msra.mxu0 0.0
      %663 = vmatprep.subr.mxu0 0.0
      %664 = vmatpush1.msra.mxu0 0.0
      %665 = vmatprep.subr.mxu0 0.0
      %666 = vmatpush1.msra.mxu0 0.0
      %667 = vmatprep.mubr.f32.mxu0 0.0
      %668 = vmatmul.mubr.f32.gmra.mrb[0].mxu0 %v601
      %v669 = vpop.f32.mrb[0].mxu0
      %v670 = vadd.f32 %v383, %v669
      %v671 = vpop.f32.mrb[0].mxu0
      %v672 = vadd.f32 %v385, %v671
      %673 = vdwg.mxu0
      %674 = vmatprep.subr.mxu0 %v188
      %675 = vmatpush1.msra.mxu0 %v187
      %676 = vmatprep.subr.mxu0 %v196
      %677 = vmatpush1.msra.mxu0 %v195
      %678 = vmatprep.subr.mxu0 %v204
      %679 = vmatpush1.msra.mxu0 %v203
      %680 = vmatprep.subr.mxu0 %v212
      %681 = vmatpush1.msra.mxu0 %v211
      %682 = vmatprep.subr.mxu0 %v220
      %683 = vmatpush1.msra.mxu0 %v219
      %684 = vmatprep.subr.mxu0 %v228
      %685 = vmatpush1.msra.mxu0 %v227
      %686 = vmatprep.subr.mxu0 %v236
      %687 = vmatpush1.msra.mxu0 %v235
      %688 = vmatprep.subr.mxu0 %v244
      %689 = vmatpush1.msra.mxu0 %v243
      %690 = vmatprep.subr.mxu0 0.0
      %691 = vmatpush1.msra.mxu0 0.0
      %692 = vmatprep.subr.mxu0 0.0
      %693 = vmatpush1.msra.mxu0 0.0
      %694 = vmatprep.subr.mxu0 0.0
      %695 = vmatpush1.msra.mxu0 0.0
      %696 = vmatprep.subr.mxu0 0.0
      %697 = vmatpush1.msra.mxu0 0.0
      %698 = vmatprep.subr.mxu0 0.0
      %699 = vmatpush1.msra.mxu0 0.0
      %700 = vmatprep.subr.mxu0 0.0
      %701 = vmatpush1.msra.mxu0 0.0
      %702 = vmatprep.subr.mxu0 0.0
      %703 = vmatpush1.msra.mxu0 0.0
      %704 = vmatprep.subr.mxu0 0.0
      %705 = vmatpush1.msra.mxu0 0.0
      %706 = vmatprep.subr.mxu0 0.0
      %707 = vmatpush1.msra.mxu0 0.0
      %708 = vmatprep.subr.mxu0 0.0
      %709 = vmatpush1.msra.mxu0 0.0
      %710 = vmatprep.subr.mxu0 0.0
      %711 = vmatpush1.msra.mxu0 0.0
      %712 = vmatprep.subr.mxu0 0.0
      %713 = vmatpush1.msra.mxu0 0.0
      %714 = vmatprep.subr.mxu0 0.0
      %715 = vmatpush1.msra.mxu0 0.0
      %716 = vmatprep.subr.mxu0 0.0
      %717 = vmatpush1.msra.mxu0 0.0
      %718 = vmatprep.subr.mxu0 0.0
      %719 = vmatpush1.msra.mxu0 0.0
      %720 = vmatprep.subr.mxu0 0.0
      %721 = vmatpush1.msra.mxu0 0.0
      %722 = vmatprep.subr.mxu0 0.0
      %723 = vmatpush1.msra.mxu0 0.0
      %724 = vmatprep.subr.mxu0 0.0
      %725 = vmatpush1.msra.mxu0 0.0
      %726 = vmatprep.subr.mxu0 0.0
      %727 = vmatpush1.msra.mxu0 0.0
      %728 = vmatprep.subr.mxu0 0.0
      %729 = vmatpush1.msra.mxu0 0.0
      %730 = vmatprep.subr.mxu0 0.0
      %731 = vmatpush1.msra.mxu0 0.0
      %732 = vmatprep.subr.mxu0 0.0
      %733 = vmatpush1.msra.mxu0 0.0
      %734 = vmatprep.subr.mxu0 0.0
      %735 = vmatpush1.msra.mxu0 0.0
      %736 = vmatprep.subr.mxu0 0.0
      %737 = vmatpush1.msra.mxu0 0.0
      %738 = vmatprep.mubr.f32.mxu0 0.0
      %739 = vmatmul.mubr.f32.gmra.mrb[0].mxu0 %v601
      %v740 = vpop.f32.mrb[0].mxu0
      %v741 = vadd.f32 %v454, %v740
      %v742 = vpop.f32.mrb[0].mxu0
      %v743 = vadd.f32 %v456, %v742
      %744 = vdwg.mxu0
      %745 = vmatprep.subr.mxu0 %v190
      %746 = vmatpush1.msra.mxu0 %v189
      %747 = vmatprep.subr.mxu0 %v198
      %748 = vmatpush1.msra.mxu0 %v197
      %749 = vmatprep.subr.mxu0 %v206
      %750 = vmatpush1.msra.mxu0 %v205
      %751 = vmatprep.subr.mxu0 %v214
      %752 = vmatpush1.msra.mxu0 %v213
      %753 = vmatprep.subr.mxu0 %v222
      %754 = vmatpush1.msra.mxu0 %v221
      %755 = vmatprep.subr.mxu0 %v230
      %756 = vmatpush1.msra.mxu0 %v229
      %757 = vmatprep.subr.mxu0 %v238
      %758 = vmatpush1.msra.mxu0 %v237
      %759 = vmatprep.subr.mxu0 %v246
      %760 = vmatpush1.msra.mxu0 %v245
      %761 = vmatprep.subr.mxu0 0.0
      %762 = vmatpush1.msra.mxu0 0.0
      %763 = vmatprep.subr.mxu0 0.0
      %764 = vmatpush1.msra.mxu0 0.0
      %765 = vmatprep.subr.mxu0 0.0
      %766 = vmatpush1.msra.mxu0 0.0
      %767 = vmatprep.subr.mxu0 0.0
      %768 = vmatpush1.msra.mxu0 0.0
      %769 = vmatprep.subr.mxu0 0.0
      %770 = vmatpush1.msra.mxu0 0.0
      %771 = vmatprep.subr.mxu0 0.0
      %772 = vmatpush1.msra.mxu0 0.0
      %773 = vmatprep.subr.mxu0 0.0
      %774 = vmatpush1.msra.mxu0 0.0
      %775 = vmatprep.subr.mxu0 0.0
      %776 = vmatpush1.msra.mxu0 0.0
      %777 = vmatprep.subr.mxu0 0.0
      %778 = vmatpush1.msra.mxu0 0.0
      %779 = vmatprep.subr.mxu0 0.0
      %780 = vmatpush1.msra.mxu0 0.0
      %781 = vmatprep.subr.mxu0 0.0
      %782 = vmatpush1.msra.mxu0 0.0
      %783 = vmatprep.subr.mxu0 0.0
      %784 = vmatpush1.msra.mxu0 0.0
      %785 = vmatprep.subr.mxu0 0.0
      %786 = vmatpush1.msra.mxu0 0.0
      %787 = vmatprep.subr.mxu0 0.0
      %788 = vmatpush1.msra.mxu0 0.0
      %789 = vmatprep.subr.mxu0 0.0
      %790 = vmatpush1.msra.mxu0 0.0
      %791 = vmatprep.subr.mxu0 0.0
      %792 = vmatpush1.msra.mxu0 0.0
      %793 = vmatprep.subr.mxu0 0.0
      %794 = vmatpush1.msra.mxu0 0.0
      %795 = vmatprep.subr.mxu0 0.0
      %796 = vmatpush1.msra.mxu0 0.0
      %797 = vmatprep.subr.mxu0 0.0
      %798 = vmatpush1.msra.mxu0 0.0
      %799 = vmatprep.subr.mxu0 0.0
      %800 = vmatpush1.msra.mxu0 0.0
      %801 = vmatprep.subr.mxu0 0.0
      %802 = vmatpush1.msra.mxu0 0.0
      %803 = vmatprep.subr.mxu0 0.0
      %804 = vmatpush1.msra.mxu0 0.0
      %805 = vmatprep.subr.mxu0 0.0
      %806 = vmatpush1.msra.mxu0 0.0
      %807 = vmatprep.subr.mxu0 0.0
      %808 = vmatpush1.msra.mxu0 0.0
      %809 = vmatprep.mubr.f32.mxu0 0.0
      %810 = vmatmul.mubr.f32.gmra.mrb[0].mxu0 %v601
      %v811 = vpop.f32.mrb[0].mxu0
      %v812 = vadd.f32 %v525, %v811
      %v813 = vpop.f32.mrb[0].mxu0
      %v814 = vadd.f32 %v527, %v813
      %815 = vdwg.mxu0
      %816 = vmatprep.subr.mxu0 %v192
      %817 = vmatpush1.msra.mxu0 %v191
      %818 = vmatprep.subr.mxu0 %v200
      %819 = vmatpush1.msra.mxu0 %v199
      %820 = vmatprep.subr.mxu0 %v208
      %821 = vmatpush1.msra.mxu0 %v207
      %822 = vmatprep.subr.mxu0 %v216
      %823 = vmatpush1.msra.mxu0 %v215
      %824 = vmatprep.subr.mxu0 %v224
      %825 = vmatpush1.msra.mxu0 %v223
      %826 = vmatprep.subr.mxu0 %v232
      %827 = vmatpush1.msra.mxu0 %v231
      %828 = vmatprep.subr.mxu0 %v240
      %829 = vmatpush1.msra.mxu0 %v239
      %830 = vmatprep.subr.mxu0 %v248
      %831 = vmatpush1.msra.mxu0 %v247
      %832 = vmatprep.subr.mxu0 0.0
      %833 = vmatpush1.msra.mxu0 0.0
      %834 = vmatprep.subr.mxu0 0.0
      %835 = vmatpush1.msra.mxu0 0.0
      %836 = vmatprep.subr.mxu0 0.0
      %837 = vmatpush1.msra.mxu0 0.0
      %838 = vmatprep.subr.mxu0 0.0
      %839 = vmatpush1.msra.mxu0 0.0
      %840 = vmatprep.subr.mxu0 0.0
      %841 = vmatpush1.msra.mxu0 0.0
      %842 = vmatprep.subr.mxu0 0.0
      %843 = vmatpush1.msra.mxu0 0.0
      %844 = vmatprep.subr.mxu0 0.0
      %845 = vmatpush1.msra.mxu0 0.0
      %846 = vmatprep.subr.mxu0 0.0
      %847 = vmatpush1.msra.mxu0 0.0
      %848 = vmatprep.subr.mxu0 0.0
      %849 = vmatpush1.msra.mxu0 0.0
      %850 = vmatprep.subr.mxu0 0.0
      %851 = vmatpush1.msra.mxu0 0.0
      %852 = vmatprep.subr.mxu0 0.0
      %853 = vmatpush1.msra.mxu0 0.0
      %854 = vmatprep.subr.mxu0 0.0
      %855 = vmatpush1.msra.mxu0 0.0
      %856 = vmatprep.subr.mxu0 0.0
      %857 = vmatpush1.msra.mxu0 0.0
      %858 = vmatprep.subr.mxu0 0.0
      %859 = vmatpush1.msra.mxu0 0.0
      %860 = vmatprep.subr.mxu0 0.0
      %861 = vmatpush1.msra.mxu0 0.0
      %862 = vmatprep.subr.mxu0 0.0
      %863 = vmatpush1.msra.mxu0 0.0
      %864 = vmatprep.subr.mxu0 0.0
      %865 = vmatpush1.msra.mxu0 0.0
      %866 = vmatprep.subr.mxu0 0.0
      %867 = vmatpush1.msra.mxu0 0.0
      %868 = vmatprep.subr.mxu0 0.0
      %869 = vmatpush1.msra.mxu0 0.0
      %870 = vmatprep.subr.mxu0 0.0
      %871 = vmatpush1.msra.mxu0 0.0
      %872 = vmatprep.subr.mxu0 0.0
      %873 = vmatpush1.msra.mxu0 0.0
      %874 = vmatprep.subr.mxu0 0.0
      %875 = vmatpush1.msra.mxu0 0.0
      %876 = vmatprep.subr.mxu0 0.0
      %877 = vmatpush1.msra.mxu0 0.0
      %878 = vmatprep.subr.mxu0 0.0
      %879 = vmatpush1.msra.mxu0 0.0
      %880 = vmatprep.mubr.f32.mxu0 0.0
      %881 = vmatmul.mubr.f32.gmra.mrb[0].mxu0 %v601
      %v882 = vpop.f32.mrb[0].mxu0
      %v883 = vadd.f32 %v596, %v882
      %v884 = vpop.f32.mrb[0].mxu0
      %v885 = vadd.f32 %v598, %v884
      %886 = vdwg.mxu0
      %v887 = vld [vmem:[#allocation11] sm:$0xff]
      %v889 = vlaneseq
      %v890 = vshrl.u32 %v889, 7
      %v891 = vsub.s32 0, %v890
      %v892 = vrot.slane %v887, %v891
      %v893 = vlaneseq
      %v894 = vshrl.u32 %v893, 7
      %v895 = vsub.s32 1, %v894
      %v896 = vrot.slane %v887, %v895
      %v897 = vlaneseq
      %v898 = vshrl.u32 %v897, 7
      %v899 = vsub.s32 2, %v898
      %v900 = vrot.slane %v887, %v899
      %v901 = vlaneseq
      %v902 = vshrl.u32 %v901, 7
      %v903 = vsub.s32 3, %v902
      %v904 = vrot.slane %v887, %v903
      %v905 = vlaneseq
      %v906 = vshrl.u32 %v905, 7
      %v907 = vsub.s32 4, %v906
      %v908 = vrot.slane %v887, %v907
      %v909 = vlaneseq
      %v910 = vshrl.u32 %v909, 7
      %v911 = vsub.s32 5, %v910
      %v912 = vrot.slane %v887, %v911
      %v913 = vlaneseq
      %v914 = vshrl.u32 %v913, 7
      %v915 = vsub.s32 6, %v914
      %v916 = vrot.slane %v887, %v915
      %v917 = vlaneseq
      %v918 = vshrl.u32 %v917, 7
      %v919 = vsub.s32 7, %v918
      %v920 = vrot.slane %v887, %v919
      %v929 = vadd.f32 %v670, %v892
      %v930 = vadd.f32 %v672, %v896
      %v931 = vadd.f32 %v741, %v900
      %v932 = vadd.f32 %v743, %v904
      %v933 = vadd.f32 %v812, %v908
      %v934 = vadd.f32 %v814, %v912
      %v935 = vadd.f32 %v883, %v916
      %v936 = vadd.f32 %v885, %v920
      %v937 = vmul.f32 %v929, 0.5
      %v938 = vmul.f32 %v930, 0.5
      %v939 = vmul.f32 %v931, 0.5
      %v940 = vmul.f32 %v932, 0.5
      %v941 = vmul.f32 %v933, 0.5
      %v942 = vmul.f32 %v934, 0.5
      %v943 = vmul.f32 %v935, 0.5
      %v944 = vmul.f32 %v936, 0.5
      %v945 = vmul.f32 %v929, 0.70710677
      %v946 = vmul.f32 %v930, 0.70710677
      %v947 = vmul.f32 %v931, 0.70710677
      %v948 = vmul.f32 %v932, 0.70710677
      %v949 = vmul.f32 %v933, 0.70710677
      %v950 = vmul.f32 %v934, 0.70710677
      %v951 = vmul.f32 %v935, 0.70710677
      %v952 = vmul.f32 %v936, 0.70710677
      %v953 = verf.f32.pop %v945
      %v954 = verf.f32.pop %v946
      %v955 = verf.f32.pop %v947
      %v956 = verf.f32.pop %v948
      %v957 = verf.f32.pop %v949
      %v958 = verf.f32.pop %v950
      %v959 = verf.f32.pop %v951
      %v960 = verf.f32.pop %v952
      %v961 = vadd.f32 %v953, 1.0
      %v962 = vadd.f32 %v954, 1.0
      %v963 = vadd.f32 %v955, 1.0
      %v964 = vadd.f32 %v956, 1.0
      %v965 = vadd.f32 %v957, 1.0
      %v966 = vadd.f32 %v958, 1.0
      %v967 = vadd.f32 %v959, 1.0
      %v968 = vadd.f32 %v960, 1.0
      %v969 = vmul.f32 %v937, %v961
      %v970 = vmul.f32 %v938, %v962
      %v971 = vmul.f32 %v939, %v963
      %v972 = vmul.f32 %v940, %v964
      %v973 = vmul.f32 %v941, %v965
      %v974 = vmul.f32 %v942, %v966
      %v975 = vmul.f32 %v943, %v967
      %v976 = vmul.f32 %v944, %v968
      %v977 = vld [vmem:[#allocation12] sm:$0xff]
      %v978 = vld [vmem:[#allocation12 + $0x8] sm:$0xff]
      %v979 = vld [vmem:[#allocation12 + $0x10] sm:$0xff]
      %v980 = vld [vmem:[#allocation12 + $0x18] sm:$0xff]
      %v981 = vld [vmem:[#allocation12 + $0x20] sm:$0xff]
      %v982 = vld [vmem:[#allocation12 + $0x28] sm:$0xff]
      %v983 = vld [vmem:[#allocation12 + $0x30] sm:$0xff]
      %v984 = vld [vmem:[#allocation12 + $0x38] sm:$0xff]
      %v985 = vld [vmem:[#allocation12 + $0x40] sm:$0xff]
      %v986 = vld [vmem:[#allocation12 + $0x48] sm:$0xff]
      %v987 = vld [vmem:[#allocation12 + $0x50] sm:$0xff]
      %v988 = vld [vmem:[#allocation12 + $0x58] sm:$0xff]
      %v989 = vld [vmem:[#allocation12 + $0x60] sm:$0xff]
      %v990 = vld [vmem:[#allocation12 + $0x68] sm:$0xff]
      %v991 = vld [vmem:[#allocation12 + $0x70] sm:$0xff]
      %v992 = vld [vmem:[#allocation12 + $0x78] sm:$0xff]
      %v993 = vld [vmem:[#allocation12 + $0x80] sm:$0xff]
      %v994 = vld [vmem:[#allocation12 + $0x88] sm:$0xff]
      %v995 = vld [vmem:[#allocation12 + $0x90] sm:$0xff]
      %v996 = vld [vmem:[#allocation12 + $0x98] sm:$0xff]
      %v997 = vld [vmem:[#allocation12 + $0xa0] sm:$0xff]
      %v998 = vld [vmem:[#allocation12 + $0xa8] sm:$0xff]
      %v999 = vld [vmem:[#allocation12 + $0xb0] sm:$0xff]
      %v1000 = vld [vmem:[#allocation12 + $0xb8] sm:$0xff]
      %v1001 = vld [vmem:[#allocation12 + $0xc0] sm:$0xff]
      %v1002 = vld [vmem:[#allocation12 + $0xc8] sm:$0xff]
      %v1003 = vld [vmem:[#allocation12 + $0xd0] sm:$0xff]
      %v1004 = vld [vmem:[#allocation12 + $0xd8] sm:$0xff]
      %v1005 = vld [vmem:[#allocation12 + $0xe0] sm:$0xff]
      %v1006 = vld [vmem:[#allocation12 + $0xe8] sm:$0xff]
      %v1007 = vld [vmem:[#allocation12 + $0xf0] sm:$0xff]
      %v1008 = vld [vmem:[#allocation12 + $0xf8] sm:$0xff]
      %v1009 = vld [vmem:[#allocation12 + $0x100] sm:$0xff]
      %v1010 = vld [vmem:[#allocation12 + $0x108] sm:$0xff]
      %v1011 = vld [vmem:[#allocation12 + $0x110] sm:$0xff]
      %v1012 = vld [vmem:[#allocation12 + $0x118] sm:$0xff]
      %v1013 = vld [vmem:[#allocation12 + $0x120] sm:$0xff]
      %v1014 = vld [vmem:[#allocation12 + $0x128] sm:$0xff]
      %v1015 = vld [vmem:[#allocation12 + $0x130] sm:$0xff]
      %v1016 = vld [vmem:[#allocation12 + $0x138] sm:$0xff]
      %v1017 = vld [vmem:[#allocation12 + $0x140] sm:$0xff]
      %v1018 = vld [vmem:[#allocation12 + $0x148] sm:$0xff]
      %v1019 = vld [vmem:[#allocation12 + $0x150] sm:$0xff]
      %v1020 = vld [vmem:[#allocation12 + $0x158] sm:$0xff]
      %v1021 = vld [vmem:[#allocation12 + $0x160] sm:$0xff]
      %v1022 = vld [vmem:[#allocation12 + $0x168] sm:$0xff]
      %v1023 = vld [vmem:[#allocation12 + $0x170] sm:$0xff]
      %v1024 = vld [vmem:[#allocation12 + $0x178] sm:$0xff]
      %v1025 = vld [vmem:[#allocation12 + $0x180] sm:$0xff]
      %v1026 = vld [vmem:[#allocation12 + $0x188] sm:$0xff]
      %v1027 = vld [vmem:[#allocation12 + $0x190] sm:$0xff]
      %v1028 = vld [vmem:[#allocation12 + $0x198] sm:$0xff]
      %v1029 = vld [vmem:[#allocation12 + $0x1a0] sm:$0xff]
      %v1030 = vld [vmem:[#allocation12 + $0x1a8] sm:$0xff]
      %v1031 = vld [vmem:[#allocation12 + $0x1b0] sm:$0xff]
      %v1032 = vld [vmem:[#allocation12 + $0x1b8] sm:$0xff]
      %v1033 = vld [vmem:[#allocation12 + $0x1c0] sm:$0xff]
      %v1034 = vld [vmem:[#allocation12 + $0x1c8] sm:$0xff]
      %v1035 = vld [vmem:[#allocation12 + $0x1d0] sm:$0xff]
      %v1036 = vld [vmem:[#allocation12 + $0x1d8] sm:$0xff]
      %v1037 = vld [vmem:[#allocation12 + $0x1e0] sm:$0xff]
      %v1038 = vld [vmem:[#allocation12 + $0x1e8] sm:$0xff]
      %v1039 = vld [vmem:[#allocation12 + $0x1f0] sm:$0xff]
      %v1040 = vld [vmem:[#allocation12 + $0x1f8] sm:$0xff]
      %v1041 = vld [vmem:[#allocation12 + $0x200] sm:$0xff]
      %v1042 = vld [vmem:[#allocation12 + $0x208] sm:$0xff]
      %v1043 = vld [vmem:[#allocation12 + $0x210] sm:$0xff]
      %v1044 = vld [vmem:[#allocation12 + $0x218] sm:$0xff]
      %v1045 = vld [vmem:[#allocation12 + $0x220] sm:$0xff]
      %v1046 = vld [vmem:[#allocation12 + $0x228] sm:$0xff]
      %v1047 = vld [vmem:[#allocation12 + $0x230] sm:$0xff]
      %v1048 = vld [vmem:[#allocation12 + $0x238] sm:$0xff]
      %v1049 = vld [vmem:[#allocation12 + $0x240] sm:$0xff]
      %v1050 = vld [vmem:[#allocation12 + $0x248] sm:$0xff]
      %v1051 = vld [vmem:[#allocation12 + $0x250] sm:$0xff]
      %v1052 = vld [vmem:[#allocation12 + $0x258] sm:$0xff]
      %v1053 = vld [vmem:[#allocation12 + $0x260] sm:$0xff]
      %v1054 = vld [vmem:[#allocation12 + $0x268] sm:$0xff]
      %v1055 = vld [vmem:[#allocation12 + $0x270] sm:$0xff]
      %v1056 = vld [vmem:[#allocation12 + $0x278] sm:$0xff]
      %v1057 = vld [vmem:[#allocation12 + $0x280] sm:$0xff]
      %v1058 = vld [vmem:[#allocation12 + $0x288] sm:$0xff]
      %v1059 = vld [vmem:[#allocation12 + $0x290] sm:$0xff]
      %v1060 = vld [vmem:[#allocation12 + $0x298] sm:$0xff]
      %v1061 = vld [vmem:[#allocation12 + $0x2a0] sm:$0xff]
      %v1062 = vld [vmem:[#allocation12 + $0x2a8] sm:$0xff]
      %v1063 = vld [vmem:[#allocation12 + $0x2b0] sm:$0xff]
      %v1064 = vld [vmem:[#allocation12 + $0x2b8] sm:$0xff]
      %v1065 = vld [vmem:[#allocation12 + $0x2c0] sm:$0xff]
      %v1066 = vld [vmem:[#allocation12 + $0x2c8] sm:$0xff]
      %v1067 = vld [vmem:[#allocation12 + $0x2d0] sm:$0xff]
      %v1068 = vld [vmem:[#allocation12 + $0x2d8] sm:$0xff]
      %v1069 = vld [vmem:[#allocation12 + $0x2e0] sm:$0xff]
      %v1070 = vld [vmem:[#allocation12 + $0x2e8] sm:$0xff]
      %v1071 = vld [vmem:[#allocation12 + $0x2f0] sm:$0xff]
      %v1072 = vld [vmem:[#allocation12 + $0x2f8] sm:$0xff]
      %v1073 = vld [vmem:[#allocation12 + $0x300] sm:$0xff]
      %v1074 = vld [vmem:[#allocation12 + $0x308] sm:$0xff]
      %v1075 = vld [vmem:[#allocation12 + $0x310] sm:$0xff]
      %v1076 = vld [vmem:[#allocation12 + $0x318] sm:$0xff]
      %v1077 = vld [vmem:[#allocation12 + $0x320] sm:$0xff]
      %v1078 = vld [vmem:[#allocation12 + $0x328] sm:$0xff]
      %v1079 = vld [vmem:[#allocation12 + $0x330] sm:$0xff]
      %v1080 = vld [vmem:[#allocation12 + $0x338] sm:$0xff]
      %v1081 = vld [vmem:[#allocation12 + $0x340] sm:$0xff]
      %v1082 = vld [vmem:[#allocation12 + $0x348] sm:$0xff]
      %v1083 = vld [vmem:[#allocation12 + $0x350] sm:$0xff]
      %v1084 = vld [vmem:[#allocation12 + $0x358] sm:$0xff]
      %v1085 = vld [vmem:[#allocation12 + $0x360] sm:$0xff]
      %v1086 = vld [vmem:[#allocation12 + $0x368] sm:$0xff]
      %v1087 = vld [vmem:[#allocation12 + $0x370] sm:$0xff]
      %v1088 = vld [vmem:[#allocation12 + $0x378] sm:$0xff]
      %v1089 = vld [vmem:[#allocation12 + $0x380] sm:$0xff]
      %v1090 = vld [vmem:[#allocation12 + $0x388] sm:$0xff]
      %v1091 = vld [vmem:[#allocation12 + $0x390] sm:$0xff]
      %v1092 = vld [vmem:[#allocation12 + $0x398] sm:$0xff]
      %v1093 = vld [vmem:[#allocation12 + $0x3a0] sm:$0xff]
      %v1094 = vld [vmem:[#allocation12 + $0x3a8] sm:$0xff]
      %v1095 = vld [vmem:[#allocation12 + $0x3b0] sm:$0xff]
      %v1096 = vld [vmem:[#allocation12 + $0x3b8] sm:$0xff]
      %v1097 = vld [vmem:[#allocation12 + $0x3c0] sm:$0xff]
      %v1098 = vld [vmem:[#allocation12 + $0x3c8] sm:$0xff]
      %v1099 = vld [vmem:[#allocation12 + $0x3d0] sm:$0xff]
      %v1100 = vld [vmem:[#allocation12 + $0x3d8] sm:$0xff]
      %v1101 = vld [vmem:[#allocation12 + $0x3e0] sm:$0xff]
      %v1102 = vld [vmem:[#allocation12 + $0x3e8] sm:$0xff]
      %v1103 = vld [vmem:[#allocation12 + $0x3f0] sm:$0xff]
      %v1104 = vld [vmem:[#allocation12 + $0x3f8] sm:$0xff]
      %v1105 = vld [vmem:[#allocation12 + $0x400] sm:$0xff]
      %v1106 = vld [vmem:[#allocation12 + $0x408] sm:$0xff]
      %v1107 = vld [vmem:[#allocation12 + $0x410] sm:$0xff]
      %v1108 = vld [vmem:[#allocation12 + $0x418] sm:$0xff]
      %v1109 = vld [vmem:[#allocation12 + $0x420] sm:$0xff]
      %v1110 = vld [vmem:[#allocation12 + $0x428] sm:$0xff]
      %v1111 = vld [vmem:[#allocation12 + $0x430] sm:$0xff]
      %v1112 = vld [vmem:[#allocation12 + $0x438] sm:$0xff]
      %v1113 = vld [vmem:[#allocation12 + $0x440] sm:$0xff]
      %v1114 = vld [vmem:[#allocation12 + $0x448] sm:$0xff]
      %v1115 = vld [vmem:[#allocation12 + $0x450] sm:$0xff]
      %v1116 = vld [vmem:[#allocation12 + $0x458] sm:$0xff]
      %v1117 = vld [vmem:[#allocation12 + $0x460] sm:$0xff]
      %v1118 = vld [vmem:[#allocation12 + $0x468] sm:$0xff]
      %v1119 = vld [vmem:[#allocation12 + $0x470] sm:$0xff]
      %v1120 = vld [vmem:[#allocation12 + $0x478] sm:$0xff]
      %v1121 = vld [vmem:[#allocation12 + $0x480] sm:$0xff]
      %v1122 = vld [vmem:[#allocation12 + $0x488] sm:$0xff]
      %v1123 = vld [vmem:[#allocation12 + $0x490] sm:$0xff]
      %v1124 = vld [vmem:[#allocation12 + $0x498] sm:$0xff]
      %v1125 = vld [vmem:[#allocation12 + $0x4a0] sm:$0xff]
      %v1126 = vld [vmem:[#allocation12 + $0x4a8] sm:$0xff]
      %v1127 = vld [vmem:[#allocation12 + $0x4b0] sm:$0xff]
      %v1128 = vld [vmem:[#allocation12 + $0x4b8] sm:$0xff]
      %v1129 = vld [vmem:[#allocation12 + $0x4c0] sm:$0xff]
      %v1130 = vld [vmem:[#allocation12 + $0x4c8] sm:$0xff]
      %v1131 = vld [vmem:[#allocation12 + $0x4d0] sm:$0xff]
      %v1132 = vld [vmem:[#allocation12 + $0x4d8] sm:$0xff]
      %v1133 = vld [vmem:[#allocation12 + $0x4e0] sm:$0xff]
      %v1134 = vld [vmem:[#allocation12 + $0x4e8] sm:$0xff]
      %v1135 = vld [vmem:[#allocation12 + $0x4f0] sm:$0xff]
      %v1136 = vld [vmem:[#allocation12 + $0x4f8] sm:$0xff]
      %v1137 = vld [vmem:[#allocation12 + $0x500] sm:$0xff]
      %v1138 = vld [vmem:[#allocation12 + $0x508] sm:$0xff]
      %v1139 = vld [vmem:[#allocation12 + $0x510] sm:$0xff]
      %v1140 = vld [vmem:[#allocation12 + $0x518] sm:$0xff]
      %v1141 = vld [vmem:[#allocation12 + $0x520] sm:$0xff]
      %v1142 = vld [vmem:[#allocation12 + $0x528] sm:$0xff]
      %v1143 = vld [vmem:[#allocation12 + $0x530] sm:$0xff]
      %v1144 = vld [vmem:[#allocation12 + $0x538] sm:$0xff]
      %v1145 = vld [vmem:[#allocation12 + $0x540] sm:$0xff]
      %v1146 = vld [vmem:[#allocation12 + $0x548] sm:$0xff]
      %v1147 = vld [vmem:[#allocation12 + $0x550] sm:$0xff]
      %v1148 = vld [vmem:[#allocation12 + $0x558] sm:$0xff]
      %v1149 = vld [vmem:[#allocation12 + $0x560] sm:$0xff]
      %v1150 = vld [vmem:[#allocation12 + $0x568] sm:$0xff]
      %v1151 = vld [vmem:[#allocation12 + $0x570] sm:$0xff]
      %v1152 = vld [vmem:[#allocation12 + $0x578] sm:$0xff]
      %v1153 = vld [vmem:[#allocation12 + $0x580] sm:$0xff]
      %v1154 = vld [vmem:[#allocation12 + $0x588] sm:$0xff]
      %v1155 = vld [vmem:[#allocation12 + $0x590] sm:$0xff]
      %v1156 = vld [vmem:[#allocation12 + $0x598] sm:$0xff]
      %v1157 = vld [vmem:[#allocation12 + $0x5a0] sm:$0xff]
      %v1158 = vld [vmem:[#allocation12 + $0x5a8] sm:$0xff]
      %v1159 = vld [vmem:[#allocation12 + $0x5b0] sm:$0xff]
      %v1160 = vld [vmem:[#allocation12 + $0x5b8] sm:$0xff]
      %v1161 = vld [vmem:[#allocation12 + $0x5c0] sm:$0xff]
      %v1162 = vld [vmem:[#allocation12 + $0x5c8] sm:$0xff]
      %v1163 = vld [vmem:[#allocation12 + $0x5d0] sm:$0xff]
      %v1164 = vld [vmem:[#allocation12 + $0x5d8] sm:$0xff]
      %v1165 = vld [vmem:[#allocation12 + $0x5e0] sm:$0xff]
      %v1166 = vld [vmem:[#allocation12 + $0x5e8] sm:$0xff]
      %v1167 = vld [vmem:[#allocation12 + $0x5f0] sm:$0xff]
      %v1168 = vld [vmem:[#allocation12 + $0x5f8] sm:$0xff]
      %v1169 = vld [vmem:[#allocation12 + $0x600] sm:$0xff]
      %v1170 = vld [vmem:[#allocation12 + $0x608] sm:$0xff]
      %v1171 = vld [vmem:[#allocation12 + $0x610] sm:$0xff]
      %v1172 = vld [vmem:[#allocation12 + $0x618] sm:$0xff]
      %v1173 = vld [vmem:[#allocation12 + $0x620] sm:$0xff]
      %v1174 = vld [vmem:[#allocation12 + $0x628] sm:$0xff]
      %v1175 = vld [vmem:[#allocation12 + $0x630] sm:$0xff]
      %v1176 = vld [vmem:[#allocation12 + $0x638] sm:$0xff]
      %v1177 = vld [vmem:[#allocation12 + $0x640] sm:$0xff]
      %v1178 = vld [vmem:[#allocation12 + $0x648] sm:$0xff]
      %v1179 = vld [vmem:[#allocation12 + $0x650] sm:$0xff]
      %v1180 = vld [vmem:[#allocation12 + $0x658] sm:$0xff]
      %v1181 = vld [vmem:[#allocation12 + $0x660] sm:$0xff]
      %v1182 = vld [vmem:[#allocation12 + $0x668] sm:$0xff]
      %v1183 = vld [vmem:[#allocation12 + $0x670] sm:$0xff]
      %v1184 = vld [vmem:[#allocation12 + $0x678] sm:$0xff]
      %v1185 = vld [vmem:[#allocation12 + $0x680] sm:$0xff]
      %v1186 = vld [vmem:[#allocation12 + $0x688] sm:$0xff]
      %v1187 = vld [vmem:[#allocation12 + $0x690] sm:$0xff]
      %v1188 = vld [vmem:[#allocation12 + $0x698] sm:$0xff]
      %v1189 = vld [vmem:[#allocation12 + $0x6a0] sm:$0xff]
      %v1190 = vld [vmem:[#allocation12 + $0x6a8] sm:$0xff]
      %v1191 = vld [vmem:[#allocation12 + $0x6b0] sm:$0xff]
      %v1192 = vld [vmem:[#allocation12 + $0x6b8] sm:$0xff]
      %v1193 = vld [vmem:[#allocation12 + $0x6c0] sm:$0xff]
      %v1194 = vld [vmem:[#allocation12 + $0x6c8] sm:$0xff]
      %v1195 = vld [vmem:[#allocation12 + $0x6d0] sm:$0xff]
      %v1196 = vld [vmem:[#allocation12 + $0x6d8] sm:$0xff]
      %v1197 = vld [vmem:[#allocation12 + $0x6e0] sm:$0xff]
      %v1198 = vld [vmem:[#allocation12 + $0x6e8] sm:$0xff]
      %v1199 = vld [vmem:[#allocation12 + $0x6f0] sm:$0xff]
      %v1200 = vld [vmem:[#allocation12 + $0x6f8] sm:$0xff]
      %v1201 = vld [vmem:[#allocation12 + $0x700] sm:$0xff]
      %v1202 = vld [vmem:[#allocation12 + $0x708] sm:$0xff]
      %v1203 = vld [vmem:[#allocation12 + $0x710] sm:$0xff]
      %v1204 = vld [vmem:[#allocation12 + $0x718] sm:$0xff]
      %v1205 = vld [vmem:[#allocation12 + $0x720] sm:$0xff]
      %v1206 = vld [vmem:[#allocation12 + $0x728] sm:$0xff]
      %v1207 = vld [vmem:[#allocation12 + $0x730] sm:$0xff]
      %v1208 = vld [vmem:[#allocation12 + $0x738] sm:$0xff]
      %v1209 = vld [vmem:[#allocation12 + $0x740] sm:$0xff]
      %v1210 = vld [vmem:[#allocation12 + $0x748] sm:$0xff]
      %v1211 = vld [vmem:[#allocation12 + $0x750] sm:$0xff]
      %v1212 = vld [vmem:[#allocation12 + $0x758] sm:$0xff]
      %v1213 = vld [vmem:[#allocation12 + $0x760] sm:$0xff]
      %v1214 = vld [vmem:[#allocation12 + $0x768] sm:$0xff]
      %v1215 = vld [vmem:[#allocation12 + $0x770] sm:$0xff]
      %v1216 = vld [vmem:[#allocation12 + $0x778] sm:$0xff]
      %v1217 = vld [vmem:[#allocation12 + $0x780] sm:$0xff]
      %v1218 = vld [vmem:[#allocation12 + $0x788] sm:$0xff]
      %v1219 = vld [vmem:[#allocation12 + $0x790] sm:$0xff]
      %v1220 = vld [vmem:[#allocation12 + $0x798] sm:$0xff]
      %v1221 = vld [vmem:[#allocation12 + $0x7a0] sm:$0xff]
      %v1222 = vld [vmem:[#allocation12 + $0x7a8] sm:$0xff]
      %v1223 = vld [vmem:[#allocation12 + $0x7b0] sm:$0xff]
      %v1224 = vld [vmem:[#allocation12 + $0x7b8] sm:$0xff]
      %v1225 = vld [vmem:[#allocation12 + $0x7c0] sm:$0xff]
      %v1226 = vld [vmem:[#allocation12 + $0x7c8] sm:$0xff]
      %v1227 = vld [vmem:[#allocation12 + $0x7d0] sm:$0xff]
      %v1228 = vld [vmem:[#allocation12 + $0x7d8] sm:$0xff]
      %v1229 = vld [vmem:[#allocation12 + $0x7e0] sm:$0xff]
      %v1230 = vld [vmem:[#allocation12 + $0x7e8] sm:$0xff]
      %v1231 = vld [vmem:[#allocation12 + $0x7f0] sm:$0xff]
      %v1232 = vld [vmem:[#allocation12 + $0x7f8] sm:$0xff]
      %v1233 = vld [vmem:[#allocation12 + $0x800] sm:$0xff]
      %v1234 = vld [vmem:[#allocation12 + $0x808] sm:$0xff]
      %v1235 = vld [vmem:[#allocation12 + $0x810] sm:$0xff]
      %v1236 = vld [vmem:[#allocation12 + $0x818] sm:$0xff]
      %v1237 = vld [vmem:[#allocation12 + $0x820] sm:$0xff]
      %v1238 = vld [vmem:[#allocation12 + $0x828] sm:$0xff]
      %v1239 = vld [vmem:[#allocation12 + $0x830] sm:$0xff]
      %v1240 = vld [vmem:[#allocation12 + $0x838] sm:$0xff]
      %v1241 = vld [vmem:[#allocation12 + $0x840] sm:$0xff]
      %v1242 = vld [vmem:[#allocation12 + $0x848] sm:$0xff]
      %v1243 = vld [vmem:[#allocation12 + $0x850] sm:$0xff]
      %v1244 = vld [vmem:[#allocation12 + $0x858] sm:$0xff]
      %v1245 = vld [vmem:[#allocation12 + $0x860] sm:$0xff]
      %v1246 = vld [vmem:[#allocation12 + $0x868] sm:$0xff]
      %v1247 = vld [vmem:[#allocation12 + $0x870] sm:$0xff]
      %v1248 = vld [vmem:[#allocation12 + $0x878] sm:$0xff]
      %v1249 = vld [vmem:[#allocation12 + $0x880] sm:$0xff]
      %v1250 = vld [vmem:[#allocation12 + $0x888] sm:$0xff]
      %v1251 = vld [vmem:[#allocation12 + $0x890] sm:$0xff]
      %v1252 = vld [vmem:[#allocation12 + $0x898] sm:$0xff]
      %v1253 = vld [vmem:[#allocation12 + $0x8a0] sm:$0xff]
      %v1254 = vld [vmem:[#allocation12 + $0x8a8] sm:$0xff]
      %v1255 = vld [vmem:[#allocation12 + $0x8b0] sm:$0xff]
      %v1256 = vld [vmem:[#allocation12 + $0x8b8] sm:$0xff]
      %v1257 = vld [vmem:[#allocation12 + $0x8c0] sm:$0xff]
      %v1258 = vld [vmem:[#allocation12 + $0x8c8] sm:$0xff]
      %v1259 = vld [vmem:[#allocation12 + $0x8d0] sm:$0xff]
      %v1260 = vld [vmem:[#allocation12 + $0x8d8] sm:$0xff]
      %v1261 = vld [vmem:[#allocation12 + $0x8e0] sm:$0xff]
      %v1262 = vld [vmem:[#allocation12 + $0x8e8] sm:$0xff]
      %v1263 = vld [vmem:[#allocation12 + $0x8f0] sm:$0xff]
      %v1264 = vld [vmem:[#allocation12 + $0x8f8] sm:$0xff]
      %v1265 = vld [vmem:[#allocation12 + $0x900] sm:$0xff]
      %v1266 = vld [vmem:[#allocation12 + $0x908] sm:$0xff]
      %v1267 = vld [vmem:[#allocation12 + $0x910] sm:$0xff]
      %v1268 = vld [vmem:[#allocation12 + $0x918] sm:$0xff]
      %v1269 = vld [vmem:[#allocation12 + $0x920] sm:$0xff]
      %v1270 = vld [vmem:[#allocation12 + $0x928] sm:$0xff]
      %v1271 = vld [vmem:[#allocation12 + $0x930] sm:$0xff]
      %v1272 = vld [vmem:[#allocation12 + $0x938] sm:$0xff]
      %v1273 = vld [vmem:[#allocation12 + $0x940] sm:$0xff]
      %v1274 = vld [vmem:[#allocation12 + $0x948] sm:$0xff]
      %v1275 = vld [vmem:[#allocation12 + $0x950] sm:$0xff]
      %v1276 = vld [vmem:[#allocation12 + $0x958] sm:$0xff]
      %v1277 = vld [vmem:[#allocation12 + $0x960] sm:$0xff]
      %v1278 = vld [vmem:[#allocation12 + $0x968] sm:$0xff]
      %v1279 = vld [vmem:[#allocation12 + $0x970] sm:$0xff]
      %v1280 = vld [vmem:[#allocation12 + $0x978] sm:$0xff]
      %v1281 = vld [vmem:[#allocation12 + $0x980] sm:$0xff]
      %v1282 = vld [vmem:[#allocation12 + $0x988] sm:$0xff]
      %v1283 = vld [vmem:[#allocation12 + $0x990] sm:$0xff]
      %v1284 = vld [vmem:[#allocation12 + $0x998] sm:$0xff]
      %v1285 = vld [vmem:[#allocation12 + $0x9a0] sm:$0xff]
      %v1286 = vld [vmem:[#allocation12 + $0x9a8] sm:$0xff]
      %v1287 = vld [vmem:[#allocation12 + $0x9b0] sm:$0xff]
      %v1288 = vld [vmem:[#allocation12 + $0x9b8] sm:$0xff]
      %v1289 = vld [vmem:[#allocation12 + $0x9c0] sm:$0xff]
      %v1290 = vld [vmem:[#allocation12 + $0x9c8] sm:$0xff]
      %v1291 = vld [vmem:[#allocation12 + $0x9d0] sm:$0xff]
      %v1292 = vld [vmem:[#allocation12 + $0x9d8] sm:$0xff]
      %v1293 = vld [vmem:[#allocation12 + $0x9e0] sm:$0xff]
      %v1294 = vld [vmem:[#allocation12 + $0x9e8] sm:$0xff]
      %v1295 = vld [vmem:[#allocation12 + $0x9f0] sm:$0xff]
      %v1296 = vld [vmem:[#allocation12 + $0x9f8] sm:$0xff]
      %v1297 = vld [vmem:[#allocation12 + $0xa00] sm:$0xff]
      %v1298 = vld [vmem:[#allocation12 + $0xa08] sm:$0xff]
      %v1299 = vld [vmem:[#allocation12 + $0xa10] sm:$0xff]
      %v1300 = vld [vmem:[#allocation12 + $0xa18] sm:$0xff]
      %v1301 = vld [vmem:[#allocation12 + $0xa20] sm:$0xff]
      %v1302 = vld [vmem:[#allocation12 + $0xa28] sm:$0xff]
      %v1303 = vld [vmem:[#allocation12 + $0xa30] sm:$0xff]
      %v1304 = vld [vmem:[#allocation12 + $0xa38] sm:$0xff]
      %v1305 = vld [vmem:[#allocation12 + $0xa40] sm:$0xff]
      %v1306 = vld [vmem:[#allocation12 + $0xa48] sm:$0xff]
      %v1307 = vld [vmem:[#allocation12 + $0xa50] sm:$0xff]
      %v1308 = vld [vmem:[#allocation12 + $0xa58] sm:$0xff]
      %v1309 = vld [vmem:[#allocation12 + $0xa60] sm:$0xff]
      %v1310 = vld [vmem:[#allocation12 + $0xa68] sm:$0xff]
      %v1311 = vld [vmem:[#allocation12 + $0xa70] sm:$0xff]
      %v1312 = vld [vmem:[#allocation12 + $0xa78] sm:$0xff]
      %v1313 = vld [vmem:[#allocation12 + $0xa80] sm:$0xff]
      %v1314 = vld [vmem:[#allocation12 + $0xa88] sm:$0xff]
      %v1315 = vld [vmem:[#allocation12 + $0xa90] sm:$0xff]
      %v1316 = vld [vmem:[#allocation12 + $0xa98] sm:$0xff]
      %v1317 = vld [vmem:[#allocation12 + $0xaa0] sm:$0xff]
      %v1318 = vld [vmem:[#allocation12 + $0xaa8] sm:$0xff]
      %v1319 = vld [vmem:[#allocation12 + $0xab0] sm:$0xff]
      %v1320 = vld [vmem:[#allocation12 + $0xab8] sm:$0xff]
      %v1321 = vld [vmem:[#allocation12 + $0xac0] sm:$0xff]
      %v1322 = vld [vmem:[#allocation12 + $0xac8] sm:$0xff]
      %v1323 = vld [vmem:[#allocation12 + $0xad0] sm:$0xff]
      %v1324 = vld [vmem:[#allocation12 + $0xad8] sm:$0xff]
      %v1325 = vld [vmem:[#allocation12 + $0xae0] sm:$0xff]
      %v1326 = vld [vmem:[#allocation12 + $0xae8] sm:$0xff]
      %v1327 = vld [vmem:[#allocation12 + $0xaf0] sm:$0xff]
      %v1328 = vld [vmem:[#allocation12 + $0xaf8] sm:$0xff]
      %v1329 = vld [vmem:[#allocation12 + $0xb00] sm:$0xff]
      %v1330 = vld [vmem:[#allocation12 + $0xb08] sm:$0xff]
      %v1331 = vld [vmem:[#allocation12 + $0xb10] sm:$0xff]
      %v1332 = vld [vmem:[#allocation12 + $0xb18] sm:$0xff]
      %v1333 = vld [vmem:[#allocation12 + $0xb20] sm:$0xff]
      %v1334 = vld [vmem:[#allocation12 + $0xb28] sm:$0xff]
      %v1335 = vld [vmem:[#allocation12 + $0xb30] sm:$0xff]
      %v1336 = vld [vmem:[#allocation12 + $0xb38] sm:$0xff]
      %v1337 = vld [vmem:[#allocation12 + $0xb40] sm:$0xff]
      %v1338 = vld [vmem:[#allocation12 + $0xb48] sm:$0xff]
      %v1339 = vld [vmem:[#allocation12 + $0xb50] sm:$0xff]
      %v1340 = vld [vmem:[#allocation12 + $0xb58] sm:$0xff]
      %v1341 = vld [vmem:[#allocation12 + $0xb60] sm:$0xff]
      %v1342 = vld [vmem:[#allocation12 + $0xb68] sm:$0xff]
      %v1343 = vld [vmem:[#allocation12 + $0xb70] sm:$0xff]
      %v1344 = vld [vmem:[#allocation12 + $0xb78] sm:$0xff]
      %v1345 = vld [vmem:[#allocation12 + $0xb80] sm:$0xff]
      %v1346 = vld [vmem:[#allocation12 + $0xb88] sm:$0xff]
      %v1347 = vld [vmem:[#allocation12 + $0xb90] sm:$0xff]
      %v1348 = vld [vmem:[#allocation12 + $0xb98] sm:$0xff]
      %v1349 = vld [vmem:[#allocation12 + $0xba0] sm:$0xff]
      %v1350 = vld [vmem:[#allocation12 + $0xba8] sm:$0xff]
      %v1351 = vld [vmem:[#allocation12 + $0xbb0] sm:$0xff]
      %v1352 = vld [vmem:[#allocation12 + $0xbb8] sm:$0xff]
      %v1353 = vld [vmem:[#allocation12 + $0xbc0] sm:$0xff]
      %v1354 = vld [vmem:[#allocation12 + $0xbc8] sm:$0xff]
      %v1355 = vld [vmem:[#allocation12 + $0xbd0] sm:$0xff]
      %v1356 = vld [vmem:[#allocation12 + $0xbd8] sm:$0xff]
      %v1357 = vld [vmem:[#allocation12 + $0xbe0] sm:$0xff]
      %v1358 = vld [vmem:[#allocation12 + $0xbe8] sm:$0xff]
      %v1359 = vld [vmem:[#allocation12 + $0xbf0] sm:$0xff]
      %v1360 = vld [vmem:[#allocation12 + $0xbf8] sm:$0xff]
      %v1361 = vld [vmem:[#allocation12 + $0xc00] sm:$0xff]
      %v1362 = vld [vmem:[#allocation12 + $0xc08] sm:$0xff]
      %v1363 = vld [vmem:[#allocation12 + $0xc10] sm:$0xff]
      %v1364 = vld [vmem:[#allocation12 + $0xc18] sm:$0xff]
      %v1365 = vld [vmem:[#allocation12 + $0xc20] sm:$0xff]
      %v1366 = vld [vmem:[#allocation12 + $0xc28] sm:$0xff]
      %v1367 = vld [vmem:[#allocation12 + $0xc30] sm:$0xff]
      %v1368 = vld [vmem:[#allocation12 + $0xc38] sm:$0xff]
      %v1369 = vld [vmem:[#allocation12 + $0xc40] sm:$0xff]
      %v1370 = vld [vmem:[#allocation12 + $0xc48] sm:$0xff]
      %v1371 = vld [vmem:[#allocation12 + $0xc50] sm:$0xff]
      %v1372 = vld [vmem:[#allocation12 + $0xc58] sm:$0xff]
      %v1373 = vld [vmem:[#allocation12 + $0xc60] sm:$0xff]
      %v1374 = vld [vmem:[#allocation12 + $0xc68] sm:$0xff]
      %v1375 = vld [vmem:[#allocation12 + $0xc70] sm:$0xff]
      %v1376 = vld [vmem:[#allocation12 + $0xc78] sm:$0xff]
      %v1377 = vld [vmem:[#allocation12 + $0xc80] sm:$0xff]
      %v1378 = vld [vmem:[#allocation12 + $0xc88] sm:$0xff]
      %v1379 = vld [vmem:[#allocation12 + $0xc90] sm:$0xff]
      %v1380 = vld [vmem:[#allocation12 + $0xc98] sm:$0xff]
      %v1381 = vld [vmem:[#allocation12 + $0xca0] sm:$0xff]
      %v1382 = vld [vmem:[#allocation12 + $0xca8] sm:$0xff]
      %v1383 = vld [vmem:[#allocation12 + $0xcb0] sm:$0xff]
      %v1384 = vld [vmem:[#allocation12 + $0xcb8] sm:$0xff]
      %v1385 = vld [vmem:[#allocation12 + $0xcc0] sm:$0xff]
      %v1386 = vld [vmem:[#allocation12 + $0xcc8] sm:$0xff]
      %v1387 = vld [vmem:[#allocation12 + $0xcd0] sm:$0xff]
      %v1388 = vld [vmem:[#allocation12 + $0xcd8] sm:$0xff]
      %v1389 = vld [vmem:[#allocation12 + $0xce0] sm:$0xff]
      %v1390 = vld [vmem:[#allocation12 + $0xce8] sm:$0xff]
      %v1391 = vld [vmem:[#allocation12 + $0xcf0] sm:$0xff]
      %v1392 = vld [vmem:[#allocation12 + $0xcf8] sm:$0xff]
      %v1393 = vld [vmem:[#allocation12 + $0xd00] sm:$0xff]
      %v1394 = vld [vmem:[#allocation12 + $0xd08] sm:$0xff]
      %v1395 = vld [vmem:[#allocation12 + $0xd10] sm:$0xff]
      %v1396 = vld [vmem:[#allocation12 + $0xd18] sm:$0xff]
      %v1397 = vld [vmem:[#allocation12 + $0xd20] sm:$0xff]
      %v1398 = vld [vmem:[#allocation12 + $0xd28] sm:$0xff]
      %v1399 = vld [vmem:[#allocation12 + $0xd30] sm:$0xff]
      %v1400 = vld [vmem:[#allocation12 + $0xd38] sm:$0xff]
      %v1401 = vld [vmem:[#allocation12 + $0xd40] sm:$0xff]
      %v1402 = vld [vmem:[#allocation12 + $0xd48] sm:$0xff]
      %v1403 = vld [vmem:[#allocation12 + $0xd50] sm:$0xff]
      %v1404 = vld [vmem:[#allocation12 + $0xd58] sm:$0xff]
      %v1405 = vld [vmem:[#allocation12 + $0xd60] sm:$0xff]
      %v1406 = vld [vmem:[#allocation12 + $0xd68] sm:$0xff]
      %v1407 = vld [vmem:[#allocation12 + $0xd70] sm:$0xff]
      %v1408 = vld [vmem:[#allocation12 + $0xd78] sm:$0xff]
      %v1409 = vld [vmem:[#allocation12 + $0xd80] sm:$0xff]
      %v1410 = vld [vmem:[#allocation12 + $0xd88] sm:$0xff]
      %v1411 = vld [vmem:[#allocation12 + $0xd90] sm:$0xff]
      %v1412 = vld [vmem:[#allocation12 + $0xd98] sm:$0xff]
      %v1413 = vld [vmem:[#allocation12 + $0xda0] sm:$0xff]
      %v1414 = vld [vmem:[#allocation12 + $0xda8] sm:$0xff]
      %v1415 = vld [vmem:[#allocation12 + $0xdb0] sm:$0xff]
      %v1416 = vld [vmem:[#allocation12 + $0xdb8] sm:$0xff]
      %v1417 = vld [vmem:[#allocation12 + $0xdc0] sm:$0xff]
      %v1418 = vld [vmem:[#allocation12 + $0xdc8] sm:$0xff]
      %v1419 = vld [vmem:[#allocation12 + $0xdd0] sm:$0xff]
      %v1420 = vld [vmem:[#allocation12 + $0xdd8] sm:$0xff]
      %v1421 = vld [vmem:[#allocation12 + $0xde0] sm:$0xff]
      %v1422 = vld [vmem:[#allocation12 + $0xde8] sm:$0xff]
      %v1423 = vld [vmem:[#allocation12 + $0xdf0] sm:$0xff]
      %v1424 = vld [vmem:[#allocation12 + $0xdf8] sm:$0xff]
      %v1425 = vld [vmem:[#allocation12 + $0xe00] sm:$0xff]
      %v1426 = vld [vmem:[#allocation12 + $0xe08] sm:$0xff]
      %v1427 = vld [vmem:[#allocation12 + $0xe10] sm:$0xff]
      %v1428 = vld [vmem:[#allocation12 + $0xe18] sm:$0xff]
      %v1429 = vld [vmem:[#allocation12 + $0xe20] sm:$0xff]
      %v1430 = vld [vmem:[#allocation12 + $0xe28] sm:$0xff]
      %v1431 = vld [vmem:[#allocation12 + $0xe30] sm:$0xff]
      %v1432 = vld [vmem:[#allocation12 + $0xe38] sm:$0xff]
      %v1433 = vld [vmem:[#allocation12 + $0xe40] sm:$0xff]
      %v1434 = vld [vmem:[#allocation12 + $0xe48] sm:$0xff]
      %v1435 = vld [vmem:[#allocation12 + $0xe50] sm:$0xff]
      %v1436 = vld [vmem:[#allocation12 + $0xe58] sm:$0xff]
      %v1437 = vld [vmem:[#allocation12 + $0xe60] sm:$0xff]
      %v1438 = vld [vmem:[#allocation12 + $0xe68] sm:$0xff]
      %v1439 = vld [vmem:[#allocation12 + $0xe70] sm:$0xff]
      %v1440 = vld [vmem:[#allocation12 + $0xe78] sm:$0xff]
      %v1441 = vld [vmem:[#allocation12 + $0xe80] sm:$0xff]
      %v1442 = vld [vmem:[#allocation12 + $0xe88] sm:$0xff]
      %v1443 = vld [vmem:[#allocation12 + $0xe90] sm:$0xff]
      %v1444 = vld [vmem:[#allocation12 + $0xe98] sm:$0xff]
      %v1445 = vld [vmem:[#allocation12 + $0xea0] sm:$0xff]
      %v1446 = vld [vmem:[#allocation12 + $0xea8] sm:$0xff]
      %v1447 = vld [vmem:[#allocation12 + $0xeb0] sm:$0xff]
      %v1448 = vld [vmem:[#allocation12 + $0xeb8] sm:$0xff]
      %v1449 = vld [vmem:[#allocation12 + $0xec0] sm:$0xff]
      %v1450 = vld [vmem:[#allocation12 + $0xec8] sm:$0xff]
      %v1451 = vld [vmem:[#allocation12 + $0xed0] sm:$0xff]
      %v1452 = vld [vmem:[#allocation12 + $0xed8] sm:$0xff]
      %v1453 = vld [vmem:[#allocation12 + $0xee0] sm:$0xff]
      %v1454 = vld [vmem:[#allocation12 + $0xee8] sm:$0xff]
      %v1455 = vld [vmem:[#allocation12 + $0xef0] sm:$0xff]
      %v1456 = vld [vmem:[#allocation12 + $0xef8] sm:$0xff]
      %v1457 = vld [vmem:[#allocation12 + $0xf00] sm:$0xff]
      %v1458 = vld [vmem:[#allocation12 + $0xf08] sm:$0xff]
      %v1459 = vld [vmem:[#allocation12 + $0xf10] sm:$0xff]
      %v1460 = vld [vmem:[#allocation12 + $0xf18] sm:$0xff]
      %v1461 = vld [vmem:[#allocation12 + $0xf20] sm:$0xff]
      %v1462 = vld [vmem:[#allocation12 + $0xf28] sm:$0xff]
      %v1463 = vld [vmem:[#allocation12 + $0xf30] sm:$0xff]
      %v1464 = vld [vmem:[#allocation12 + $0xf38] sm:$0xff]
      %v1465 = vld [vmem:[#allocation12 + $0xf40] sm:$0xff]
      %v1466 = vld [vmem:[#allocation12 + $0xf48] sm:$0xff]
      %v1467 = vld [vmem:[#allocation12 + $0xf50] sm:$0xff]
      %v1468 = vld [vmem:[#allocation12 + $0xf58] sm:$0xff]
      %v1469 = vld [vmem:[#allocation12 + $0xf60] sm:$0xff]
      %v1470 = vld [vmem:[#allocation12 + $0xf68] sm:$0xff]
      %v1471 = vld [vmem:[#allocation12 + $0xf70] sm:$0xff]
      %v1472 = vld [vmem:[#allocation12 + $0xf78] sm:$0xff]
      %v1473 = vld [vmem:[#allocation12 + $0xf80] sm:$0xff]
      %v1474 = vld [vmem:[#allocation12 + $0xf88] sm:$0xff]
      %v1475 = vld [vmem:[#allocation12 + $0xf90] sm:$0xff]
      %v1476 = vld [vmem:[#allocation12 + $0xf98] sm:$0xff]
      %v1477 = vld [vmem:[#allocation12 + $0xfa0] sm:$0xff]
      %v1478 = vld [vmem:[#allocation12 + $0xfa8] sm:$0xff]
      %v1479 = vld [vmem:[#allocation12 + $0xfb0] sm:$0xff]
      %v1480 = vld [vmem:[#allocation12 + $0xfb8] sm:$0xff]
      %v1481 = vld [vmem:[#allocation12 + $0xfc0] sm:$0xff]
      %v1482 = vld [vmem:[#allocation12 + $0xfc8] sm:$0xff]
      %v1483 = vld [vmem:[#allocation12 + $0xfd0] sm:$0xff]
      %v1484 = vld [vmem:[#allocation12 + $0xfd8] sm:$0xff]
      %v1485 = vld [vmem:[#allocation12 + $0xfe0] sm:$0xff]
      %v1486 = vld [vmem:[#allocation12 + $0xfe8] sm:$0xff]
      %v1487 = vld [vmem:[#allocation12 + $0xff0] sm:$0xff]
      %v1488 = vld [vmem:[#allocation12 + $0xff8] sm:$0xff]
      %v1489 = vld [vmem:[#allocation12 + $0x1000] sm:$0xff]
      %v1490 = vld [vmem:[#allocation12 + $0x1008] sm:$0xff]
      %v1491 = vld [vmem:[#allocation12 + $0x1010] sm:$0xff]
      %v1492 = vld [vmem:[#allocation12 + $0x1018] sm:$0xff]
      %v1493 = vld [vmem:[#allocation12 + $0x1020] sm:$0xff]
      %v1494 = vld [vmem:[#allocation12 + $0x1028] sm:$0xff]
      %v1495 = vld [vmem:[#allocation12 + $0x1030] sm:$0xff]
      %v1496 = vld [vmem:[#allocation12 + $0x1038] sm:$0xff]
      %v1497 = vld [vmem:[#allocation12 + $0x1040] sm:$0xff]
      %v1498 = vld [vmem:[#allocation12 + $0x1048] sm:$0xff]
      %v1499 = vld [vmem:[#allocation12 + $0x1050] sm:$0xff]
      %v1500 = vld [vmem:[#allocation12 + $0x1058] sm:$0xff]
      %v1501 = vld [vmem:[#allocation12 + $0x1060] sm:$0xff]
      %v1502 = vld [vmem:[#allocation12 + $0x1068] sm:$0xff]
      %v1503 = vld [vmem:[#allocation12 + $0x1070] sm:$0xff]
      %v1504 = vld [vmem:[#allocation12 + $0x1078] sm:$0xff]
      %v1505 = vld [vmem:[#allocation12 + $0x1080] sm:$0xff]
      %v1506 = vld [vmem:[#allocation12 + $0x1088] sm:$0xff]
      %v1507 = vld [vmem:[#allocation12 + $0x1090] sm:$0xff]
      %v1508 = vld [vmem:[#allocation12 + $0x1098] sm:$0xff]
      %v1509 = vld [vmem:[#allocation12 + $0x10a0] sm:$0xff]
      %v1510 = vld [vmem:[#allocation12 + $0x10a8] sm:$0xff]
      %v1511 = vld [vmem:[#allocation12 + $0x10b0] sm:$0xff]
      %v1512 = vld [vmem:[#allocation12 + $0x10b8] sm:$0xff]
      %v1513 = vld [vmem:[#allocation12 + $0x10c0] sm:$0xff]
      %v1514 = vld [vmem:[#allocation12 + $0x10c8] sm:$0xff]
      %v1515 = vld [vmem:[#allocation12 + $0x10d0] sm:$0xff]
      %v1516 = vld [vmem:[#allocation12 + $0x10d8] sm:$0xff]
      %v1517 = vld [vmem:[#allocation12 + $0x10e0] sm:$0xff]
      %v1518 = vld [vmem:[#allocation12 + $0x10e8] sm:$0xff]
      %v1519 = vld [vmem:[#allocation12 + $0x10f0] sm:$0xff]
      %v1520 = vld [vmem:[#allocation12 + $0x10f8] sm:$0xff]
      %v1521 = vld [vmem:[#allocation12 + $0x1100] sm:$0xff]
      %v1522 = vld [vmem:[#allocation12 + $0x1108] sm:$0xff]
      %v1523 = vld [vmem:[#allocation12 + $0x1110] sm:$0xff]
      %v1524 = vld [vmem:[#allocation12 + $0x1118] sm:$0xff]
      %v1525 = vld [vmem:[#allocation12 + $0x1120] sm:$0xff]
      %v1526 = vld [vmem:[#allocation12 + $0x1128] sm:$0xff]
      %v1527 = vld [vmem:[#allocation12 + $0x1130] sm:$0xff]
      %v1528 = vld [vmem:[#allocation12 + $0x1138] sm:$0xff]
      %v1529 = vld [vmem:[#allocation12 + $0x1140] sm:$0xff]
      %v1530 = vld [vmem:[#allocation12 + $0x1148] sm:$0xff]
      %v1531 = vld [vmem:[#allocation12 + $0x1150] sm:$0xff]
      %v1532 = vld [vmem:[#allocation12 + $0x1158] sm:$0xff]
      %v1533 = vld [vmem:[#allocation12 + $0x1160] sm:$0xff]
      %v1534 = vld [vmem:[#allocation12 + $0x1168] sm:$0xff]
      %v1535 = vld [vmem:[#allocation12 + $0x1170] sm:$0xff]
      %v1536 = vld [vmem:[#allocation12 + $0x1178] sm:$0xff]
      %v1537 = vld [vmem:[#allocation12 + $0x1180] sm:$0xff]
      %v1538 = vld [vmem:[#allocation12 + $0x1188] sm:$0xff]
      %v1539 = vld [vmem:[#allocation12 + $0x1190] sm:$0xff]
      %v1540 = vld [vmem:[#allocation12 + $0x1198] sm:$0xff]
      %v1541 = vld [vmem:[#allocation12 + $0x11a0] sm:$0xff]
      %v1542 = vld [vmem:[#allocation12 + $0x11a8] sm:$0xff]
      %v1543 = vld [vmem:[#allocation12 + $0x11b0] sm:$0xff]
      %v1544 = vld [vmem:[#allocation12 + $0x11b8] sm:$0xff]
      %v1545 = vld [vmem:[#allocation12 + $0x11c0] sm:$0xff]
      %v1546 = vld [vmem:[#allocation12 + $0x11c8] sm:$0xff]
      %v1547 = vld [vmem:[#allocation12 + $0x11d0] sm:$0xff]
      %v1548 = vld [vmem:[#allocation12 + $0x11d8] sm:$0xff]
      %v1549 = vld [vmem:[#allocation12 + $0x11e0] sm:$0xff]
      %v1550 = vld [vmem:[#allocation12 + $0x11e8] sm:$0xff]
      %v1551 = vld [vmem:[#allocation12 + $0x11f0] sm:$0xff]
      %v1552 = vld [vmem:[#allocation12 + $0x11f8] sm:$0xff]
      %v1553 = vld [vmem:[#allocation12 + $0x1200] sm:$0xff]
      %v1554 = vld [vmem:[#allocation12 + $0x1208] sm:$0xff]
      %v1555 = vld [vmem:[#allocation12 + $0x1210] sm:$0xff]
      %v1556 = vld [vmem:[#allocation12 + $0x1218] sm:$0xff]
      %v1557 = vld [vmem:[#allocation12 + $0x1220] sm:$0xff]
      %v1558 = vld [vmem:[#allocation12 + $0x1228] sm:$0xff]
      %v1559 = vld [vmem:[#allocation12 + $0x1230] sm:$0xff]
      %v1560 = vld [vmem:[#allocation12 + $0x1238] sm:$0xff]
      %v1561 = vld [vmem:[#allocation12 + $0x1240] sm:$0xff]
      %v1562 = vld [vmem:[#allocation12 + $0x1248] sm:$0xff]
      %v1563 = vld [vmem:[#allocation12 + $0x1250] sm:$0xff]
      %v1564 = vld [vmem:[#allocation12 + $0x1258] sm:$0xff]
      %v1565 = vld [vmem:[#allocation12 + $0x1260] sm:$0xff]
      %v1566 = vld [vmem:[#allocation12 + $0x1268] sm:$0xff]
      %v1567 = vld [vmem:[#allocation12 + $0x1270] sm:$0xff]
      %v1568 = vld [vmem:[#allocation12 + $0x1278] sm:$0xff]
      %v1569 = vld [vmem:[#allocation12 + $0x1280] sm:$0xff]
      %v1570 = vld [vmem:[#allocation12 + $0x1288] sm:$0xff]
      %v1571 = vld [vmem:[#allocation12 + $0x1290] sm:$0xff]
      %v1572 = vld [vmem:[#allocation12 + $0x1298] sm:$0xff]
      %v1573 = vld [vmem:[#allocation12 + $0x12a0] sm:$0xff]
      %v1574 = vld [vmem:[#allocation12 + $0x12a8] sm:$0xff]
      %v1575 = vld [vmem:[#allocation12 + $0x12b0] sm:$0xff]
      %v1576 = vld [vmem:[#allocation12 + $0x12b8] sm:$0xff]
      %v1577 = vld [vmem:[#allocation12 + $0x12c0] sm:$0xff]
      %v1578 = vld [vmem:[#allocation12 + $0x12c8] sm:$0xff]
      %v1579 = vld [vmem:[#allocation12 + $0x12d0] sm:$0xff]
      %v1580 = vld [vmem:[#allocation12 + $0x12d8] sm:$0xff]
      %v1581 = vld [vmem:[#allocation12 + $0x12e0] sm:$0xff]
      %v1582 = vld [vmem:[#allocation12 + $0x12e8] sm:$0xff]
      %v1583 = vld [vmem:[#allocation12 + $0x12f0] sm:$0xff]
      %v1584 = vld [vmem:[#allocation12 + $0x12f8] sm:$0xff]
      %v1585 = vld [vmem:[#allocation12 + $0x1300] sm:$0xff]
      %v1586 = vld [vmem:[#allocation12 + $0x1308] sm:$0xff]
      %v1587 = vld [vmem:[#allocation12 + $0x1310] sm:$0xff]
      %v1588 = vld [vmem:[#allocation12 + $0x1318] sm:$0xff]
      %v1589 = vld [vmem:[#allocation12 + $0x1320] sm:$0xff]
      %v1590 = vld [vmem:[#allocation12 + $0x1328] sm:$0xff]
      %v1591 = vld [vmem:[#allocation12 + $0x1330] sm:$0xff]
      %v1592 = vld [vmem:[#allocation12 + $0x1338] sm:$0xff]
      %v1593 = vld [vmem:[#allocation12 + $0x1340] sm:$0xff]
      %v1594 = vld [vmem:[#allocation12 + $0x1348] sm:$0xff]
      %v1595 = vld [vmem:[#allocation12 + $0x1350] sm:$0xff]
      %v1596 = vld [vmem:[#allocation12 + $0x1358] sm:$0xff]
      %v1597 = vld [vmem:[#allocation12 + $0x1360] sm:$0xff]
      %v1598 = vld [vmem:[#allocation12 + $0x1368] sm:$0xff]
      %v1599 = vld [vmem:[#allocation12 + $0x1370] sm:$0xff]
      %v1600 = vld [vmem:[#allocation12 + $0x1378] sm:$0xff]
      %v1601 = vld [vmem:[#allocation12 + $0x1380] sm:$0xff]
      %v1602 = vld [vmem:[#allocation12 + $0x1388] sm:$0xff]
      %v1603 = vld [vmem:[#allocation12 + $0x1390] sm:$0xff]
      %v1604 = vld [vmem:[#allocation12 + $0x1398] sm:$0xff]
      %v1605 = vld [vmem:[#allocation12 + $0x13a0] sm:$0xff]
      %v1606 = vld [vmem:[#allocation12 + $0x13a8] sm:$0xff]
      %v1607 = vld [vmem:[#allocation12 + $0x13b0] sm:$0xff]
      %v1608 = vld [vmem:[#allocation12 + $0x13b8] sm:$0xff]
      %v1609 = vld [vmem:[#allocation12 + $0x13c0] sm:$0xff]
      %v1610 = vld [vmem:[#allocation12 + $0x13c8] sm:$0xff]
      %v1611 = vld [vmem:[#allocation12 + $0x13d0] sm:$0xff]
      %v1612 = vld [vmem:[#allocation12 + $0x13d8] sm:$0xff]
      %v1613 = vld [vmem:[#allocation12 + $0x13e0] sm:$0xff]
      %v1614 = vld [vmem:[#allocation12 + $0x13e8] sm:$0xff]
      %v1615 = vld [vmem:[#allocation12 + $0x13f0] sm:$0xff]
      %v1616 = vld [vmem:[#allocation12 + $0x13f8] sm:$0xff]
      %v1617 = vld [vmem:[#allocation12 + $0x1400] sm:$0xff]
      %v1618 = vld [vmem:[#allocation12 + $0x1408] sm:$0xff]
      %v1619 = vld [vmem:[#allocation12 + $0x1410] sm:$0xff]
      %v1620 = vld [vmem:[#allocation12 + $0x1418] sm:$0xff]
      %v1621 = vld [vmem:[#allocation12 + $0x1420] sm:$0xff]
      %v1622 = vld [vmem:[#allocation12 + $0x1428] sm:$0xff]
      %v1623 = vld [vmem:[#allocation12 + $0x1430] sm:$0xff]
      %v1624 = vld [vmem:[#allocation12 + $0x1438] sm:$0xff]
      %v1625 = vld [vmem:[#allocation12 + $0x1440] sm:$0xff]
      %v1626 = vld [vmem:[#allocation12 + $0x1448] sm:$0xff]
      %v1627 = vld [vmem:[#allocation12 + $0x1450] sm:$0xff]
      %v1628 = vld [vmem:[#allocation12 + $0x1458] sm:$0xff]
      %v1629 = vld [vmem:[#allocation12 + $0x1460] sm:$0xff]
      %v1630 = vld [vmem:[#allocation12 + $0x1468] sm:$0xff]
      %v1631 = vld [vmem:[#allocation12 + $0x1470] sm:$0xff]
      %v1632 = vld [vmem:[#allocation12 + $0x1478] sm:$0xff]
      %v1633 = vld [vmem:[#allocation12 + $0x1480] sm:$0xff]
      %v1634 = vld [vmem:[#allocation12 + $0x1488] sm:$0xff]
      %v1635 = vld [vmem:[#allocation12 + $0x1490] sm:$0xff]
      %v1636 = vld [vmem:[#allocation12 + $0x1498] sm:$0xff]
      %v1637 = vld [vmem:[#allocation12 + $0x14a0] sm:$0xff]
      %v1638 = vld [vmem:[#allocation12 + $0x14a8] sm:$0xff]
      %v1639 = vld [vmem:[#allocation12 + $0x14b0] sm:$0xff]
      %v1640 = vld [vmem:[#allocation12 + $0x14b8] sm:$0xff]
      %v1641 = vld [vmem:[#allocation12 + $0x14c0] sm:$0xff]
      %v1642 = vld [vmem:[#allocation12 + $0x14c8] sm:$0xff]
      %v1643 = vld [vmem:[#allocation12 + $0x14d0] sm:$0xff]
      %v1644 = vld [vmem:[#allocation12 + $0x14d8] sm:$0xff]
      %v1645 = vld [vmem:[#allocation12 + $0x14e0] sm:$0xff]
      %v1646 = vld [vmem:[#allocation12 + $0x14e8] sm:$0xff]
      %v1647 = vld [vmem:[#allocation12 + $0x14f0] sm:$0xff]
      %v1648 = vld [vmem:[#allocation12 + $0x14f8] sm:$0xff]
      %v1649 = vld [vmem:[#allocation12 + $0x1500] sm:$0xff]
      %v1650 = vld [vmem:[#allocation12 + $0x1508] sm:$0xff]
      %v1651 = vld [vmem:[#allocation12 + $0x1510] sm:$0xff]
      %v1652 = vld [vmem:[#allocation12 + $0x1518] sm:$0xff]
      %v1653 = vld [vmem:[#allocation12 + $0x1520] sm:$0xff]
      %v1654 = vld [vmem:[#allocation12 + $0x1528] sm:$0xff]
      %v1655 = vld [vmem:[#allocation12 + $0x1530] sm:$0xff]
      %v1656 = vld [vmem:[#allocation12 + $0x1538] sm:$0xff]
      %v1657 = vld [vmem:[#allocation12 + $0x1540] sm:$0xff]
      %v1658 = vld [vmem:[#allocation12 + $0x1548] sm:$0xff]
      %v1659 = vld [vmem:[#allocation12 + $0x1550] sm:$0xff]
      %v1660 = vld [vmem:[#allocation12 + $0x1558] sm:$0xff]
      %v1661 = vld [vmem:[#allocation12 + $0x1560] sm:$0xff]
      %v1662 = vld [vmem:[#allocation12 + $0x1568] sm:$0xff]
      %v1663 = vld [vmem:[#allocation12 + $0x1570] sm:$0xff]
      %v1664 = vld [vmem:[#allocation12 + $0x1578] sm:$0xff]
      %v1665 = vld [vmem:[#allocation12 + $0x1580] sm:$0xff]
      %v1666 = vld [vmem:[#allocation12 + $0x1588] sm:$0xff]
      %v1667 = vld [vmem:[#allocation12 + $0x1590] sm:$0xff]
      %v1668 = vld [vmem:[#allocation12 + $0x1598] sm:$0xff]
      %v1669 = vld [vmem:[#allocation12 + $0x15a0] sm:$0xff]
      %v1670 = vld [vmem:[#allocation12 + $0x15a8] sm:$0xff]
      %v1671 = vld [vmem:[#allocation12 + $0x15b0] sm:$0xff]
      %v1672 = vld [vmem:[#allocation12 + $0x15b8] sm:$0xff]
      %v1673 = vld [vmem:[#allocation12 + $0x15c0] sm:$0xff]
      %v1674 = vld [vmem:[#allocation12 + $0x15c8] sm:$0xff]
      %v1675 = vld [vmem:[#allocation12 + $0x15d0] sm:$0xff]
      %v1676 = vld [vmem:[#allocation12 + $0x15d8] sm:$0xff]
      %v1677 = vld [vmem:[#allocation12 + $0x15e0] sm:$0xff]
      %v1678 = vld [vmem:[#allocation12 + $0x15e8] sm:$0xff]
      %v1679 = vld [vmem:[#allocation12 + $0x15f0] sm:$0xff]
      %v1680 = vld [vmem:[#allocation12 + $0x15f8] sm:$0xff]
      %v1681 = vld [vmem:[#allocation12 + $0x1600] sm:$0xff]
      %v1682 = vld [vmem:[#allocation12 + $0x1608] sm:$0xff]
      %v1683 = vld [vmem:[#allocation12 + $0x1610] sm:$0xff]
      %v1684 = vld [vmem:[#allocation12 + $0x1618] sm:$0xff]
      %v1685 = vld [vmem:[#allocation12 + $0x1620] sm:$0xff]
      %v1686 = vld [vmem:[#allocation12 + $0x1628] sm:$0xff]
      %v1687 = vld [vmem:[#allocation12 + $0x1630] sm:$0xff]
      %v1688 = vld [vmem:[#allocation12 + $0x1638] sm:$0xff]
      %v1689 = vld [vmem:[#allocation12 + $0x1640] sm:$0xff]
      %v1690 = vld [vmem:[#allocation12 + $0x1648] sm:$0xff]
      %v1691 = vld [vmem:[#allocation12 + $0x1650] sm:$0xff]
      %v1692 = vld [vmem:[#allocation12 + $0x1658] sm:$0xff]
      %v1693 = vld [vmem:[#allocation12 + $0x1660] sm:$0xff]
      %v1694 = vld [vmem:[#allocation12 + $0x1668] sm:$0xff]
      %v1695 = vld [vmem:[#allocation12 + $0x1670] sm:$0xff]
      %v1696 = vld [vmem:[#allocation12 + $0x1678] sm:$0xff]
      %v1697 = vld [vmem:[#allocation12 + $0x1680] sm:$0xff]
      %v1698 = vld [vmem:[#allocation12 + $0x1688] sm:$0xff]
      %v1699 = vld [vmem:[#allocation12 + $0x1690] sm:$0xff]
      %v1700 = vld [vmem:[#allocation12 + $0x1698] sm:$0xff]
      %v1701 = vld [vmem:[#allocation12 + $0x16a0] sm:$0xff]
      %v1702 = vld [vmem:[#allocation12 + $0x16a8] sm:$0xff]
      %v1703 = vld [vmem:[#allocation12 + $0x16b0] sm:$0xff]
      %v1704 = vld [vmem:[#allocation12 + $0x16b8] sm:$0xff]
      %v1705 = vld [vmem:[#allocation12 + $0x16c0] sm:$0xff]
      %v1706 = vld [vmem:[#allocation12 + $0x16c8] sm:$0xff]
      %v1707 = vld [vmem:[#allocation12 + $0x16d0] sm:$0xff]
      %v1708 = vld [vmem:[#allocation12 + $0x16d8] sm:$0xff]
      %v1709 = vld [vmem:[#allocation12 + $0x16e0] sm:$0xff]
      %v1710 = vld [vmem:[#allocation12 + $0x16e8] sm:$0xff]
      %v1711 = vld [vmem:[#allocation12 + $0x16f0] sm:$0xff]
      %v1712 = vld [vmem:[#allocation12 + $0x16f8] sm:$0xff]
      %v1713 = vld [vmem:[#allocation12 + $0x1700] sm:$0xff]
      %v1714 = vld [vmem:[#allocation12 + $0x1708] sm:$0xff]
      %v1715 = vld [vmem:[#allocation12 + $0x1710] sm:$0xff]
      %v1716 = vld [vmem:[#allocation12 + $0x1718] sm:$0xff]
      %v1717 = vld [vmem:[#allocation12 + $0x1720] sm:$0xff]
      %v1718 = vld [vmem:[#allocation12 + $0x1728] sm:$0xff]
      %v1719 = vld [vmem:[#allocation12 + $0x1730] sm:$0xff]
      %v1720 = vld [vmem:[#allocation12 + $0x1738] sm:$0xff]
      %v1721 = vld [vmem:[#allocation12 + $0x1740] sm:$0xff]
      %v1722 = vld [vmem:[#allocation12 + $0x1748] sm:$0xff]
      %v1723 = vld [vmem:[#allocation12 + $0x1750] sm:$0xff]
      %v1724 = vld [vmem:[#allocation12 + $0x1758] sm:$0xff]
      %v1725 = vld [vmem:[#allocation12 + $0x1760] sm:$0xff]
      %v1726 = vld [vmem:[#allocation12 + $0x1768] sm:$0xff]
      %v1727 = vld [vmem:[#allocation12 + $0x1770] sm:$0xff]
      %v1728 = vld [vmem:[#allocation12 + $0x1778] sm:$0xff]
      %v1729 = vld [vmem:[#allocation12 + $0x1780] sm:$0xff]
      %v1730 = vld [vmem:[#allocation12 + $0x1788] sm:$0xff]
      %v1731 = vld [vmem:[#allocation12 + $0x1790] sm:$0xff]
      %v1732 = vld [vmem:[#allocation12 + $0x1798] sm:$0xff]
      %v1733 = vld [vmem:[#allocation12 + $0x17a0] sm:$0xff]
      %v1734 = vld [vmem:[#allocation12 + $0x17a8] sm:$0xff]
      %v1735 = vld [vmem:[#allocation12 + $0x17b0] sm:$0xff]
      %v1736 = vld [vmem:[#allocation12 + $0x17b8] sm:$0xff]
      %v1737 = vld [vmem:[#allocation12 + $0x17c0] sm:$0xff]
      %v1738 = vld [vmem:[#allocation12 + $0x17c8] sm:$0xff]
      %v1739 = vld [vmem:[#allocation12 + $0x17d0] sm:$0xff]
      %v1740 = vld [vmem:[#allocation12 + $0x17d8] sm:$0xff]
      %v1741 = vld [vmem:[#allocation12 + $0x17e0] sm:$0xff]
      %v1742 = vld [vmem:[#allocation12 + $0x17e8] sm:$0xff]
      %v1743 = vld [vmem:[#allocation12 + $0x17f0] sm:$0xff]
      %v1744 = vld [vmem:[#allocation12 + $0x17f8] sm:$0xff]
      %v1745 = vld [vmem:[#allocation12 + $0x1800] sm:$0xff]
      %v1746 = vld [vmem:[#allocation12 + $0x1808] sm:$0xff]
      %v1747 = vld [vmem:[#allocation12 + $0x1810] sm:$0xff]
      %v1748 = vld [vmem:[#allocation12 + $0x1818] sm:$0xff]
      %v1749 = vld [vmem:[#allocation12 + $0x1820] sm:$0xff]
      %v1750 = vld [vmem:[#allocation12 + $0x1828] sm:$0xff]
      %v1751 = vld [vmem:[#allocation12 + $0x1830] sm:$0xff]
      %v1752 = vld [vmem:[#allocation12 + $0x1838] sm:$0xff]
      %v1753 = vld [vmem:[#allocation12 + $0x1840] sm:$0xff]
      %v1754 = vld [vmem:[#allocation12 + $0x1848] sm:$0xff]
      %v1755 = vld [vmem:[#allocation12 + $0x1850] sm:$0xff]
      %v1756 = vld [vmem:[#allocation12 + $0x1858] sm:$0xff]
      %v1757 = vld [vmem:[#allocation12 + $0x1860] sm:$0xff]
      %v1758 = vld [vmem:[#allocation12 + $0x1868] sm:$0xff]
      %v1759 = vld [vmem:[#allocation12 + $0x1870] sm:$0xff]
      %v1760 = vld [vmem:[#allocation12 + $0x1878] sm:$0xff]
      %v1761 = vld [vmem:[#allocation12 + $0x1880] sm:$0xff]
      %v1762 = vld [vmem:[#allocation12 + $0x1888] sm:$0xff]
      %v1763 = vld [vmem:[#allocation12 + $0x1890] sm:$0xff]
      %v1764 = vld [vmem:[#allocation12 + $0x1898] sm:$0xff]
      %v1765 = vld [vmem:[#allocation12 + $0x18a0] sm:$0xff]
      %v1766 = vld [vmem:[#allocation12 + $0x18a8] sm:$0xff]
      %v1767 = vld [vmem:[#allocation12 + $0x18b0] sm:$0xff]
      %v1768 = vld [vmem:[#allocation12 + $0x18b8] sm:$0xff]
      %v1769 = vld [vmem:[#allocation12 + $0x18c0] sm:$0xff]
      %v1770 = vld [vmem:[#allocation12 + $0x18c8] sm:$0xff]
      %v1771 = vld [vmem:[#allocation12 + $0x18d0] sm:$0xff]
      %v1772 = vld [vmem:[#allocation12 + $0x18d8] sm:$0xff]
      %v1773 = vld [vmem:[#allocation12 + $0x18e0] sm:$0xff]
      %v1774 = vld [vmem:[#allocation12 + $0x18e8] sm:$0xff]
      %v1775 = vld [vmem:[#allocation12 + $0x18f0] sm:$0xff]
      %v1776 = vld [vmem:[#allocation12 + $0x18f8] sm:$0xff]
      %v1777 = vld [vmem:[#allocation12 + $0x1900] sm:$0xff]
      %v1778 = vld [vmem:[#allocation12 + $0x1908] sm:$0xff]
      %v1779 = vld [vmem:[#allocation12 + $0x1910] sm:$0xff]
      %v1780 = vld [vmem:[#allocation12 + $0x1918] sm:$0xff]
      %v1781 = vld [vmem:[#allocation12 + $0x1920] sm:$0xff]
      %v1782 = vld [vmem:[#allocation12 + $0x1928] sm:$0xff]
      %v1783 = vld [vmem:[#allocation12 + $0x1930] sm:$0xff]
      %v1784 = vld [vmem:[#allocation12 + $0x1938] sm:$0xff]
      %v1785 = vld [vmem:[#allocation12 + $0x1940] sm:$0xff]
      %v1786 = vld [vmem:[#allocation12 + $0x1948] sm:$0xff]
      %v1787 = vld [vmem:[#allocation12 + $0x1950] sm:$0xff]
      %v1788 = vld [vmem:[#allocation12 + $0x1958] sm:$0xff]
      %v1789 = vld [vmem:[#allocation12 + $0x1960] sm:$0xff]
      %v1790 = vld [vmem:[#allocation12 + $0x1968] sm:$0xff]
      %v1791 = vld [vmem:[#allocation12 + $0x1970] sm:$0xff]
      %v1792 = vld [vmem:[#allocation12 + $0x1978] sm:$0xff]
      %v1793 = vld [vmem:[#allocation12 + $0x1980] sm:$0xff]
      %v1794 = vld [vmem:[#allocation12 + $0x1988] sm:$0xff]
      %v1795 = vld [vmem:[#allocation12 + $0x1990] sm:$0xff]
      %v1796 = vld [vmem:[#allocation12 + $0x1998] sm:$0xff]
      %v1797 = vld [vmem:[#allocation12 + $0x19a0] sm:$0xff]
      %v1798 = vld [vmem:[#allocation12 + $0x19a8] sm:$0xff]
      %v1799 = vld [vmem:[#allocation12 + $0x19b0] sm:$0xff]
      %v1800 = vld [vmem:[#allocation12 + $0x19b8] sm:$0xff]
      %v1801 = vld [vmem:[#allocation12 + $0x19c0] sm:$0xff]
      %v1802 = vld [vmem:[#allocation12 + $0x19c8] sm:$0xff]
      %v1803 = vld [vmem:[#allocation12 + $0x19d0] sm:$0xff]
      %v1804 = vld [vmem:[#allocation12 + $0x19d8] sm:$0xff]
      %v1805 = vld [vmem:[#allocation12 + $0x19e0] sm:$0xff]
      %v1806 = vld [vmem:[#allocation12 + $0x19e8] sm:$0xff]
      %v1807 = vld [vmem:[#allocation12 + $0x19f0] sm:$0xff]
      %v1808 = vld [vmem:[#allocation12 + $0x19f8] sm:$0xff]
      %v1809 = vld [vmem:[#allocation12 + $0x1a00] sm:$0xff]
      %v1810 = vld [vmem:[#allocation12 + $0x1a08] sm:$0xff]
      %v1811 = vld [vmem:[#allocation12 + $0x1a10] sm:$0xff]
      %v1812 = vld [vmem:[#allocation12 + $0x1a18] sm:$0xff]
      %v1813 = vld [vmem:[#allocation12 + $0x1a20] sm:$0xff]
      %v1814 = vld [vmem:[#allocation12 + $0x1a28] sm:$0xff]
      %v1815 = vld [vmem:[#allocation12 + $0x1a30] sm:$0xff]
      %v1816 = vld [vmem:[#allocation12 + $0x1a38] sm:$0xff]
      %v1817 = vld [vmem:[#allocation12 + $0x1a40] sm:$0xff]
      %v1818 = vld [vmem:[#allocation12 + $0x1a48] sm:$0xff]
      %v1819 = vld [vmem:[#allocation12 + $0x1a50] sm:$0xff]
      %v1820 = vld [vmem:[#allocation12 + $0x1a58] sm:$0xff]
      %v1821 = vld [vmem:[#allocation12 + $0x1a60] sm:$0xff]
      %v1822 = vld [vmem:[#allocation12 + $0x1a68] sm:$0xff]
      %v1823 = vld [vmem:[#allocation12 + $0x1a70] sm:$0xff]
      %v1824 = vld [vmem:[#allocation12 + $0x1a78] sm:$0xff]
      %v1825 = vld [vmem:[#allocation12 + $0x1a80] sm:$0xff]
      %v1826 = vld [vmem:[#allocation12 + $0x1a88] sm:$0xff]
      %v1827 = vld [vmem:[#allocation12 + $0x1a90] sm:$0xff]
      %v1828 = vld [vmem:[#allocation12 + $0x1a98] sm:$0xff]
      %v1829 = vld [vmem:[#allocation12 + $0x1aa0] sm:$0xff]
      %v1830 = vld [vmem:[#allocation12 + $0x1aa8] sm:$0xff]
      %v1831 = vld [vmem:[#allocation12 + $0x1ab0] sm:$0xff]
      %v1832 = vld [vmem:[#allocation12 + $0x1ab8] sm:$0xff]
      %v1833 = vld [vmem:[#allocation12 + $0x1ac0] sm:$0xff]
      %v1834 = vld [vmem:[#allocation12 + $0x1ac8] sm:$0xff]
      %v1835 = vld [vmem:[#allocation12 + $0x1ad0] sm:$0xff]
      %v1836 = vld [vmem:[#allocation12 + $0x1ad8] sm:$0xff]
      %v1837 = vld [vmem:[#allocation12 + $0x1ae0] sm:$0xff]
      %v1838 = vld [vmem:[#allocation12 + $0x1ae8] sm:$0xff]
      %v1839 = vld [vmem:[#allocation12 + $0x1af0] sm:$0xff]
      %v1840 = vld [vmem:[#allocation12 + $0x1af8] sm:$0xff]
      %v1841 = vld [vmem:[#allocation12 + $0x1b00] sm:$0xff]
      %v1842 = vld [vmem:[#allocation12 + $0x1b08] sm:$0xff]
      %v1843 = vld [vmem:[#allocation12 + $0x1b10] sm:$0xff]
      %v1844 = vld [vmem:[#allocation12 + $0x1b18] sm:$0xff]
      %v1845 = vld [vmem:[#allocation12 + $0x1b20] sm:$0xff]
      %v1846 = vld [vmem:[#allocation12 + $0x1b28] sm:$0xff]
      %v1847 = vld [vmem:[#allocation12 + $0x1b30] sm:$0xff]
      %v1848 = vld [vmem:[#allocation12 + $0x1b38] sm:$0xff]
      %v1849 = vld [vmem:[#allocation12 + $0x1b40] sm:$0xff]
      %v1850 = vld [vmem:[#allocation12 + $0x1b48] sm:$0xff]
      %v1851 = vld [vmem:[#allocation12 + $0x1b50] sm:$0xff]
      %v1852 = vld [vmem:[#allocation12 + $0x1b58] sm:$0xff]
      %v1853 = vld [vmem:[#allocation12 + $0x1b60] sm:$0xff]
      %v1854 = vld [vmem:[#allocation12 + $0x1b68] sm:$0xff]
      %v1855 = vld [vmem:[#allocation12 + $0x1b70] sm:$0xff]
      %v1856 = vld [vmem:[#allocation12 + $0x1b78] sm:$0xff]
      %v1857 = vld [vmem:[#allocation12 + $0x1b80] sm:$0xff]
      %v1858 = vld [vmem:[#allocation12 + $0x1b88] sm:$0xff]
      %v1859 = vld [vmem:[#allocation12 + $0x1b90] sm:$0xff]
      %v1860 = vld [vmem:[#allocation12 + $0x1b98] sm:$0xff]
      %v1861 = vld [vmem:[#allocation12 + $0x1ba0] sm:$0xff]
      %v1862 = vld [vmem:[#allocation12 + $0x1ba8] sm:$0xff]
      %v1863 = vld [vmem:[#allocation12 + $0x1bb0] sm:$0xff]
      %v1864 = vld [vmem:[#allocation12 + $0x1bb8] sm:$0xff]
      %v1865 = vld [vmem:[#allocation12 + $0x1bc0] sm:$0xff]
      %v1866 = vld [vmem:[#allocation12 + $0x1bc8] sm:$0xff]
      %v1867 = vld [vmem:[#allocation12 + $0x1bd0] sm:$0xff]
      %v1868 = vld [vmem:[#allocation12 + $0x1bd8] sm:$0xff]
      %v1869 = vld [vmem:[#allocation12 + $0x1be0] sm:$0xff]
      %v1870 = vld [vmem:[#allocation12 + $0x1be8] sm:$0xff]
      %v1871 = vld [vmem:[#allocation12 + $0x1bf0] sm:$0xff]
      %v1872 = vld [vmem:[#allocation12 + $0x1bf8] sm:$0xff]
      %v1873 = vld [vmem:[#allocation12 + $0x1c00] sm:$0xff]
      %v1874 = vld [vmem:[#allocation12 + $0x1c08] sm:$0xff]
      %v1875 = vld [vmem:[#allocation12 + $0x1c10] sm:$0xff]
      %v1876 = vld [vmem:[#allocation12 + $0x1c18] sm:$0xff]
      %v1877 = vld [vmem:[#allocation12 + $0x1c20] sm:$0xff]
      %v1878 = vld [vmem:[#allocation12 + $0x1c28] sm:$0xff]
      %v1879 = vld [vmem:[#allocation12 + $0x1c30] sm:$0xff]
      %v1880 = vld [vmem:[#allocation12 + $0x1c38] sm:$0xff]
      %v1881 = vld [vmem:[#allocation12 + $0x1c40] sm:$0xff]
      %v1882 = vld [vmem:[#allocation12 + $0x1c48] sm:$0xff]
      %v1883 = vld [vmem:[#allocation12 + $0x1c50] sm:$0xff]
      %v1884 = vld [vmem:[#allocation12 + $0x1c58] sm:$0xff]
      %v1885 = vld [vmem:[#allocation12 + $0x1c60] sm:$0xff]
      %v1886 = vld [vmem:[#allocation12 + $0x1c68] sm:$0xff]
      %v1887 = vld [vmem:[#allocation12 + $0x1c70] sm:$0xff]
      %v1888 = vld [vmem:[#allocation12 + $0x1c78] sm:$0xff]
      %v1889 = vld [vmem:[#allocation12 + $0x1c80] sm:$0xff]
      %v1890 = vld [vmem:[#allocation12 + $0x1c88] sm:$0xff]
      %v1891 = vld [vmem:[#allocation12 + $0x1c90] sm:$0xff]
      %v1892 = vld [vmem:[#allocation12 + $0x1c98] sm:$0xff]
      %v1893 = vld [vmem:[#allocation12 + $0x1ca0] sm:$0xff]
      %v1894 = vld [vmem:[#allocation12 + $0x1ca8] sm:$0xff]
      %v1895 = vld [vmem:[#allocation12 + $0x1cb0] sm:$0xff]
      %v1896 = vld [vmem:[#allocation12 + $0x1cb8] sm:$0xff]
      %v1897 = vld [vmem:[#allocation12 + $0x1cc0] sm:$0xff]
      %v1898 = vld [vmem:[#allocation12 + $0x1cc8] sm:$0xff]
      %v1899 = vld [vmem:[#allocation12 + $0x1cd0] sm:$0xff]
      %v1900 = vld [vmem:[#allocation12 + $0x1cd8] sm:$0xff]
      %v1901 = vld [vmem:[#allocation12 + $0x1ce0] sm:$0xff]
      %v1902 = vld [vmem:[#allocation12 + $0x1ce8] sm:$0xff]
      %v1903 = vld [vmem:[#allocation12 + $0x1cf0] sm:$0xff]
      %v1904 = vld [vmem:[#allocation12 + $0x1cf8] sm:$0xff]
      %v1905 = vld [vmem:[#allocation12 + $0x1d00] sm:$0xff]
      %v1906 = vld [vmem:[#allocation12 + $0x1d08] sm:$0xff]
      %v1907 = vld [vmem:[#allocation12 + $0x1d10] sm:$0xff]
      %v1908 = vld [vmem:[#allocation12 + $0x1d18] sm:$0xff]
      %v1909 = vld [vmem:[#allocation12 + $0x1d20] sm:$0xff]
      %v1910 = vld [vmem:[#allocation12 + $0x1d28] sm:$0xff]
      %v1911 = vld [vmem:[#allocation12 + $0x1d30] sm:$0xff]
      %v1912 = vld [vmem:[#allocation12 + $0x1d38] sm:$0xff]
      %v1913 = vld [vmem:[#allocation12 + $0x1d40] sm:$0xff]
      %v1914 = vld [vmem:[#allocation12 + $0x1d48] sm:$0xff]
      %v1915 = vld [vmem:[#allocation12 + $0x1d50] sm:$0xff]
      %v1916 = vld [vmem:[#allocation12 + $0x1d58] sm:$0xff]
      %v1917 = vld [vmem:[#allocation12 + $0x1d60] sm:$0xff]
      %v1918 = vld [vmem:[#allocation12 + $0x1d68] sm:$0xff]
      %v1919 = vld [vmem:[#allocation12 + $0x1d70] sm:$0xff]
      %v1920 = vld [vmem:[#allocation12 + $0x1d78] sm:$0xff]
      %v1921 = vld [vmem:[#allocation12 + $0x1d80] sm:$0xff]
      %v1922 = vld [vmem:[#allocation12 + $0x1d88] sm:$0xff]
      %v1923 = vld [vmem:[#allocation12 + $0x1d90] sm:$0xff]
      %v1924 = vld [vmem:[#allocation12 + $0x1d98] sm:$0xff]
      %v1925 = vld [vmem:[#allocation12 + $0x1da0] sm:$0xff]
      %v1926 = vld [vmem:[#allocation12 + $0x1da8] sm:$0xff]
      %v1927 = vld [vmem:[#allocation12 + $0x1db0] sm:$0xff]
      %v1928 = vld [vmem:[#allocation12 + $0x1db8] sm:$0xff]
      %v1929 = vld [vmem:[#allocation12 + $0x1dc0] sm:$0xff]
      %v1930 = vld [vmem:[#allocation12 + $0x1dc8] sm:$0xff]
      %v1931 = vld [vmem:[#allocation12 + $0x1dd0] sm:$0xff]
      %v1932 = vld [vmem:[#allocation12 + $0x1dd8] sm:$0xff]
      %v1933 = vld [vmem:[#allocation12 + $0x1de0] sm:$0xff]
      %v1934 = vld [vmem:[#allocation12 + $0x1de8] sm:$0xff]
      %v1935 = vld [vmem:[#allocation12 + $0x1df0] sm:$0xff]
      %v1936 = vld [vmem:[#allocation12 + $0x1df8] sm:$0xff]
      %v1937 = vld [vmem:[#allocation12 + $0x1e00] sm:$0xff]
      %v1938 = vld [vmem:[#allocation12 + $0x1e08] sm:$0xff]
      %v1939 = vld [vmem:[#allocation12 + $0x1e10] sm:$0xff]
      %v1940 = vld [vmem:[#allocation12 + $0x1e18] sm:$0xff]
      %v1941 = vld [vmem:[#allocation12 + $0x1e20] sm:$0xff]
      %v1942 = vld [vmem:[#allocation12 + $0x1e28] sm:$0xff]
      %v1943 = vld [vmem:[#allocation12 + $0x1e30] sm:$0xff]
      %v1944 = vld [vmem:[#allocation12 + $0x1e38] sm:$0xff]
      %v1945 = vld [vmem:[#allocation12 + $0x1e40] sm:$0xff]
      %v1946 = vld [vmem:[#allocation12 + $0x1e48] sm:$0xff]
      %v1947 = vld [vmem:[#allocation12 + $0x1e50] sm:$0xff]
      %v1948 = vld [vmem:[#allocation12 + $0x1e58] sm:$0xff]
      %v1949 = vld [vmem:[#allocation12 + $0x1e60] sm:$0xff]
      %v1950 = vld [vmem:[#allocation12 + $0x1e68] sm:$0xff]
      %v1951 = vld [vmem:[#allocation12 + $0x1e70] sm:$0xff]
      %v1952 = vld [vmem:[#allocation12 + $0x1e78] sm:$0xff]
      %v1953 = vld [vmem:[#allocation12 + $0x1e80] sm:$0xff]
      %v1954 = vld [vmem:[#allocation12 + $0x1e88] sm:$0xff]
      %v1955 = vld [vmem:[#allocation12 + $0x1e90] sm:$0xff]
      %v1956 = vld [vmem:[#allocation12 + $0x1e98] sm:$0xff]
      %v1957 = vld [vmem:[#allocation12 + $0x1ea0] sm:$0xff]
      %v1958 = vld [vmem:[#allocation12 + $0x1ea8] sm:$0xff]
      %v1959 = vld [vmem:[#allocation12 + $0x1eb0] sm:$0xff]
      %v1960 = vld [vmem:[#allocation12 + $0x1eb8] sm:$0xff]
      %v1961 = vld [vmem:[#allocation12 + $0x1ec0] sm:$0xff]
      %v1962 = vld [vmem:[#allocation12 + $0x1ec8] sm:$0xff]
      %v1963 = vld [vmem:[#allocation12 + $0x1ed0] sm:$0xff]
      %v1964 = vld [vmem:[#allocation12 + $0x1ed8] sm:$0xff]
      %v1965 = vld [vmem:[#allocation12 + $0x1ee0] sm:$0xff]
      %v1966 = vld [vmem:[#allocation12 + $0x1ee8] sm:$0xff]
      %v1967 = vld [vmem:[#allocation12 + $0x1ef0] sm:$0xff]
      %v1968 = vld [vmem:[#allocation12 + $0x1ef8] sm:$0xff]
      %v1969 = vld [vmem:[#allocation12 + $0x1f00] sm:$0xff]
      %v1970 = vld [vmem:[#allocation12 + $0x1f08] sm:$0xff]
      %v1971 = vld [vmem:[#allocation12 + $0x1f10] sm:$0xff]
      %v1972 = vld [vmem:[#allocation12 + $0x1f18] sm:$0xff]
      %v1973 = vld [vmem:[#allocation12 + $0x1f20] sm:$0xff]
      %v1974 = vld [vmem:[#allocation12 + $0x1f28] sm:$0xff]
      %v1975 = vld [vmem:[#allocation12 + $0x1f30] sm:$0xff]
      %v1976 = vld [vmem:[#allocation12 + $0x1f38] sm:$0xff]
      %v1977 = vld [vmem:[#allocation12 + $0x1f40] sm:$0xff]
      %v1978 = vld [vmem:[#allocation12 + $0x1f48] sm:$0xff]
      %v1979 = vld [vmem:[#allocation12 + $0x1f50] sm:$0xff]
      %v1980 = vld [vmem:[#allocation12 + $0x1f58] sm:$0xff]
      %v1981 = vld [vmem:[#allocation12 + $0x1f60] sm:$0xff]
      %v1982 = vld [vmem:[#allocation12 + $0x1f68] sm:$0xff]
      %v1983 = vld [vmem:[#allocation12 + $0x1f70] sm:$0xff]
      %v1984 = vld [vmem:[#allocation12 + $0x1f78] sm:$0xff]
      %v1985 = vld [vmem:[#allocation12 + $0x1f80] sm:$0xff]
      %v1986 = vld [vmem:[#allocation12 + $0x1f88] sm:$0xff]
      %v1987 = vld [vmem:[#allocation12 + $0x1f90] sm:$0xff]
      %v1988 = vld [vmem:[#allocation12 + $0x1f98] sm:$0xff]
      %v1989 = vld [vmem:[#allocation12 + $0x1fa0] sm:$0xff]
      %v1990 = vld [vmem:[#allocation12 + $0x1fa8] sm:$0xff]
      %v1991 = vld [vmem:[#allocation12 + $0x1fb0] sm:$0xff]
      %v1992 = vld [vmem:[#allocation12 + $0x1fb8] sm:$0xff]
      %v1993 = vld [vmem:[#allocation12 + $0x1fc0] sm:$0xff]
      %v1994 = vld [vmem:[#allocation12 + $0x1fc8] sm:$0xff]
      %v1995 = vld [vmem:[#allocation12 + $0x1fd0] sm:$0xff]
      %v1996 = vld [vmem:[#allocation12 + $0x1fd8] sm:$0xff]
      %v1997 = vld [vmem:[#allocation12 + $0x1fe0] sm:$0xff]
      %v1998 = vld [vmem:[#allocation12 + $0x1fe8] sm:$0xff]
      %v1999 = vld [vmem:[#allocation12 + $0x1ff0] sm:$0xff]
      %v2000 = vld [vmem:[#allocation12 + $0x1ff8] sm:$0xff]
      %v2001 = vld [vmem:[#allocation14] sm:$0xff]
      %v2003 = vlaneseq
      %v2004 = vshrl.u32 %v2003, 7
      %v2005 = vsub.s32 0, %v2004
      %v2006 = vrot.slane %v2001, %v2005
      %v2007 = vlaneseq
      %v2008 = vshrl.u32 %v2007, 7
      %v2009 = vsub.s32 1, %v2008
      %v2010 = vrot.slane %v2001, %v2009
      %v2011 = vlaneseq
      %v2012 = vshrl.u32 %v2011, 7
      %v2013 = vsub.s32 2, %v2012
      %v2014 = vrot.slane %v2001, %v2013
      %v2015 = vlaneseq
      %v2016 = vshrl.u32 %v2015, 7
      %v2017 = vsub.s32 3, %v2016
      %v2018 = vrot.slane %v2001, %v2017
      %v2019 = vlaneseq
      %v2020 = vshrl.u32 %v2019, 7
      %v2021 = vsub.s32 4, %v2020
      %v2022 = vrot.slane %v2001, %v2021
      %v2023 = vlaneseq
      %v2024 = vshrl.u32 %v2023, 7
      %v2025 = vsub.s32 5, %v2024
      %v2026 = vrot.slane %v2001, %v2025
      %v2027 = vlaneseq
      %v2028 = vshrl.u32 %v2027, 7
      %v2029 = vsub.s32 6, %v2028
      %v2030 = vrot.slane %v2001, %v2029
      %v2031 = vlaneseq
      %v2032 = vshrl.u32 %v2031, 7
      %v2033 = vsub.s32 7, %v2032
      %v2034 = vrot.slane %v2001, %v2033
      %2043 = vmatprep.subr.mxu0 %v978
      %2044 = vmatpush1.msra.mxu0 %v977
      %2045 = vmatprep.subr.mxu0 %v986
      %2046 = vmatpush1.msra.mxu0 %v985
      %2047 = vmatprep.subr.mxu0 %v994
      %2048 = vmatpush1.msra.mxu0 %v993
      %2049 = vmatprep.subr.mxu0 %v1002
      %2050 = vmatpush1.msra.mxu0 %v1001
      %2051 = vmatprep.subr.mxu0 %v1010
      %2052 = vmatpush1.msra.mxu0 %v1009
      %2053 = vmatprep.subr.mxu0 %v1018
      %2054 = vmatpush1.msra.mxu0 %v1017
      %2055 = vmatprep.subr.mxu0 %v1026
      %2056 = vmatpush1.msra.mxu0 %v1025
      %2057 = vmatprep.subr.mxu0 %v1034
      %2058 = vmatpush1.msra.mxu0 %v1033
      %2059 = vmatprep.subr.mxu0 %v1042
      %2060 = vmatpush1.msra.mxu0 %v1041
      %2061 = vmatprep.subr.mxu0 %v1050
      %2062 = vmatpush1.msra.mxu0 %v1049
      %2063 = vmatprep.subr.mxu0 %v1058
      %2064 = vmatpush1.msra.mxu0 %v1057
      %2065 = vmatprep.subr.mxu0 %v1066
      %2066 = vmatpush1.msra.mxu0 %v1065
      %2067 = vmatprep.subr.mxu0 %v1074
      %2068 = vmatpush1.msra.mxu0 %v1073
      %2069 = vmatprep.subr.mxu0 %v1082
      %2070 = vmatpush1.msra.mxu0 %v1081
      %2071 = vmatprep.subr.mxu0 %v1090
      %2072 = vmatpush1.msra.mxu0 %v1089
      %2073 = vmatprep.subr.mxu0 %v1098
      %2074 = vmatpush1.msra.mxu0 %v1097
      %2075 = vmatprep.subr.mxu0 %v1106
      %2076 = vmatpush1.msra.mxu0 %v1105
      %2077 = vmatprep.subr.mxu0 %v1114
      %2078 = vmatpush1.msra.mxu0 %v1113
      %2079 = vmatprep.subr.mxu0 %v1122
      %2080 = vmatpush1.msra.mxu0 %v1121
      %2081 = vmatprep.subr.mxu0 %v1130
      %2082 = vmatpush1.msra.mxu0 %v1129
      %2083 = vmatprep.subr.mxu0 %v1138
      %2084 = vmatpush1.msra.mxu0 %v1137
      %2085 = vmatprep.subr.mxu0 %v1146
      %2086 = vmatpush1.msra.mxu0 %v1145
      %2087 = vmatprep.subr.mxu0 %v1154
      %2088 = vmatpush1.msra.mxu0 %v1153
      %2089 = vmatprep.subr.mxu0 %v1162
      %2090 = vmatpush1.msra.mxu0 %v1161
      %2091 = vmatprep.subr.mxu0 %v1170
      %2092 = vmatpush1.msra.mxu0 %v1169
      %2093 = vmatprep.subr.mxu0 %v1178
      %2094 = vmatpush1.msra.mxu0 %v1177
      %2095 = vmatprep.subr.mxu0 %v1186
      %2096 = vmatpush1.msra.mxu0 %v1185
      %2097 = vmatprep.subr.mxu0 %v1194
      %2098 = vmatpush1.msra.mxu0 %v1193
      %2099 = vmatprep.subr.mxu0 %v1202
      %2100 = vmatpush1.msra.mxu0 %v1201
      %2101 = vmatprep.subr.mxu0 %v1210
      %2102 = vmatpush1.msra.mxu0 %v1209
      %2103 = vmatprep.subr.mxu0 %v1218
      %2104 = vmatpush1.msra.mxu0 %v1217
      %2105 = vmatprep.subr.mxu0 %v1226
      %2106 = vmatpush1.msra.mxu0 %v1225
      %2107 = vmatprep.mubr.f32.mxu0 %v970
      %2108 = vmatmul.mubr.f32.gmra.mrb[0].mxu0 %v969
      %v2109 = vpop.f32.mrb[0].mxu0
      %v2110 = vadd.f32 %v2006, %v2109
      %v2111 = vpop.f32.mrb[0].mxu0
      %v2112 = vadd.f32 %v2010, %v2111
      %2113 = vdwg.mxu0
      %2114 = vmatprep.subr.mxu0 %v1234
      %2115 = vmatpush1.msra.mxu0 %v1233
      %2116 = vmatprep.subr.mxu0 %v1242
      %2117 = vmatpush1.msra.mxu0 %v1241
      %2118 = vmatprep.subr.mxu0 %v1250
      %2119 = vmatpush1.msra.mxu0 %v1249
      %2120 = vmatprep.subr.mxu0 %v1258
      %2121 = vmatpush1.msra.mxu0 %v1257
      %2122 = vmatprep.subr.mxu0 %v1266
      %2123 = vmatpush1.msra.mxu0 %v1265
      %2124 = vmatprep.subr.mxu0 %v1274
      %2125 = vmatpush1.msra.mxu0 %v1273
      %2126 = vmatprep.subr.mxu0 %v1282
      %2127 = vmatpush1.msra.mxu0 %v1281
      %2128 = vmatprep.subr.mxu0 %v1290
      %2129 = vmatpush1.msra.mxu0 %v1289
      %2130 = vmatprep.subr.mxu0 %v1298
      %2131 = vmatpush1.msra.mxu0 %v1297
      %2132 = vmatprep.subr.mxu0 %v1306
      %2133 = vmatpush1.msra.mxu0 %v1305
      %2134 = vmatprep.subr.mxu0 %v1314
      %2135 = vmatpush1.msra.mxu0 %v1313
      %2136 = vmatprep.subr.mxu0 %v1322
      %2137 = vmatpush1.msra.mxu0 %v1321
      %2138 = vmatprep.subr.mxu0 %v1330
      %2139 = vmatpush1.msra.mxu0 %v1329
      %2140 = vmatprep.subr.mxu0 %v1338
      %2141 = vmatpush1.msra.mxu0 %v1337
      %2142 = vmatprep.subr.mxu0 %v1346
      %2143 = vmatpush1.msra.mxu0 %v1345
      %2144 = vmatprep.subr.mxu0 %v1354
      %2145 = vmatpush1.msra.mxu0 %v1353
      %2146 = vmatprep.subr.mxu0 %v1362
      %2147 = vmatpush1.msra.mxu0 %v1361
      %2148 = vmatprep.subr.mxu0 %v1370
      %2149 = vmatpush1.msra.mxu0 %v1369
      %2150 = vmatprep.subr.mxu0 %v1378
      %2151 = vmatpush1.msra.mxu0 %v1377
      %2152 = vmatprep.subr.mxu0 %v1386
      %2153 = vmatpush1.msra.mxu0 %v1385
      %2154 = vmatprep.subr.mxu0 %v1394
      %2155 = vmatpush1.msra.mxu0 %v1393
      %2156 = vmatprep.subr.mxu0 %v1402
      %2157 = vmatpush1.msra.mxu0 %v1401
      %2158 = vmatprep.subr.mxu0 %v1410
      %2159 = vmatpush1.msra.mxu0 %v1409
      %2160 = vmatprep.subr.mxu0 %v1418
      %2161 = vmatpush1.msra.mxu0 %v1417
      %2162 = vmatprep.subr.mxu0 %v1426
      %2163 = vmatpush1.msra.mxu0 %v1425
      %2164 = vmatprep.subr.mxu0 %v1434
      %2165 = vmatpush1.msra.mxu0 %v1433
      %2166 = vmatprep.subr.mxu0 %v1442
      %2167 = vmatpush1.msra.mxu0 %v1441
      %2168 = vmatprep.subr.mxu0 %v1450
      %2169 = vmatpush1.msra.mxu0 %v1449
      %2170 = vmatprep.subr.mxu0 %v1458
      %2171 = vmatpush1.msra.mxu0 %v1457
      %2172 = vmatprep.subr.mxu0 %v1466
      %2173 = vmatpush1.msra.mxu0 %v1465
      %2174 = vmatprep.subr.mxu0 %v1474
      %2175 = vmatpush1.msra.mxu0 %v1473
      %2176 = vmatprep.subr.mxu0 %v1482
      %2177 = vmatpush1.msra.mxu0 %v1481
      %2178 = vmatprep.mubr.f32.mxu0 %v972
      %2179 = vmatmul.mubr.f32.gmra.mrb[0].mxu0 %v971
      %v2180 = vpop.f32.mrb[0].mxu0
      %v2181 = vadd.f32 %v2110, %v2180
      %v2182 = vpop.f32.mrb[0].mxu0
      %v2183 = vadd.f32 %v2112, %v2182
      %2184 = vdwg.mxu0
      %2185 = vmatprep.subr.mxu0 %v1490
      %2186 = vmatpush1.msra.mxu0 %v1489
      %2187 = vmatprep.subr.mxu0 %v1498
      %2188 = vmatpush1.msra.mxu0 %v1497
      %2189 = vmatprep.subr.mxu0 %v1506
      %2190 = vmatpush1.msra.mxu0 %v1505
      %2191 = vmatprep.subr.mxu0 %v1514
      %2192 = vmatpush1.msra.mxu0 %v1513
      %2193 = vmatprep.subr.mxu0 %v1522
      %2194 = vmatpush1.msra.mxu0 %v1521
      %2195 = vmatprep.subr.mxu0 %v1530
      %2196 = vmatpush1.msra.mxu0 %v1529
      %2197 = vmatprep.subr.mxu0 %v1538
      %2198 = vmatpush1.msra.mxu0 %v1537
      %2199 = vmatprep.subr.mxu0 %v1546
      %2200 = vmatpush1.msra.mxu0 %v1545
      %2201 = vmatprep.subr.mxu0 %v1554
      %2202 = vmatpush1.msra.mxu0 %v1553
      %2203 = vmatprep.subr.mxu0 %v1562
      %2204 = vmatpush1.msra.mxu0 %v1561
      %2205 = vmatprep.subr.mxu0 %v1570
      %2206 = vmatpush1.msra.mxu0 %v1569
      %2207 = vmatprep.subr.mxu0 %v1578
      %2208 = vmatpush1.msra.mxu0 %v1577
      %2209 = vmatprep.subr.mxu0 %v1586
      %2210 = vmatpush1.msra.mxu0 %v1585
      %2211 = vmatprep.subr.mxu0 %v1594
      %2212 = vmatpush1.msra.mxu0 %v1593
      %2213 = vmatprep.subr.mxu0 %v1602
      %2214 = vmatpush1.msra.mxu0 %v1601
      %2215 = vmatprep.subr.mxu0 %v1610
      %2216 = vmatpush1.msra.mxu0 %v1609
      %2217 = vmatprep.subr.mxu0 %v1618
      %2218 = vmatpush1.msra.mxu0 %v1617
      %2219 = vmatprep.subr.mxu0 %v1626
      %2220 = vmatpush1.msra.mxu0 %v1625
      %2221 = vmatprep.subr.mxu0 %v1634
      %2222 = vmatpush1.msra.mxu0 %v1633
      %2223 = vmatprep.subr.mxu0 %v1642
      %2224 = vmatpush1.msra.mxu0 %v1641
      %2225 = vmatprep.subr.mxu0 %v1650
      %2226 = vmatpush1.msra.mxu0 %v1649
      %2227 = vmatprep.subr.mxu0 %v1658
      %2228 = vmatpush1.msra.mxu0 %v1657
      %2229 = vmatprep.subr.mxu0 %v1666
      %2230 = vmatpush1.msra.mxu0 %v1665
      %2231 = vmatprep.subr.mxu0 %v1674
      %2232 = vmatpush1.msra.mxu0 %v1673
      %2233 = vmatprep.subr.mxu0 %v1682
      %2234 = vmatpush1.msra.mxu0 %v1681
      %2235 = vmatprep.subr.mxu0 %v1690
      %2236 = vmatpush1.msra.mxu0 %v1689
      %2237 = vmatprep.subr.mxu0 %v1698
      %2238 = vmatpush1.msra.mxu0 %v1697
      %2239 = vmatprep.subr.mxu0 %v1706
      %2240 = vmatpush1.msra.mxu0 %v1705
      %2241 = vmatprep.subr.mxu0 %v1714
      %2242 = vmatpush1.msra.mxu0 %v1713
      %2243 = vmatprep.subr.mxu0 %v1722
      %2244 = vmatpush1.msra.mxu0 %v1721
      %2245 = vmatprep.subr.mxu0 %v1730
      %2246 = vmatpush1.msra.mxu0 %v1729
      %2247 = vmatprep.subr.mxu0 %v1738
      %2248 = vmatpush1.msra.mxu0 %v1737
      %2249 = vmatprep.mubr.f32.mxu0 %v974
      %2250 = vmatmul.mubr.f32.gmra.mrb[0].mxu0 %v973
      %v2251 = vpop.f32.mrb[0].mxu0
      %v2252 = vadd.f32 %v2181, %v2251
      %v2253 = vpop.f32.mrb[0].mxu0
      %v2254 = vadd.f32 %v2183, %v2253
      %2255 = vdwg.mxu0
      %2256 = vmatprep.subr.mxu0 %v1746
      %2257 = vmatpush1.msra.mxu0 %v1745
      %2258 = vmatprep.subr.mxu0 %v1754
      %2259 = vmatpush1.msra.mxu0 %v1753
      %2260 = vmatprep.subr.mxu0 %v1762
      %2261 = vmatpush1.msra.mxu0 %v1761
      %2262 = vmatprep.subr.mxu0 %v1770
      %2263 = vmatpush1.msra.mxu0 %v1769
      %2264 = vmatprep.subr.mxu0 %v1778
      %2265 = vmatpush1.msra.mxu0 %v1777
      %2266 = vmatprep.subr.mxu0 %v1786
      %2267 = vmatpush1.msra.mxu0 %v1785
      %2268 = vmatprep.subr.mxu0 %v1794
      %2269 = vmatpush1.msra.mxu0 %v1793
      %2270 = vmatprep.subr.mxu0 %v1802
      %2271 = vmatpush1.msra.mxu0 %v1801
      %2272 = vmatprep.subr.mxu0 %v1810
      %2273 = vmatpush1.msra.mxu0 %v1809
      %2274 = vmatprep.subr.mxu0 %v1818
      %2275 = vmatpush1.msra.mxu0 %v1817
      %2276 = vmatprep.subr.mxu0 %v1826
      %2277 = vmatpush1.msra.mxu0 %v1825
      %2278 = vmatprep.subr.mxu0 %v1834
      %2279 = vmatpush1.msra.mxu0 %v1833
      %2280 = vmatprep.subr.mxu0 %v1842
      %2281 = vmatpush1.msra.mxu0 %v1841
      %2282 = vmatprep.subr.mxu0 %v1850
      %2283 = vmatpush1.msra.mxu0 %v1849
      %2284 = vmatprep.subr.mxu0 %v1858
      %2285 = vmatpush1.msra.mxu0 %v1857
      %2286 = vmatprep.subr.mxu0 %v1866
      %2287 = vmatpush1.msra.mxu0 %v1865
      %2288 = vmatprep.subr.mxu0 %v1874
      %2289 = vmatpush1.msra.mxu0 %v1873
      %2290 = vmatprep.subr.mxu0 %v1882
      %2291 = vmatpush1.msra.mxu0 %v1881
      %2292 = vmatprep.subr.mxu0 %v1890
      %2293 = vmatpush1.msra.mxu0 %v1889
      %2294 = vmatprep.subr.mxu0 %v1898
      %2295 = vmatpush1.msra.mxu0 %v1897
      %2296 = vmatprep.subr.mxu0 %v1906
      %2297 = vmatpush1.msra.mxu0 %v1905
      %2298 = vmatprep.subr.mxu0 %v1914
      %2299 = vmatpush1.msra.mxu0 %v1913
      %2300 = vmatprep.subr.mxu0 %v1922
      %2301 = vmatpush1.msra.mxu0 %v1921
      %2302 = vmatprep.subr.mxu0 %v1930
      %2303 = vmatpush1.msra.mxu0 %v1929
      %2304 = vmatprep.subr.mxu0 %v1938
      %2305 = vmatpush1.msra.mxu0 %v1937
      %2306 = vmatprep.subr.mxu0 %v1946
      %2307 = vmatpush1.msra.mxu0 %v1945
      %2308 = vmatprep.subr.mxu0 %v1954
      %2309 = vmatpush1.msra.mxu0 %v1953
      %2310 = vmatprep.subr.mxu0 %v1962
      %2311 = vmatpush1.msra.mxu0 %v1961
      %2312 = vmatprep.subr.mxu0 %v1970
      %2313 = vmatpush1.msra.mxu0 %v1969
      %2314 = vmatprep.subr.mxu0 %v1978
      %2315 = vmatpush1.msra.mxu0 %v1977
      %2316 = vmatprep.subr.mxu0 %v1986
      %2317 = vmatpush1.msra.mxu0 %v1985
      %2318 = vmatprep.subr.mxu0 %v1994
      %2319 = vmatpush1.msra.mxu0 %v1993
      %2320 = vmatprep.mubr.f32.mxu0 %v976
      %2321 = vmatmul.mubr.f32.gmra.mrb[0].mxu0 %v975
      %v2322 = vpop.f32.mrb[0].mxu0
      %v2323 = vadd.f32 %v2252, %v2322
      %v2324 = vpop.f32.mrb[0].mxu0
      %v2325 = vadd.f32 %v2254, %v2324
      %2326 = vdwg.mxu0
      %2327 = vmatprep.subr.mxu0 %v980
      %2328 = vmatpush1.msra.mxu0 %v979
      %2329 = vmatprep.subr.mxu0 %v988
      %2330 = vmatpush1.msra.mxu0 %v987
      %2331 = vmatprep.subr.mxu0 %v996
      %2332 = vmatpush1.msra.mxu0 %v995
      %2333 = vmatprep.subr.mxu0 %v1004
      %2334 = vmatpush1.msra.mxu0 %v1003
      %2335 = vmatprep.subr.mxu0 %v1012
      %2336 = vmatpush1.msra.mxu0 %v1011
      %2337 = vmatprep.subr.mxu0 %v1020
      %2338 = vmatpush1.msra.mxu0 %v1019
      %2339 = vmatprep.subr.mxu0 %v1028
      %2340 = vmatpush1.msra.mxu0 %v1027
      %2341 = vmatprep.subr.mxu0 %v1036
      %2342 = vmatpush1.msra.mxu0 %v1035
      %2343 = vmatprep.subr.mxu0 %v1044
      %2344 = vmatpush1.msra.mxu0 %v1043
      %2345 = vmatprep.subr.mxu0 %v1052
      %2346 = vmatpush1.msra.mxu0 %v1051
      %2347 = vmatprep.subr.mxu0 %v1060
      %2348 = vmatpush1.msra.mxu0 %v1059
      %2349 = vmatprep.subr.mxu0 %v1068
      %2350 = vmatpush1.msra.mxu0 %v1067
      %2351 = vmatprep.subr.mxu0 %v1076
      %2352 = vmatpush1.msra.mxu0 %v1075
      %2353 = vmatprep.subr.mxu0 %v1084
      %2354 = vmatpush1.msra.mxu0 %v1083
      %2355 = vmatprep.subr.mxu0 %v1092
      %2356 = vmatpush1.msra.mxu0 %v1091
      %2357 = vmatprep.subr.mxu0 %v1100
      %2358 = vmatpush1.msra.mxu0 %v1099
      %2359 = vmatprep.subr.mxu0 %v1108
      %2360 = vmatpush1.msra.mxu0 %v1107
      %2361 = vmatprep.subr.mxu0 %v1116
      %2362 = vmatpush1.msra.mxu0 %v1115
      %2363 = vmatprep.subr.mxu0 %v1124
      %2364 = vmatpush1.msra.mxu0 %v1123
      %2365 = vmatprep.subr.mxu0 %v1132
      %2366 = vmatpush1.msra.mxu0 %v1131
      %2367 = vmatprep.subr.mxu0 %v1140
      %2368 = vmatpush1.msra.mxu0 %v1139
      %2369 = vmatprep.subr.mxu0 %v1148
      %2370 = vmatpush1.msra.mxu0 %v1147
      %2371 = vmatprep.subr.mxu0 %v1156
      %2372 = vmatpush1.msra.mxu0 %v1155
      %2373 = vmatprep.subr.mxu0 %v1164
      %2374 = vmatpush1.msra.mxu0 %v1163
      %2375 = vmatprep.subr.mxu0 %v1172
      %2376 = vmatpush1.msra.mxu0 %v1171
      %2377 = vmatprep.subr.mxu0 %v1180
      %2378 = vmatpush1.msra.mxu0 %v1179
      %2379 = vmatprep.subr.mxu0 %v1188
      %2380 = vmatpush1.msra.mxu0 %v1187
      %2381 = vmatprep.subr.mxu0 %v1196
      %2382 = vmatpush1.msra.mxu0 %v1195
      %2383 = vmatprep.subr.mxu0 %v1204
      %2384 = vmatpush1.msra.mxu0 %v1203
      %2385 = vmatprep.subr.mxu0 %v1212
      %2386 = vmatpush1.msra.mxu0 %v1211
      %2387 = vmatprep.subr.mxu0 %v1220
      %2388 = vmatpush1.msra.mxu0 %v1219
      %2389 = vmatprep.subr.mxu0 %v1228
      %2390 = vmatpush1.msra.mxu0 %v1227
      %2391 = vmatprep.mubr.f32.mxu0 %v970
      %2392 = vmatmul.mubr.f32.gmra.mrb[0].mxu0 %v969
      %v2393 = vpop.f32.mrb[0].mxu0
      %v2394 = vadd.f32 %v2014, %v2393
      %v2395 = vpop.f32.mrb[0].mxu0
      %v2396 = vadd.f32 %v2018, %v2395
      %2397 = vdwg.mxu0
      %2398 = vmatprep.subr.mxu0 %v1236
      %2399 = vmatpush1.msra.mxu0 %v1235
      %2400 = vmatprep.subr.mxu0 %v1244
      %2401 = vmatpush1.msra.mxu0 %v1243
      %2402 = vmatprep.subr.mxu0 %v1252
      %2403 = vmatpush1.msra.mxu0 %v1251
      %2404 = vmatprep.subr.mxu0 %v1260
      %2405 = vmatpush1.msra.mxu0 %v1259
      %2406 = vmatprep.subr.mxu0 %v1268
      %2407 = vmatpush1.msra.mxu0 %v1267
      %2408 = vmatprep.subr.mxu0 %v1276
      %2409 = vmatpush1.msra.mxu0 %v1275
      %2410 = vmatprep.subr.mxu0 %v1284
      %2411 = vmatpush1.msra.mxu0 %v1283
      %2412 = vmatprep.subr.mxu0 %v1292
      %2413 = vmatpush1.msra.mxu0 %v1291
      %2414 = vmatprep.subr.mxu0 %v1300
      %2415 = vmatpush1.msra.mxu0 %v1299
      %2416 = vmatprep.subr.mxu0 %v1308
      %2417 = vmatpush1.msra.mxu0 %v1307
      %2418 = vmatprep.subr.mxu0 %v1316
      %2419 = vmatpush1.msra.mxu0 %v1315
      %2420 = vmatprep.subr.mxu0 %v1324
      %2421 = vmatpush1.msra.mxu0 %v1323
      %2422 = vmatprep.subr.mxu0 %v1332
      %2423 = vmatpush1.msra.mxu0 %v1331
      %2424 = vmatprep.subr.mxu0 %v1340
      %2425 = vmatpush1.msra.mxu0 %v1339
      %2426 = vmatprep.subr.mxu0 %v1348
      %2427 = vmatpush1.msra.mxu0 %v1347
      %2428 = vmatprep.subr.mxu0 %v1356
      %2429 = vmatpush1.msra.mxu0 %v1355
      %2430 = vmatprep.subr.mxu0 %v1364
      %2431 = vmatpush1.msra.mxu0 %v1363
      %2432 = vmatprep.subr.mxu0 %v1372
      %2433 = vmatpush1.msra.mxu0 %v1371
      %2434 = vmatprep.subr.mxu0 %v1380
      %2435 = vmatpush1.msra.mxu0 %v1379
      %2436 = vmatprep.subr.mxu0 %v1388
      %2437 = vmatpush1.msra.mxu0 %v1387
      %2438 = vmatprep.subr.mxu0 %v1396
      %2439 = vmatpush1.msra.mxu0 %v1395
      %2440 = vmatprep.subr.mxu0 %v1404
      %2441 = vmatpush1.msra.mxu0 %v1403
      %2442 = vmatprep.subr.mxu0 %v1412
      %2443 = vmatpush1.msra.mxu0 %v1411
      %2444 = vmatprep.subr.mxu0 %v1420
      %2445 = vmatpush1.msra.mxu0 %v1419
      %2446 = vmatprep.subr.mxu0 %v1428
      %2447 = vmatpush1.msra.mxu0 %v1427
      %2448 = vmatprep.subr.mxu0 %v1436
      %2449 = vmatpush1.msra.mxu0 %v1435
      %2450 = vmatprep.subr.mxu0 %v1444
      %2451 = vmatpush1.msra.mxu0 %v1443
      %2452 = vmatprep.subr.mxu0 %v1452
      %2453 = vmatpush1.msra.mxu0 %v1451
      %2454 = vmatprep.subr.mxu0 %v1460
      %2455 = vmatpush1.msra.mxu0 %v1459
      %2456 = vmatprep.subr.mxu0 %v1468
      %2457 = vmatpush1.msra.mxu0 %v1467
      %2458 = vmatprep.subr.mxu0 %v1476
      %2459 = vmatpush1.msra.mxu0 %v1475
      %2460 = vmatprep.subr.mxu0 %v1484
      %2461 = vmatpush1.msra.mxu0 %v1483
      %2462 = vmatprep.mubr.f32.mxu0 %v972
      %2463 = vmatmul.mubr.f32.gmra.mrb[0].mxu0 %v971
      %v2464 = vpop.f32.mrb[0].mxu0
      %v2465 = vadd.f32 %v2394, %v2464
      %v2466 = vpop.f32.mrb[0].mxu0
      %v2467 = vadd.f32 %v2396, %v2466
      %2468 = vdwg.mxu0
      %2469 = vmatprep.subr.mxu0 %v1492
      %2470 = vmatpush1.msra.mxu0 %v1491
      %2471 = vmatprep.subr.mxu0 %v1500
      %2472 = vmatpush1.msra.mxu0 %v1499
      %2473 = vmatprep.subr.mxu0 %v1508
      %2474 = vmatpush1.msra.mxu0 %v1507
      %2475 = vmatprep.subr.mxu0 %v1516
      %2476 = vmatpush1.msra.mxu0 %v1515
      %2477 = vmatprep.subr.mxu0 %v1524
      %2478 = vmatpush1.msra.mxu0 %v1523
      %2479 = vmatprep.subr.mxu0 %v1532
      %2480 = vmatpush1.msra.mxu0 %v1531
      %2481 = vmatprep.subr.mxu0 %v1540
      %2482 = vmatpush1.msra.mxu0 %v1539
      %2483 = vmatprep.subr.mxu0 %v1548
      %2484 = vmatpush1.msra.mxu0 %v1547
      %2485 = vmatprep.subr.mxu0 %v1556
      %2486 = vmatpush1.msra.mxu0 %v1555
      %2487 = vmatprep.subr.mxu0 %v1564
      %2488 = vmatpush1.msra.mxu0 %v1563
      %2489 = vmatprep.subr.mxu0 %v1572
      %2490 = vmatpush1.msra.mxu0 %v1571
      %2491 = vmatprep.subr.mxu0 %v1580
      %2492 = vmatpush1.msra.mxu0 %v1579
      %2493 = vmatprep.subr.mxu0 %v1588
      %2494 = vmatpush1.msra.mxu0 %v1587
      %2495 = vmatprep.subr.mxu0 %v1596
      %2496 = vmatpush1.msra.mxu0 %v1595
      %2497 = vmatprep.subr.mxu0 %v1604
      %2498 = vmatpush1.msra.mxu0 %v1603
      %2499 = vmatprep.subr.mxu0 %v1612
      %2500 = vmatpush1.msra.mxu0 %v1611
      %2501 = vmatprep.subr.mxu0 %v1620
      %2502 = vmatpush1.msra.mxu0 %v1619
      %2503 = vmatprep.subr.mxu0 %v1628
      %2504 = vmatpush1.msra.mxu0 %v1627
      %2505 = vmatprep.subr.mxu0 %v1636
      %2506 = vmatpush1.msra.mxu0 %v1635
      %2507 = vmatprep.subr.mxu0 %v1644
      %2508 = vmatpush1.msra.mxu0 %v1643
      %2509 = vmatprep.subr.mxu0 %v1652
      %2510 = vmatpush1.msra.mxu0 %v1651
      %2511 = vmatprep.subr.mxu0 %v1660
      %2512 = vmatpush1.msra.mxu0 %v1659
      %2513 = vmatprep.subr.mxu0 %v1668
      %2514 = vmatpush1.msra.mxu0 %v1667
      %2515 = vmatprep.subr.mxu0 %v1676
      %2516 = vmatpush1.msra.mxu0 %v1675
      %2517 = vmatprep.subr.mxu0 %v1684
      %2518 = vmatpush1.msra.mxu0 %v1683
      %2519 = vmatprep.subr.mxu0 %v1692
      %2520 = vmatpush1.msra.mxu0 %v1691
      %2521 = vmatprep.subr.mxu0 %v1700
      %2522 = vmatpush1.msra.mxu0 %v1699
      %2523 = vmatprep.subr.mxu0 %v1708
      %2524 = vmatpush1.msra.mxu0 %v1707
      %2525 = vmatprep.subr.mxu0 %v1716
      %2526 = vmatpush1.msra.mxu0 %v1715
      %2527 = vmatprep.subr.mxu0 %v1724
      %2528 = vmatpush1.msra.mxu0 %v1723
      %2529 = vmatprep.subr.mxu0 %v1732
      %2530 = vmatpush1.msra.mxu0 %v1731
      %2531 = vmatprep.subr.mxu0 %v1740
      %2532 = vmatpush1.msra.mxu0 %v1739
      %2533 = vmatprep.mubr.f32.mxu0 %v974
      %2534 = vmatmul.mubr.f32.gmra.mrb[0].mxu0 %v973
      %v2535 = vpop.f32.mrb[0].mxu0
      %v2536 = vadd.f32 %v2465, %v2535
      %v2537 = vpop.f32.mrb[0].mxu0
      %v2538 = vadd.f32 %v2467, %v2537
      %2539 = vdwg.mxu0
      %2540 = vmatprep.subr.mxu0 %v1748
      %2541 = vmatpush1.msra.mxu0 %v1747
      %2542 = vmatprep.subr.mxu0 %v1756
      %2543 = vmatpush1.msra.mxu0 %v1755
      %2544 = vmatprep.subr.mxu0 %v1764
      %2545 = vmatpush1.msra.mxu0 %v1763
      %2546 = vmatprep.subr.mxu0 %v1772
      %2547 = vmatpush1.msra.mxu0 %v1771
      %2548 = vmatprep.subr.mxu0 %v1780
      %2549 = vmatpush1.msra.mxu0 %v1779
      %2550 = vmatprep.subr.mxu0 %v1788
      %2551 = vmatpush1.msra.mxu0 %v1787
      %2552 = vmatprep.subr.mxu0 %v1796
      %2553 = vmatpush1.msra.mxu0 %v1795
      %2554 = vmatprep.subr.mxu0 %v1804
      %2555 = vmatpush1.msra.mxu0 %v1803
      %2556 = vmatprep.subr.mxu0 %v1812
      %2557 = vmatpush1.msra.mxu0 %v1811
      %2558 = vmatprep.subr.mxu0 %v1820
      %2559 = vmatpush1.msra.mxu0 %v1819
      %2560 = vmatprep.subr.mxu0 %v1828
      %2561 = vmatpush1.msra.mxu0 %v1827
      %2562 = vmatprep.subr.mxu0 %v1836
      %2563 = vmatpush1.msra.mxu0 %v1835
      %2564 = vmatprep.subr.mxu0 %v1844
      %2565 = vmatpush1.msra.mxu0 %v1843
      %2566 = vmatprep.subr.mxu0 %v1852
      %2567 = vmatpush1.msra.mxu0 %v1851
      %2568 = vmatprep.subr.mxu0 %v1860
      %2569 = vmatpush1.msra.mxu0 %v1859
      %2570 = vmatprep.subr.mxu0 %v1868
      %2571 = vmatpush1.msra.mxu0 %v1867
      %2572 = vmatprep.subr.mxu0 %v1876
      %2573 = vmatpush1.msra.mxu0 %v1875
      %2574 = vmatprep.subr.mxu0 %v1884
      %2575 = vmatpush1.msra.mxu0 %v1883
      %2576 = vmatprep.subr.mxu0 %v1892
      %2577 = vmatpush1.msra.mxu0 %v1891
      %2578 = vmatprep.subr.mxu0 %v1900
      %2579 = vmatpush1.msra.mxu0 %v1899
      %2580 = vmatprep.subr.mxu0 %v1908
      %2581 = vmatpush1.msra.mxu0 %v1907
      %2582 = vmatprep.subr.mxu0 %v1916
      %2583 = vmatpush1.msra.mxu0 %v1915
      %2584 = vmatprep.subr.mxu0 %v1924
      %2585 = vmatpush1.msra.mxu0 %v1923
      %2586 = vmatprep.subr.mxu0 %v1932
      %2587 = vmatpush1.msra.mxu0 %v1931
      %2588 = vmatprep.subr.mxu0 %v1940
      %2589 = vmatpush1.msra.mxu0 %v1939
      %2590 = vmatprep.subr.mxu0 %v1948
      %2591 = vmatpush1.msra.mxu0 %v1947
      %2592 = vmatprep.subr.mxu0 %v1956
      %2593 = vmatpush1.msra.mxu0 %v1955
      %2594 = vmatprep.subr.mxu0 %v1964
      %2595 = vmatpush1.msra.mxu0 %v1963
      %2596 = vmatprep.subr.mxu0 %v1972
      %2597 = vmatpush1.msra.mxu0 %v1971
      %2598 = vmatprep.subr.mxu0 %v1980
      %2599 = vmatpush1.msra.mxu0 %v1979
      %2600 = vmatprep.subr.mxu0 %v1988
      %2601 = vmatpush1.msra.mxu0 %v1987
      %2602 = vmatprep.subr.mxu0 %v1996
      %2603 = vmatpush1.msra.mxu0 %v1995
      %2604 = vmatprep.mubr.f32.mxu0 %v976
      %2605 = vmatmul.mubr.f32.gmra.mrb[0].mxu0 %v975
      %v2606 = vpop.f32.mrb[0].mxu0
      %v2607 = vadd.f32 %v2536, %v2606
      %v2608 = vpop.f32.mrb[0].mxu0
      %v2609 = vadd.f32 %v2538, %v2608
      %2610 = vdwg.mxu0
      %2611 = vmatprep.subr.mxu0 %v982
      %2612 = vmatpush1.msra.mxu0 %v981
      %2613 = vmatprep.subr.mxu0 %v990
      %2614 = vmatpush1.msra.mxu0 %v989
      %2615 = vmatprep.subr.mxu0 %v998
      %2616 = vmatpush1.msra.mxu0 %v997
      %2617 = vmatprep.subr.mxu0 %v1006
      %2618 = vmatpush1.msra.mxu0 %v1005
      %2619 = vmatprep.subr.mxu0 %v1014
      %2620 = vmatpush1.msra.mxu0 %v1013
      %2621 = vmatprep.subr.mxu0 %v1022
      %2622 = vmatpush1.msra.mxu0 %v1021
      %2623 = vmatprep.subr.mxu0 %v1030
      %2624 = vmatpush1.msra.mxu0 %v1029
      %2625 = vmatprep.subr.mxu0 %v1038
      %2626 = vmatpush1.msra.mxu0 %v1037
      %2627 = vmatprep.subr.mxu0 %v1046
      %2628 = vmatpush1.msra.mxu0 %v1045
      %2629 = vmatprep.subr.mxu0 %v1054
      %2630 = vmatpush1.msra.mxu0 %v1053
      %2631 = vmatprep.subr.mxu0 %v1062
      %2632 = vmatpush1.msra.mxu0 %v1061
      %2633 = vmatprep.subr.mxu0 %v1070
      %2634 = vmatpush1.msra.mxu0 %v1069
      %2635 = vmatprep.subr.mxu0 %v1078
      %2636 = vmatpush1.msra.mxu0 %v1077
      %2637 = vmatprep.subr.mxu0 %v1086
      %2638 = vmatpush1.msra.mxu0 %v1085
      %2639 = vmatprep.subr.mxu0 %v1094
      %2640 = vmatpush1.msra.mxu0 %v1093
      %2641 = vmatprep.subr.mxu0 %v1102
      %2642 = vmatpush1.msra.mxu0 %v1101
      %2643 = vmatprep.subr.mxu0 %v1110
      %2644 = vmatpush1.msra.mxu0 %v1109
      %2645 = vmatprep.subr.mxu0 %v1118
      %2646 = vmatpush1.msra.mxu0 %v1117
      %2647 = vmatprep.subr.mxu0 %v1126
      %2648 = vmatpush1.msra.mxu0 %v1125
      %2649 = vmatprep.subr.mxu0 %v1134
      %2650 = vmatpush1.msra.mxu0 %v1133
      %2651 = vmatprep.subr.mxu0 %v1142
      %2652 = vmatpush1.msra.mxu0 %v1141
      %2653 = vmatprep.subr.mxu0 %v1150
      %2654 = vmatpush1.msra.mxu0 %v1149
      %2655 = vmatprep.subr.mxu0 %v1158
      %2656 = vmatpush1.msra.mxu0 %v1157
      %2657 = vmatprep.subr.mxu0 %v1166
      %2658 = vmatpush1.msra.mxu0 %v1165
      %2659 = vmatprep.subr.mxu0 %v1174
      %2660 = vmatpush1.msra.mxu0 %v1173
      %2661 = vmatprep.subr.mxu0 %v1182
      %2662 = vmatpush1.msra.mxu0 %v1181
      %2663 = vmatprep.subr.mxu0 %v1190
      %2664 = vmatpush1.msra.mxu0 %v1189
      %2665 = vmatprep.subr.mxu0 %v1198
      %2666 = vmatpush1.msra.mxu0 %v1197
      %2667 = vmatprep.subr.mxu0 %v1206
      %2668 = vmatpush1.msra.mxu0 %v1205
      %2669 = vmatprep.subr.mxu0 %v1214
      %2670 = vmatpush1.msra.mxu0 %v1213
      %2671 = vmatprep.subr.mxu0 %v1222
      %2672 = vmatpush1.msra.mxu0 %v1221
      %2673 = vmatprep.subr.mxu0 %v1230
      %2674 = vmatpush1.msra.mxu0 %v1229
      %2675 = vmatprep.mubr.f32.mxu0 %v970
      %2676 = vmatmul.mubr.f32.gmra.mrb[0].mxu0 %v969
      %v2677 = vpop.f32.mrb[0].mxu0
      %v2678 = vadd.f32 %v2022, %v2677
      %v2679 = vpop.f32.mrb[0].mxu0
      %v2680 = vadd.f32 %v2026, %v2679
      %2681 = vdwg.mxu0
      %2682 = vmatprep.subr.mxu0 %v1238
      %2683 = vmatpush1.msra.mxu0 %v1237
      %2684 = vmatprep.subr.mxu0 %v1246
      %2685 = vmatpush1.msra.mxu0 %v1245
      %2686 = vmatprep.subr.mxu0 %v1254
      %2687 = vmatpush1.msra.mxu0 %v1253
      %2688 = vmatprep.subr.mxu0 %v1262
      %2689 = vmatpush1.msra.mxu0 %v1261
      %2690 = vmatprep.subr.mxu0 %v1270
      %2691 = vmatpush1.msra.mxu0 %v1269
      %2692 = vmatprep.subr.mxu0 %v1278
      %2693 = vmatpush1.msra.mxu0 %v1277
      %2694 = vmatprep.subr.mxu0 %v1286
      %2695 = vmatpush1.msra.mxu0 %v1285
      %2696 = vmatprep.subr.mxu0 %v1294
      %2697 = vmatpush1.msra.mxu0 %v1293
      %2698 = vmatprep.subr.mxu0 %v1302
      %2699 = vmatpush1.msra.mxu0 %v1301
      %2700 = vmatprep.subr.mxu0 %v1310
      %2701 = vmatpush1.msra.mxu0 %v1309
      %2702 = vmatprep.subr.mxu0 %v1318
      %2703 = vmatpush1.msra.mxu0 %v1317
      %2704 = vmatprep.subr.mxu0 %v1326
      %2705 = vmatpush1.msra.mxu0 %v1325
      %2706 = vmatprep.subr.mxu0 %v1334
      %2707 = vmatpush1.msra.mxu0 %v1333
      %2708 = vmatprep.subr.mxu0 %v1342
      %2709 = vmatpush1.msra.mxu0 %v1341
      %2710 = vmatprep.subr.mxu0 %v1350
      %2711 = vmatpush1.msra.mxu0 %v1349
      %2712 = vmatprep.subr.mxu0 %v1358
      %2713 = vmatpush1.msra.mxu0 %v1357
      %2714 = vmatprep.subr.mxu0 %v1366
      %2715 = vmatpush1.msra.mxu0 %v1365
      %2716 = vmatprep.subr.mxu0 %v1374
      %2717 = vmatpush1.msra.mxu0 %v1373
      %2718 = vmatprep.subr.mxu0 %v1382
      %2719 = vmatpush1.msra.mxu0 %v1381
      %2720 = vmatprep.subr.mxu0 %v1390
      %2721 = vmatpush1.msra.mxu0 %v1389
      %2722 = vmatprep.subr.mxu0 %v1398
      %2723 = vmatpush1.msra.mxu0 %v1397
      %2724 = vmatprep.subr.mxu0 %v1406
      %2725 = vmatpush1.msra.mxu0 %v1405
      %2726 = vmatprep.subr.mxu0 %v1414
      %2727 = vmatpush1.msra.mxu0 %v1413
      %2728 = vmatprep.subr.mxu0 %v1422
      %2729 = vmatpush1.msra.mxu0 %v1421
      %2730 = vmatprep.subr.mxu0 %v1430
      %2731 = vmatpush1.msra.mxu0 %v1429
      %2732 = vmatprep.subr.mxu0 %v1438
      %2733 = vmatpush1.msra.mxu0 %v1437
      %2734 = vmatprep.subr.mxu0 %v1446
      %2735 = vmatpush1.msra.mxu0 %v1445
      %2736 = vmatprep.subr.mxu0 %v1454
      %2737 = vmatpush1.msra.mxu0 %v1453
      %2738 = vmatprep.subr.mxu0 %v1462
      %2739 = vmatpush1.msra.mxu0 %v1461
      %2740 = vmatprep.subr.mxu0 %v1470
      %2741 = vmatpush1.msra.mxu0 %v1469
      %2742 = vmatprep.subr.mxu0 %v1478
      %2743 = vmatpush1.msra.mxu0 %v1477
      %2744 = vmatprep.subr.mxu0 %v1486
      %2745 = vmatpush1.msra.mxu0 %v1485
      %2746 = vmatprep.mubr.f32.mxu0 %v972
      %2747 = vmatmul.mubr.f32.gmra.mrb[0].mxu0 %v971
      %v2748 = vpop.f32.mrb[0].mxu0
      %v2749 = vadd.f32 %v2678, %v2748
      %v2750 = vpop.f32.mrb[0].mxu0
      %v2751 = vadd.f32 %v2680, %v2750
      %2752 = vdwg.mxu0
      %2753 = vmatprep.subr.mxu0 %v1494
      %2754 = vmatpush1.msra.mxu0 %v1493
      %2755 = vmatprep.subr.mxu0 %v1502
      %2756 = vmatpush1.msra.mxu0 %v1501
      %2757 = vmatprep.subr.mxu0 %v1510
      %2758 = vmatpush1.msra.mxu0 %v1509
      %2759 = vmatprep.subr.mxu0 %v1518
      %2760 = vmatpush1.msra.mxu0 %v1517
      %2761 = vmatprep.subr.mxu0 %v1526
      %2762 = vmatpush1.msra.mxu0 %v1525
      %2763 = vmatprep.subr.mxu0 %v1534
      %2764 = vmatpush1.msra.mxu0 %v1533
      %2765 = vmatprep.subr.mxu0 %v1542
      %2766 = vmatpush1.msra.mxu0 %v1541
      %2767 = vmatprep.subr.mxu0 %v1550
      %2768 = vmatpush1.msra.mxu0 %v1549
      %2769 = vmatprep.subr.mxu0 %v1558
      %2770 = vmatpush1.msra.mxu0 %v1557
      %2771 = vmatprep.subr.mxu0 %v1566
      %2772 = vmatpush1.msra.mxu0 %v1565
      %2773 = vmatprep.subr.mxu0 %v1574
      %2774 = vmatpush1.msra.mxu0 %v1573
      %2775 = vmatprep.subr.mxu0 %v1582
      %2776 = vmatpush1.msra.mxu0 %v1581
      %2777 = vmatprep.subr.mxu0 %v1590
      %2778 = vmatpush1.msra.mxu0 %v1589
      %2779 = vmatprep.subr.mxu0 %v1598
      %2780 = vmatpush1.msra.mxu0 %v1597
      %2781 = vmatprep.subr.mxu0 %v1606
      %2782 = vmatpush1.msra.mxu0 %v1605
      %2783 = vmatprep.subr.mxu0 %v1614
      %2784 = vmatpush1.msra.mxu0 %v1613
      %2785 = vmatprep.subr.mxu0 %v1622
      %2786 = vmatpush1.msra.mxu0 %v1621
      %2787 = vmatprep.subr.mxu0 %v1630
      %2788 = vmatpush1.msra.mxu0 %v1629
      %2789 = vmatprep.subr.mxu0 %v1638
      %2790 = vmatpush1.msra.mxu0 %v1637
      %2791 = vmatprep.subr.mxu0 %v1646
      %2792 = vmatpush1.msra.mxu0 %v1645
      %2793 = vmatprep.subr.mxu0 %v1654
      %2794 = vmatpush1.msra.mxu0 %v1653
      %2795 = vmatprep.subr.mxu0 %v1662
      %2796 = vmatpush1.msra.mxu0 %v1661
      %2797 = vmatprep.subr.mxu0 %v1670
      %2798 = vmatpush1.msra.mxu0 %v1669
      %2799 = vmatprep.subr.mxu0 %v1678
      %2800 = vmatpush1.msra.mxu0 %v1677
      %2801 = vmatprep.subr.mxu0 %v1686
      %2802 = vmatpush1.msra.mxu0 %v1685
      %2803 = vmatprep.subr.mxu0 %v1694
      %2804 = vmatpush1.msra.mxu0 %v1693
      %2805 = vmatprep.subr.mxu0 %v1702
      %2806 = vmatpush1.msra.mxu0 %v1701
      %2807 = vmatprep.subr.mxu0 %v1710
      %2808 = vmatpush1.msra.mxu0 %v1709
      %2809 = vmatprep.subr.mxu0 %v1718
      %2810 = vmatpush1.msra.mxu0 %v1717
      %2811 = vmatprep.subr.mxu0 %v1726
      %2812 = vmatpush1.msra.mxu0 %v1725
      %2813 = vmatprep.subr.mxu0 %v1734
      %2814 = vmatpush1.msra.mxu0 %v1733
      %2815 = vmatprep.subr.mxu0 %v1742
      %2816 = vmatpush1.msra.mxu0 %v1741
      %2817 = vmatprep.mubr.f32.mxu0 %v974
      %2818 = vmatmul.mubr.f32.gmra.mrb[0].mxu0 %v973
      %v2819 = vpop.f32.mrb[0].mxu0
      %v2820 = vadd.f32 %v2749, %v2819
      %v2821 = vpop.f32.mrb[0].mxu0
      %v2822 = vadd.f32 %v2751, %v2821
      %2823 = vdwg.mxu0
      %2824 = vmatprep.subr.mxu0 %v1750
      %2825 = vmatpush1.msra.mxu0 %v1749
      %2826 = vmatprep.subr.mxu0 %v1758
      %2827 = vmatpush1.msra.mxu0 %v1757
      %2828 = vmatprep.subr.mxu0 %v1766
      %2829 = vmatpush1.msra.mxu0 %v1765
      %2830 = vmatprep.subr.mxu0 %v1774
      %2831 = vmatpush1.msra.mxu0 %v1773
      %2832 = vmatprep.subr.mxu0 %v1782
      %2833 = vmatpush1.msra.mxu0 %v1781
      %2834 = vmatprep.subr.mxu0 %v1790
      %2835 = vmatpush1.msra.mxu0 %v1789
      %2836 = vmatprep.subr.mxu0 %v1798
      %2837 = vmatpush1.msra.mxu0 %v1797
      %2838 = vmatprep.subr.mxu0 %v1806
      %2839 = vmatpush1.msra.mxu0 %v1805
      %2840 = vmatprep.subr.mxu0 %v1814
      %2841 = vmatpush1.msra.mxu0 %v1813
      %2842 = vmatprep.subr.mxu0 %v1822
      %2843 = vmatpush1.msra.mxu0 %v1821
      %2844 = vmatprep.subr.mxu0 %v1830
      %2845 = vmatpush1.msra.mxu0 %v1829
      %2846 = vmatprep.subr.mxu0 %v1838
      %2847 = vmatpush1.msra.mxu0 %v1837
      %2848 = vmatprep.subr.mxu0 %v1846
      %2849 = vmatpush1.msra.mxu0 %v1845
      %2850 = vmatprep.subr.mxu0 %v1854
      %2851 = vmatpush1.msra.mxu0 %v1853
      %2852 = vmatprep.subr.mxu0 %v1862
      %2853 = vmatpush1.msra.mxu0 %v1861
      %2854 = vmatprep.subr.mxu0 %v1870
      %2855 = vmatpush1.msra.mxu0 %v1869
      %2856 = vmatprep.subr.mxu0 %v1878
      %2857 = vmatpush1.msra.mxu0 %v1877
      %2858 = vmatprep.subr.mxu0 %v1886
      %2859 = vmatpush1.msra.mxu0 %v1885
      %2860 = vmatprep.subr.mxu0 %v1894
      %2861 = vmatpush1.msra.mxu0 %v1893
      %2862 = vmatprep.subr.mxu0 %v1902
      %2863 = vmatpush1.msra.mxu0 %v1901
      %2864 = vmatprep.subr.mxu0 %v1910
      %2865 = vmatpush1.msra.mxu0 %v1909
      %2866 = vmatprep.subr.mxu0 %v1918
      %2867 = vmatpush1.msra.mxu0 %v1917
      %2868 = vmatprep.subr.mxu0 %v1926
      %2869 = vmatpush1.msra.mxu0 %v1925
      %2870 = vmatprep.subr.mxu0 %v1934
      %2871 = vmatpush1.msra.mxu0 %v1933
      %2872 = vmatprep.subr.mxu0 %v1942
      %2873 = vmatpush1.msra.mxu0 %v1941
      %2874 = vmatprep.subr.mxu0 %v1950
      %2875 = vmatpush1.msra.mxu0 %v1949
      %2876 = vmatprep.subr.mxu0 %v1958
      %2877 = vmatpush1.msra.mxu0 %v1957
      %2878 = vmatprep.subr.mxu0 %v1966
      %2879 = vmatpush1.msra.mxu0 %v1965
      %2880 = vmatprep.subr.mxu0 %v1974
      %2881 = vmatpush1.msra.mxu0 %v1973
      %2882 = vmatprep.subr.mxu0 %v1982
      %2883 = vmatpush1.msra.mxu0 %v1981
      %2884 = vmatprep.subr.mxu0 %v1990
      %2885 = vmatpush1.msra.mxu0 %v1989
      %2886 = vmatprep.subr.mxu0 %v1998
      %2887 = vmatpush1.msra.mxu0 %v1997
      %2888 = vmatprep.mubr.f32.mxu0 %v976
      %2889 = vmatmul.mubr.f32.gmra.mrb[0].mxu0 %v975
      %v2890 = vpop.f32.mrb[0].mxu0
      %v2891 = vadd.f32 %v2820, %v2890
      %v2892 = vpop.f32.mrb[0].mxu0
      %v2893 = vadd.f32 %v2822, %v2892
      %2894 = vdwg.mxu0
      %2895 = vmatprep.subr.mxu0 %v984
      %2896 = vmatpush1.msra.mxu0 %v983
      %2897 = vmatprep.subr.mxu0 %v992
      %2898 = vmatpush1.msra.mxu0 %v991
      %2899 = vmatprep.subr.mxu0 %v1000
      %2900 = vmatpush1.msra.mxu0 %v999
      %2901 = vmatprep.subr.mxu0 %v1008
      %2902 = vmatpush1.msra.mxu0 %v1007
      %2903 = vmatprep.subr.mxu0 %v1016
      %2904 = vmatpush1.msra.mxu0 %v1015
      %2905 = vmatprep.subr.mxu0 %v1024
      %2906 = vmatpush1.msra.mxu0 %v1023
      %2907 = vmatprep.subr.mxu0 %v1032
      %2908 = vmatpush1.msra.mxu0 %v1031
      %2909 = vmatprep.subr.mxu0 %v1040
      %2910 = vmatpush1.msra.mxu0 %v1039
      %2911 = vmatprep.subr.mxu0 %v1048
      %2912 = vmatpush1.msra.mxu0 %v1047
      %2913 = vmatprep.subr.mxu0 %v1056
      %2914 = vmatpush1.msra.mxu0 %v1055
      %2915 = vmatprep.subr.mxu0 %v1064
      %2916 = vmatpush1.msra.mxu0 %v1063
      %2917 = vmatprep.subr.mxu0 %v1072
      %2918 = vmatpush1.msra.mxu0 %v1071
      %2919 = vmatprep.subr.mxu0 %v1080
      %2920 = vmatpush1.msra.mxu0 %v1079
      %2921 = vmatprep.subr.mxu0 %v1088
      %2922 = vmatpush1.msra.mxu0 %v1087
      %2923 = vmatprep.subr.mxu0 %v1096
      %2924 = vmatpush1.msra.mxu0 %v1095
      %2925 = vmatprep.subr.mxu0 %v1104
      %2926 = vmatpush1.msra.mxu0 %v1103
      %2927 = vmatprep.subr.mxu0 %v1112
      %2928 = vmatpush1.msra.mxu0 %v1111
      %2929 = vmatprep.subr.mxu0 %v1120
      %2930 = vmatpush1.msra.mxu0 %v1119
      %2931 = vmatprep.subr.mxu0 %v1128
      %2932 = vmatpush1.msra.mxu0 %v1127
      %2933 = vmatprep.subr.mxu0 %v1136
      %2934 = vmatpush1.msra.mxu0 %v1135
      %2935 = vmatprep.subr.mxu0 %v1144
      %2936 = vmatpush1.msra.mxu0 %v1143
      %2937 = vmatprep.subr.mxu0 %v1152
      %2938 = vmatpush1.msra.mxu0 %v1151
      %2939 = vmatprep.subr.mxu0 %v1160
      %2940 = vmatpush1.msra.mxu0 %v1159
      %2941 = vmatprep.subr.mxu0 %v1168
      %2942 = vmatpush1.msra.mxu0 %v1167
      %2943 = vmatprep.subr.mxu0 %v1176
      %2944 = vmatpush1.msra.mxu0 %v1175
      %2945 = vmatprep.subr.mxu0 %v1184
      %2946 = vmatpush1.msra.mxu0 %v1183
      %2947 = vmatprep.subr.mxu0 %v1192
      %2948 = vmatpush1.msra.mxu0 %v1191
      %2949 = vmatprep.subr.mxu0 %v1200
      %2950 = vmatpush1.msra.mxu0 %v1199
      %2951 = vmatprep.subr.mxu0 %v1208
      %2952 = vmatpush1.msra.mxu0 %v1207
      %2953 = vmatprep.subr.mxu0 %v1216
      %2954 = vmatpush1.msra.mxu0 %v1215
      %2955 = vmatprep.subr.mxu0 %v1224
      %2956 = vmatpush1.msra.mxu0 %v1223
      %2957 = vmatprep.subr.mxu0 %v1232
      %2958 = vmatpush1.msra.mxu0 %v1231
      %2959 = vmatprep.mubr.f32.mxu0 %v970
      %2960 = vmatmul.mubr.f32.gmra.mrb[0].mxu0 %v969
      %v2961 = vpop.f32.mrb[0].mxu0
      %v2962 = vadd.f32 %v2030, %v2961
      %v2963 = vpop.f32.mrb[0].mxu0
      %v2964 = vadd.f32 %v2034, %v2963
      %2965 = vdwg.mxu0
      %2966 = vmatprep.subr.mxu0 %v1240
      %2967 = vmatpush1.msra.mxu0 %v1239
      %2968 = vmatprep.subr.mxu0 %v1248
      %2969 = vmatpush1.msra.mxu0 %v1247
      %2970 = vmatprep.subr.mxu0 %v1256
      %2971 = vmatpush1.msra.mxu0 %v1255
      %2972 = vmatprep.subr.mxu0 %v1264
      %2973 = vmatpush1.msra.mxu0 %v1263
      %2974 = vmatprep.subr.mxu0 %v1272
      %2975 = vmatpush1.msra.mxu0 %v1271
      %2976 = vmatprep.subr.mxu0 %v1280
      %2977 = vmatpush1.msra.mxu0 %v1279
      %2978 = vmatprep.subr.mxu0 %v1288
      %2979 = vmatpush1.msra.mxu0 %v1287
      %2980 = vmatprep.subr.mxu0 %v1296
      %2981 = vmatpush1.msra.mxu0 %v1295
      %2982 = vmatprep.subr.mxu0 %v1304
      %2983 = vmatpush1.msra.mxu0 %v1303
      %2984 = vmatprep.subr.mxu0 %v1312
      %2985 = vmatpush1.msra.mxu0 %v1311
      %2986 = vmatprep.subr.mxu0 %v1320
      %2987 = vmatpush1.msra.mxu0 %v1319
      %2988 = vmatprep.subr.mxu0 %v1328
      %2989 = vmatpush1.msra.mxu0 %v1327
      %2990 = vmatprep.subr.mxu0 %v1336
      %2991 = vmatpush1.msra.mxu0 %v1335
      %2992 = vmatprep.subr.mxu0 %v1344
      %2993 = vmatpush1.msra.mxu0 %v1343
      %2994 = vmatprep.subr.mxu0 %v1352
      %2995 = vmatpush1.msra.mxu0 %v1351
      %2996 = vmatprep.subr.mxu0 %v1360
      %2997 = vmatpush1.msra.mxu0 %v1359
      %2998 = vmatprep.subr.mxu0 %v1368
      %2999 = vmatpush1.msra.mxu0 %v1367
      %3000 = vmatprep.subr.mxu0 %v1376
      %3001 = vmatpush1.msra.mxu0 %v1375
      %3002 = vmatprep.subr.mxu0 %v1384
      %3003 = vmatpush1.msra.mxu0 %v1383
      %3004 = vmatprep.subr.mxu0 %v1392
      %3005 = vmatpush1.msra.mxu0 %v1391
      %3006 = vmatprep.subr.mxu0 %v1400
      %3007 = vmatpush1.msra.mxu0 %v1399
      %3008 = vmatprep.subr.mxu0 %v1408
      %3009 = vmatpush1.msra.mxu0 %v1407
      %3010 = vmatprep.subr.mxu0 %v1416
      %3011 = vmatpush1.msra.mxu0 %v1415
      %3012 = vmatprep.subr.mxu0 %v1424
      %3013 = vmatpush1.msra.mxu0 %v1423
      %3014 = vmatprep.subr.mxu0 %v1432
      %3015 = vmatpush1.msra.mxu0 %v1431
      %3016 = vmatprep.subr.mxu0 %v1440
      %3017 = vmatpush1.msra.mxu0 %v1439
      %3018 = vmatprep.subr.mxu0 %v1448
      %3019 = vmatpush1.msra.mxu0 %v1447
      %3020 = vmatprep.subr.mxu0 %v1456
      %3021 = vmatpush1.msra.mxu0 %v1455
      %3022 = vmatprep.subr.mxu0 %v1464
      %3023 = vmatpush1.msra.mxu0 %v1463
      %3024 = vmatprep.subr.mxu0 %v1472
      %3025 = vmatpush1.msra.mxu0 %v1471
      %3026 = vmatprep.subr.mxu0 %v1480
      %3027 = vmatpush1.msra.mxu0 %v1479
      %3028 = vmatprep.subr.mxu0 %v1488
      %3029 = vmatpush1.msra.mxu0 %v1487
      %3030 = vmatprep.mubr.f32.mxu0 %v972
      %3031 = vmatmul.mubr.f32.gmra.mrb[0].mxu0 %v971
      %v3032 = vpop.f32.mrb[0].mxu0
      %v3033 = vadd.f32 %v2962, %v3032
      %v3034 = vpop.f32.mrb[0].mxu0
      %v3035 = vadd.f32 %v2964, %v3034
      %3036 = vdwg.mxu0
      %3037 = vmatprep.subr.mxu0 %v1496
      %3038 = vmatpush1.msra.mxu0 %v1495
      %3039 = vmatprep.subr.mxu0 %v1504
      %3040 = vmatpush1.msra.mxu0 %v1503
      %3041 = vmatprep.subr.mxu0 %v1512
      %3042 = vmatpush1.msra.mxu0 %v1511
      %3043 = vmatprep.subr.mxu0 %v1520
      %3044 = vmatpush1.msra.mxu0 %v1519
      %3045 = vmatprep.subr.mxu0 %v1528
      %3046 = vmatpush1.msra.mxu0 %v1527
      %3047 = vmatprep.subr.mxu0 %v1536
      %3048 = vmatpush1.msra.mxu0 %v1535
      %3049 = vmatprep.subr.mxu0 %v1544
      %3050 = vmatpush1.msra.mxu0 %v1543
      %3051 = vmatprep.subr.mxu0 %v1552
      %3052 = vmatpush1.msra.mxu0 %v1551
      %3053 = vmatprep.subr.mxu0 %v1560
      %3054 = vmatpush1.msra.mxu0 %v1559
      %3055 = vmatprep.subr.mxu0 %v1568
      %3056 = vmatpush1.msra.mxu0 %v1567
      %3057 = vmatprep.subr.mxu0 %v1576
      %3058 = vmatpush1.msra.mxu0 %v1575
      %3059 = vmatprep.subr.mxu0 %v1584
      %3060 = vmatpush1.msra.mxu0 %v1583
      %3061 = vmatprep.subr.mxu0 %v1592
      %3062 = vmatpush1.msra.mxu0 %v1591
      %3063 = vmatprep.subr.mxu0 %v1600
      %3064 = vmatpush1.msra.mxu0 %v1599
      %3065 = vmatprep.subr.mxu0 %v1608
      %3066 = vmatpush1.msra.mxu0 %v1607
      %3067 = vmatprep.subr.mxu0 %v1616
      %3068 = vmatpush1.msra.mxu0 %v1615
      %3069 = vmatprep.subr.mxu0 %v1624
      %3070 = vmatpush1.msra.mxu0 %v1623
      %3071 = vmatprep.subr.mxu0 %v1632
      %3072 = vmatpush1.msra.mxu0 %v1631
      %3073 = vmatprep.subr.mxu0 %v1640
      %3074 = vmatpush1.msra.mxu0 %v1639
      %3075 = vmatprep.subr.mxu0 %v1648
      %3076 = vmatpush1.msra.mxu0 %v1647
      %3077 = vmatprep.subr.mxu0 %v1656
      %3078 = vmatpush1.msra.mxu0 %v1655
      %3079 = vmatprep.subr.mxu0 %v1664
      %3080 = vmatpush1.msra.mxu0 %v1663
      %3081 = vmatprep.subr.mxu0 %v1672
      %3082 = vmatpush1.msra.mxu0 %v1671
      %3083 = vmatprep.subr.mxu0 %v1680
      %3084 = vmatpush1.msra.mxu0 %v1679
      %3085 = vmatprep.subr.mxu0 %v1688
      %3086 = vmatpush1.msra.mxu0 %v1687
      %3087 = vmatprep.subr.mxu0 %v1696
      %3088 = vmatpush1.msra.mxu0 %v1695
      %3089 = vmatprep.subr.mxu0 %v1704
      %3090 = vmatpush1.msra.mxu0 %v1703
      %3091 = vmatprep.subr.mxu0 %v1712
      %3092 = vmatpush1.msra.mxu0 %v1711
      %3093 = vmatprep.subr.mxu0 %v1720
      %3094 = vmatpush1.msra.mxu0 %v1719
      %3095 = vmatprep.subr.mxu0 %v1728
      %3096 = vmatpush1.msra.mxu0 %v1727
      %3097 = vmatprep.subr.mxu0 %v1736
      %3098 = vmatpush1.msra.mxu0 %v1735
      %3099 = vmatprep.subr.mxu0 %v1744
      %3100 = vmatpush1.msra.mxu0 %v1743
      %3101 = vmatprep.mubr.f32.mxu0 %v974
      %3102 = vmatmul.mubr.f32.gmra.mrb[0].mxu0 %v973
      %v3103 = vpop.f32.mrb[0].mxu0
      %v3104 = vadd.f32 %v3033, %v3103
      %v3105 = vpop.f32.mrb[0].mxu0
      %v3106 = vadd.f32 %v3035, %v3105
      %3107 = vdwg.mxu0
      %3108 = vmatprep.subr.mxu0 %v1752
      %3109 = vmatpush1.msra.mxu0 %v1751
      %3110 = vmatprep.subr.mxu0 %v1760
      %3111 = vmatpush1.msra.mxu0 %v1759
      %3112 = vmatprep.subr.mxu0 %v1768
      %3113 = vmatpush1.msra.mxu0 %v1767
      %3114 = vmatprep.subr.mxu0 %v1776
      %3115 = vmatpush1.msra.mxu0 %v1775
      %3116 = vmatprep.subr.mxu0 %v1784
      %3117 = vmatpush1.msra.mxu0 %v1783
      %3118 = vmatprep.subr.mxu0 %v1792
      %3119 = vmatpush1.msra.mxu0 %v1791
      %3120 = vmatprep.subr.mxu0 %v1800
      %3121 = vmatpush1.msra.mxu0 %v1799
      %3122 = vmatprep.subr.mxu0 %v1808
      %3123 = vmatpush1.msra.mxu0 %v1807
      %3124 = vmatprep.subr.mxu0 %v1816
      %3125 = vmatpush1.msra.mxu0 %v1815
      %3126 = vmatprep.subr.mxu0 %v1824
      %3127 = vmatpush1.msra.mxu0 %v1823
      %3128 = vmatprep.subr.mxu0 %v1832
      %3129 = vmatpush1.msra.mxu0 %v1831
      %3130 = vmatprep.subr.mxu0 %v1840
      %3131 = vmatpush1.msra.mxu0 %v1839
      %3132 = vmatprep.subr.mxu0 %v1848
      %3133 = vmatpush1.msra.mxu0 %v1847
      %3134 = vmatprep.subr.mxu0 %v1856
      %3135 = vmatpush1.msra.mxu0 %v1855
      %3136 = vmatprep.subr.mxu0 %v1864
      %3137 = vmatpush1.msra.mxu0 %v1863
      %3138 = vmatprep.subr.mxu0 %v1872
      %3139 = vmatpush1.msra.mxu0 %v1871
      %3140 = vmatprep.subr.mxu0 %v1880
      %3141 = vmatpush1.msra.mxu0 %v1879
      %3142 = vmatprep.subr.mxu0 %v1888
      %3143 = vmatpush1.msra.mxu0 %v1887
      %3144 = vmatprep.subr.mxu0 %v1896
      %3145 = vmatpush1.msra.mxu0 %v1895
      %3146 = vmatprep.subr.mxu0 %v1904
      %3147 = vmatpush1.msra.mxu0 %v1903
      %3148 = vmatprep.subr.mxu0 %v1912
      %3149 = vmatpush1.msra.mxu0 %v1911
      %3150 = vmatprep.subr.mxu0 %v1920
      %3151 = vmatpush1.msra.mxu0 %v1919
      %3152 = vmatprep.subr.mxu0 %v1928
      %3153 = vmatpush1.msra.mxu0 %v1927
      %3154 = vmatprep.subr.mxu0 %v1936
      %3155 = vmatpush1.msra.mxu0 %v1935
      %3156 = vmatprep.subr.mxu0 %v1944
      %3157 = vmatpush1.msra.mxu0 %v1943
      %3158 = vmatprep.subr.mxu0 %v1952
      %3159 = vmatpush1.msra.mxu0 %v1951
      %3160 = vmatprep.subr.mxu0 %v1960
      %3161 = vmatpush1.msra.mxu0 %v1959
      %3162 = vmatprep.subr.mxu0 %v1968
      %3163 = vmatpush1.msra.mxu0 %v1967
      %3164 = vmatprep.subr.mxu0 %v1976
      %3165 = vmatpush1.msra.mxu0 %v1975
      %3166 = vmatprep.subr.mxu0 %v1984
      %3167 = vmatpush1.msra.mxu0 %v1983
      %3168 = vmatprep.subr.mxu0 %v1992
      %3169 = vmatpush1.msra.mxu0 %v1991
      %3170 = vmatprep.subr.mxu0 %v2000
      %3171 = vmatpush1.msra.mxu0 %v1999
      %3172 = vmatprep.mubr.f32.mxu0 %v976
      %3173 = vmatmul.mubr.f32.gmra.mrb[0].mxu0 %v975
      %v3174 = vpop.f32.mrb[0].mxu0
      %v3175 = vadd.f32 %v3104, %v3174
      %v3176 = vpop.f32.mrb[0].mxu0
      %v3177 = vadd.f32 %v3106, %v3176
      %3178 = vdwg.mxu0
      %v3179 = vmul.f32 %v2323, 0.5
      %v3180 = vmul.f32 %v2325, 0.5
      %v3181 = vmul.f32 %v2607, 0.5
      %v3182 = vmul.f32 %v2609, 0.5
      %v3183 = vmul.f32 %v2891, 0.5
      %v3184 = vmul.f32 %v2893, 0.5
      %v3185 = vmul.f32 %v3175, 0.5
      %v3186 = vmul.f32 %v3177, 0.5
      %v3187 = vmul.f32 %v2323, 0.70710677
      %v3188 = vmul.f32 %v2325, 0.70710677
      %v3189 = vmul.f32 %v2607, 0.70710677
      %v3190 = vmul.f32 %v2609, 0.70710677
      %v3191 = vmul.f32 %v2891, 0.70710677
      %v3192 = vmul.f32 %v2893, 0.70710677
      %v3193 = vmul.f32 %v3175, 0.70710677
      %v3194 = vmul.f32 %v3177, 0.70710677
      %v3195 = verf.f32.pop %v3187
      %v3196 = verf.f32.pop %v3188
      %v3197 = verf.f32.pop %v3189
      %v3198 = verf.f32.pop %v3190
      %v3199 = verf.f32.pop %v3191
      %v3200 = verf.f32.pop %v3192
      %v3201 = verf.f32.pop %v3193
      %v3202 = verf.f32.pop %v3194
      %v3203 = vadd.f32 %v3195, 1.0
      %v3204 = vadd.f32 %v3196, 1.0
      %v3205 = vadd.f32 %v3197, 1.0
      %v3206 = vadd.f32 %v3198, 1.0
      %v3207 = vadd.f32 %v3199, 1.0
      %v3208 = vadd.f32 %v3200, 1.0
      %v3209 = vadd.f32 %v3201, 1.0
      %v3210 = vadd.f32 %v3202, 1.0
      %v3211 = vmul.f32 %v3179, %v3203
      %v3212 = vmul.f32 %v3180, %v3204
      %v3213 = vmul.f32 %v3181, %v3205
      %v3214 = vmul.f32 %v3182, %v3206
      %v3215 = vmul.f32 %v3183, %v3207
      %v3216 = vmul.f32 %v3184, %v3208
      %v3217 = vmul.f32 %v3185, %v3209
      %v3218 = vmul.f32 %v3186, %v3210
      %v3219 = vld [vmem:[#allocation15] sm:$0xff]
      %v3220 = vld [vmem:[#allocation15 + $0x8] sm:$0xff]
      %v3221 = vld [vmem:[#allocation15 + $0x10] sm:$0xff]
      %v3222 = vld [vmem:[#allocation15 + $0x18] sm:$0xff]
      %v3223 = vld [vmem:[#allocation15 + $0x20] sm:$0xff]
      %v3224 = vld [vmem:[#allocation15 + $0x28] sm:$0xff]
      %v3225 = vld [vmem:[#allocation15 + $0x30] sm:$0xff]
      %v3226 = vld [vmem:[#allocation15 + $0x38] sm:$0xff]
      %v3227 = vld [vmem:[#allocation15 + $0x40] sm:$0xff]
      %v3228 = vld [vmem:[#allocation15 + $0x48] sm:$0xff]
      %v3229 = vld [vmem:[#allocation15 + $0x50] sm:$0xff]
      %v3230 = vld [vmem:[#allocation15 + $0x58] sm:$0xff]
      %v3231 = vld [vmem:[#allocation15 + $0x60] sm:$0xff]
      %v3232 = vld [vmem:[#allocation15 + $0x68] sm:$0xff]
      %v3233 = vld [vmem:[#allocation15 + $0x70] sm:$0xff]
      %v3234 = vld [vmem:[#allocation15 + $0x78] sm:$0xff]
      %v3235 = vld [vmem:[#allocation15 + $0x80] sm:$0xff]
      %v3236 = vld [vmem:[#allocation15 + $0x88] sm:$0xff]
      %v3237 = vld [vmem:[#allocation15 + $0x90] sm:$0xff]
      %v3238 = vld [vmem:[#allocation15 + $0x98] sm:$0xff]
      %v3239 = vld [vmem:[#allocation15 + $0xa0] sm:$0xff]
      %v3240 = vld [vmem:[#allocation15 + $0xa8] sm:$0xff]
      %v3241 = vld [vmem:[#allocation15 + $0xb0] sm:$0xff]
      %v3242 = vld [vmem:[#allocation15 + $0xb8] sm:$0xff]
      %v3243 = vld [vmem:[#allocation15 + $0xc0] sm:$0xff]
      %v3244 = vld [vmem:[#allocation15 + $0xc8] sm:$0xff]
      %v3245 = vld [vmem:[#allocation15 + $0xd0] sm:$0xff]
      %v3246 = vld [vmem:[#allocation15 + $0xd8] sm:$0xff]
      %v3247 = vld [vmem:[#allocation15 + $0xe0] sm:$0xff]
      %v3248 = vld [vmem:[#allocation15 + $0xe8] sm:$0xff]
      %v3249 = vld [vmem:[#allocation15 + $0xf0] sm:$0xff]
      %v3250 = vld [vmem:[#allocation15 + $0xf8] sm:$0xff]
      %v3251 = vld [vmem:[#allocation15 + $0x100] sm:$0xff]
      %v3252 = vld [vmem:[#allocation15 + $0x108] sm:$0xff]
      %v3253 = vld [vmem:[#allocation15 + $0x110] sm:$0xff]
      %v3254 = vld [vmem:[#allocation15 + $0x118] sm:$0xff]
      %v3255 = vld [vmem:[#allocation15 + $0x120] sm:$0xff]
      %v3256 = vld [vmem:[#allocation15 + $0x128] sm:$0xff]
      %v3257 = vld [vmem:[#allocation15 + $0x130] sm:$0xff]
      %v3258 = vld [vmem:[#allocation15 + $0x138] sm:$0xff]
      %v3259 = vld [vmem:[#allocation15 + $0x140] sm:$0xff]
      %v3260 = vld [vmem:[#allocation15 + $0x148] sm:$0xff]
      %v3261 = vld [vmem:[#allocation15 + $0x150] sm:$0xff]
      %v3262 = vld [vmem:[#allocation15 + $0x158] sm:$0xff]
      %v3263 = vld [vmem:[#allocation15 + $0x160] sm:$0xff]
      %v3264 = vld [vmem:[#allocation15 + $0x168] sm:$0xff]
      %v3265 = vld [vmem:[#allocation15 + $0x170] sm:$0xff]
      %v3266 = vld [vmem:[#allocation15 + $0x178] sm:$0xff]
      %v3267 = vld [vmem:[#allocation15 + $0x180] sm:$0xff]
      %v3268 = vld [vmem:[#allocation15 + $0x188] sm:$0xff]
      %v3269 = vld [vmem:[#allocation15 + $0x190] sm:$0xff]
      %v3270 = vld [vmem:[#allocation15 + $0x198] sm:$0xff]
      %v3271 = vld [vmem:[#allocation15 + $0x1a0] sm:$0xff]
      %v3272 = vld [vmem:[#allocation15 + $0x1a8] sm:$0xff]
      %v3273 = vld [vmem:[#allocation15 + $0x1b0] sm:$0xff]
      %v3274 = vld [vmem:[#allocation15 + $0x1b8] sm:$0xff]
      %v3275 = vld [vmem:[#allocation15 + $0x1c0] sm:$0xff]
      %v3276 = vld [vmem:[#allocation15 + $0x1c8] sm:$0xff]
      %v3277 = vld [vmem:[#allocation15 + $0x1d0] sm:$0xff]
      %v3278 = vld [vmem:[#allocation15 + $0x1d8] sm:$0xff]
      %v3279 = vld [vmem:[#allocation15 + $0x1e0] sm:$0xff]
      %v3280 = vld [vmem:[#allocation15 + $0x1e8] sm:$0xff]
      %v3281 = vld [vmem:[#allocation15 + $0x1f0] sm:$0xff]
      %v3282 = vld [vmem:[#allocation15 + $0x1f8] sm:$0xff]
      %v3283 = vld [vmem:[#allocation15 + $0x200] sm:$0xff]
      %v3284 = vld [vmem:[#allocation15 + $0x208] sm:$0xff]
      %v3285 = vld [vmem:[#allocation15 + $0x210] sm:$0xff]
      %v3286 = vld [vmem:[#allocation15 + $0x218] sm:$0xff]
      %v3287 = vld [vmem:[#allocation15 + $0x220] sm:$0xff]
      %v3288 = vld [vmem:[#allocation15 + $0x228] sm:$0xff]
      %v3289 = vld [vmem:[#allocation15 + $0x230] sm:$0xff]
      %v3290 = vld [vmem:[#allocation15 + $0x238] sm:$0xff]
      %v3291 = vld [vmem:[#allocation15 + $0x240] sm:$0xff]
      %v3292 = vld [vmem:[#allocation15 + $0x248] sm:$0xff]
      %v3293 = vld [vmem:[#allocation15 + $0x250] sm:$0xff]
      %v3294 = vld [vmem:[#allocation15 + $0x258] sm:$0xff]
      %v3295 = vld [vmem:[#allocation15 + $0x260] sm:$0xff]
      %v3296 = vld [vmem:[#allocation15 + $0x268] sm:$0xff]
      %v3297 = vld [vmem:[#allocation15 + $0x270] sm:$0xff]
      %v3298 = vld [vmem:[#allocation15 + $0x278] sm:$0xff]
      %v3299 = vld [vmem:[#allocation15 + $0x280] sm:$0xff]
      %v3300 = vld [vmem:[#allocation15 + $0x288] sm:$0xff]
      %v3301 = vld [vmem:[#allocation15 + $0x290] sm:$0xff]
      %v3302 = vld [vmem:[#allocation15 + $0x298] sm:$0xff]
      %v3303 = vld [vmem:[#allocation15 + $0x2a0] sm:$0xff]
      %v3304 = vld [vmem:[#allocation15 + $0x2a8] sm:$0xff]
      %v3305 = vld [vmem:[#allocation15 + $0x2b0] sm:$0xff]
      %v3306 = vld [vmem:[#allocation15 + $0x2b8] sm:$0xff]
      %v3307 = vld [vmem:[#allocation15 + $0x2c0] sm:$0xff]
      %v3308 = vld [vmem:[#allocation15 + $0x2c8] sm:$0xff]
      %v3309 = vld [vmem:[#allocation15 + $0x2d0] sm:$0xff]
      %v3310 = vld [vmem:[#allocation15 + $0x2d8] sm:$0xff]
      %v3311 = vld [vmem:[#allocation15 + $0x2e0] sm:$0xff]
      %v3312 = vld [vmem:[#allocation15 + $0x2e8] sm:$0xff]
      %v3313 = vld [vmem:[#allocation15 + $0x2f0] sm:$0xff]
      %v3314 = vld [vmem:[#allocation15 + $0x2f8] sm:$0xff]
      %v3315 = vld [vmem:[#allocation15 + $0x300] sm:$0xff]
      %v3316 = vld [vmem:[#allocation15 + $0x308] sm:$0xff]
      %v3317 = vld [vmem:[#allocation15 + $0x310] sm:$0xff]
      %v3318 = vld [vmem:[#allocation15 + $0x318] sm:$0xff]
      %v3319 = vld [vmem:[#allocation15 + $0x320] sm:$0xff]
      %v3320 = vld [vmem:[#allocation15 + $0x328] sm:$0xff]
      %v3321 = vld [vmem:[#allocation15 + $0x330] sm:$0xff]
      %v3322 = vld [vmem:[#allocation15 + $0x338] sm:$0xff]
      %v3323 = vld [vmem:[#allocation15 + $0x340] sm:$0xff]
      %v3324 = vld [vmem:[#allocation15 + $0x348] sm:$0xff]
      %v3325 = vld [vmem:[#allocation15 + $0x350] sm:$0xff]
      %v3326 = vld [vmem:[#allocation15 + $0x358] sm:$0xff]
      %v3327 = vld [vmem:[#allocation15 + $0x360] sm:$0xff]
      %v3328 = vld [vmem:[#allocation15 + $0x368] sm:$0xff]
      %v3329 = vld [vmem:[#allocation15 + $0x370] sm:$0xff]
      %v3330 = vld [vmem:[#allocation15 + $0x378] sm:$0xff]
      %v3331 = vld [vmem:[#allocation15 + $0x380] sm:$0xff]
      %v3332 = vld [vmem:[#allocation15 + $0x388] sm:$0xff]
      %v3333 = vld [vmem:[#allocation15 + $0x390] sm:$0xff]
      %v3334 = vld [vmem:[#allocation15 + $0x398] sm:$0xff]
      %v3335 = vld [vmem:[#allocation15 + $0x3a0] sm:$0xff]
      %v3336 = vld [vmem:[#allocation15 + $0x3a8] sm:$0xff]
      %v3337 = vld [vmem:[#allocation15 + $0x3b0] sm:$0xff]
      %v3338 = vld [vmem:[#allocation15 + $0x3b8] sm:$0xff]
      %v3339 = vld [vmem:[#allocation15 + $0x3c0] sm:$0xff]
      %v3340 = vld [vmem:[#allocation15 + $0x3c8] sm:$0xff]
      %v3341 = vld [vmem:[#allocation15 + $0x3d0] sm:$0xff]
      %v3342 = vld [vmem:[#allocation15 + $0x3d8] sm:$0xff]
      %v3343 = vld [vmem:[#allocation15 + $0x3e0] sm:$0xff]
      %v3344 = vld [vmem:[#allocation15 + $0x3e8] sm:$0xff]
      %v3345 = vld [vmem:[#allocation15 + $0x3f0] sm:$0xff]
      %v3346 = vld [vmem:[#allocation15 + $0x3f8] sm:$0xff]
      %v3347 = vld [vmem:[#allocation17] sm:$0x1]
      %v3349 = vlaneseq
      %v3350 = vshrl.u32 %v3349, 7
      %v3351 = vsub.s32 0, %v3350
      %v3352 = vrot.slane %v3347, %v3351
      %3354 = vmatprep.subr.mxu0 0.0
      %3355 = vmatpush1.msra.mxu0 %v3219
      %3356 = vmatprep.subr.mxu0 0.0
      %3357 = vmatpush1.msra.mxu0 %v3220
      %3358 = vmatprep.subr.mxu0 0.0
      %3359 = vmatpush1.msra.mxu0 %v3221
      %3360 = vmatprep.subr.mxu0 0.0
      %3361 = vmatpush1.msra.mxu0 %v3222
      %3362 = vmatprep.subr.mxu0 0.0
      %3363 = vmatpush1.msra.mxu0 %v3223
      %3364 = vmatprep.subr.mxu0 0.0
      %3365 = vmatpush1.msra.mxu0 %v3224
      %3366 = vmatprep.subr.mxu0 0.0
      %3367 = vmatpush1.msra.mxu0 %v3225
      %3368 = vmatprep.subr.mxu0 0.0
      %3369 = vmatpush1.msra.mxu0 %v3226
      %3370 = vmatprep.subr.mxu0 0.0
      %3371 = vmatpush1.msra.mxu0 %v3227
      %3372 = vmatprep.subr.mxu0 0.0
      %3373 = vmatpush1.msra.mxu0 %v3228
      %3374 = vmatprep.subr.mxu0 0.0
      %3375 = vmatpush1.msra.mxu0 %v3229
      %3376 = vmatprep.subr.mxu0 0.0
      %3377 = vmatpush1.msra.mxu0 %v3230
      %3378 = vmatprep.subr.mxu0 0.0
      %3379 = vmatpush1.msra.mxu0 %v3231
      %3380 = vmatprep.subr.mxu0 0.0
      %3381 = vmatpush1.msra.mxu0 %v3232
      %3382 = vmatprep.subr.mxu0 0.0
      %3383 = vmatpush1.msra.mxu0 %v3233
      %3384 = vmatprep.subr.mxu0 0.0
      %3385 = vmatpush1.msra.mxu0 %v3234
      %3386 = vmatprep.subr.mxu0 0.0
      %3387 = vmatpush1.msra.mxu0 %v3235
      %3388 = vmatprep.subr.mxu0 0.0
      %3389 = vmatpush1.msra.mxu0 %v3236
      %3390 = vmatprep.subr.mxu0 0.0
      %3391 = vmatpush1.msra.mxu0 %v3237
      %3392 = vmatprep.subr.mxu0 0.0
      %3393 = vmatpush1.msra.mxu0 %v3238
      %3394 = vmatprep.subr.mxu0 0.0
      %3395 = vmatpush1.msra.mxu0 %v3239
      %3396 = vmatprep.subr.mxu0 0.0
      %3397 = vmatpush1.msra.mxu0 %v3240
      %3398 = vmatprep.subr.mxu0 0.0
      %3399 = vmatpush1.msra.mxu0 %v3241
      %3400 = vmatprep.subr.mxu0 0.0
      %3401 = vmatpush1.msra.mxu0 %v3242
      %3402 = vmatprep.subr.mxu0 0.0
      %3403 = vmatpush1.msra.mxu0 %v3243
      %3404 = vmatprep.subr.mxu0 0.0
      %3405 = vmatpush1.msra.mxu0 %v3244
      %3406 = vmatprep.subr.mxu0 0.0
      %3407 = vmatpush1.msra.mxu0 %v3245
      %3408 = vmatprep.subr.mxu0 0.0
      %3409 = vmatpush1.msra.mxu0 %v3246
      %3410 = vmatprep.subr.mxu0 0.0
      %3411 = vmatpush1.msra.mxu0 %v3247
      %3412 = vmatprep.subr.mxu0 0.0
      %3413 = vmatpush1.msra.mxu0 %v3248
      %3414 = vmatprep.subr.mxu0 0.0
      %3415 = vmatpush1.msra.mxu0 %v3249
      %3416 = vmatprep.subr.mxu0 0.0
      %3417 = vmatpush1.msra.mxu0 %v3250
      %3418 = vmatprep.mubr.f32.mxu0 %v3212
      %3419 = vmatmul.mubr.f32.gmra.mrb[0].mxu0 %v3211
      %v3420 = vpop.f32.mrb[0].mxu0
      %v3421 = vadd.f32 %v3352, %v3420
      %v3422 = vpop.f32.mrb[0].mxu0
      %3423 = vdwg.mxu0
      %3424 = vmatprep.subr.mxu0 0.0
      %3425 = vmatpush1.msra.mxu0 %v3251
      %3426 = vmatprep.subr.mxu0 0.0
      %3427 = vmatpush1.msra.mxu0 %v3252
      %3428 = vmatprep.subr.mxu0 0.0
      %3429 = vmatpush1.msra.mxu0 %v3253
      %3430 = vmatprep.subr.mxu0 0.0
      %3431 = vmatpush1.msra.mxu0 %v3254
      %3432 = vmatprep.subr.mxu0 0.0
      %3433 = vmatpush1.msra.mxu0 %v3255
      %3434 = vmatprep.subr.mxu0 0.0
      %3435 = vmatpush1.msra.mxu0 %v3256
      %3436 = vmatprep.subr.mxu0 0.0
      %3437 = vmatpush1.msra.mxu0 %v3257
      %3438 = vmatprep.subr.mxu0 0.0
      %3439 = vmatpush1.msra.mxu0 %v3258
      %3440 = vmatprep.subr.mxu0 0.0
      %3441 = vmatpush1.msra.mxu0 %v3259
      %3442 = vmatprep.subr.mxu0 0.0
      %3443 = vmatpush1.msra.mxu0 %v3260
      %3444 = vmatprep.subr.mxu0 0.0
      %3445 = vmatpush1.msra.mxu0 %v3261
      %3446 = vmatprep.subr.mxu0 0.0
      %3447 = vmatpush1.msra.mxu0 %v3262
      %3448 = vmatprep.subr.mxu0 0.0
      %3449 = vmatpush1.msra.mxu0 %v3263
      %3450 = vmatprep.subr.mxu0 0.0
      %3451 = vmatpush1.msra.mxu0 %v3264
      %3452 = vmatprep.subr.mxu0 0.0
      %3453 = vmatpush1.msra.mxu0 %v3265
      %3454 = vmatprep.subr.mxu0 0.0
      %3455 = vmatpush1.msra.mxu0 %v3266
      %3456 = vmatprep.subr.mxu0 0.0
      %3457 = vmatpush1.msra.mxu0 %v3267
      %3458 = vmatprep.subr.mxu0 0.0
      %3459 = vmatpush1.msra.mxu0 %v3268
      %3460 = vmatprep.subr.mxu0 0.0
      %3461 = vmatpush1.msra.mxu0 %v3269
      %3462 = vmatprep.subr.mxu0 0.0
      %3463 = vmatpush1.msra.mxu0 %v3270
      %3464 = vmatprep.subr.mxu0 0.0
      %3465 = vmatpush1.msra.mxu0 %v3271
      %3466 = vmatprep.subr.mxu0 0.0
      %3467 = vmatpush1.msra.mxu0 %v3272
      %3468 = vmatprep.subr.mxu0 0.0
      %3469 = vmatpush1.msra.mxu0 %v3273
      %3470 = vmatprep.subr.mxu0 0.0
      %3471 = vmatpush1.msra.mxu0 %v3274
      %3472 = vmatprep.subr.mxu0 0.0
      %3473 = vmatpush1.msra.mxu0 %v3275
      %3474 = vmatprep.subr.mxu0 0.0
      %3475 = vmatpush1.msra.mxu0 %v3276
      %3476 = vmatprep.subr.mxu0 0.0
      %3477 = vmatpush1.msra.mxu0 %v3277
      %3478 = vmatprep.subr.mxu0 0.0
      %3479 = vmatpush1.msra.mxu0 %v3278
      %3480 = vmatprep.subr.mxu0 0.0
      %3481 = vmatpush1.msra.mxu0 %v3279
      %3482 = vmatprep.subr.mxu0 0.0
      %3483 = vmatpush1.msra.mxu0 %v3280
      %3484 = vmatprep.subr.mxu0 0.0
      %3485 = vmatpush1.msra.mxu0 %v3281
      %3486 = vmatprep.subr.mxu0 0.0
      %3487 = vmatpush1.msra.mxu0 %v3282
      %3488 = vmatprep.mubr.f32.mxu0 %v3214
      %3489 = vmatmul.mubr.f32.gmra.mrb[0].mxu0 %v3213
      %v3490 = vpop.f32.mrb[0].mxu0
      %v3491 = vadd.f32 %v3421, %v3490
      %v3492 = vpop.f32.mrb[0].mxu0
      %3493 = vdwg.mxu0
      %3494 = vmatprep.subr.mxu0 0.0
      %3495 = vmatpush1.msra.mxu0 %v3283
      %3496 = vmatprep.subr.mxu0 0.0
      %3497 = vmatpush1.msra.mxu0 %v3284
      %3498 = vmatprep.subr.mxu0 0.0
      %3499 = vmatpush1.msra.mxu0 %v3285
      %3500 = vmatprep.subr.mxu0 0.0
      %3501 = vmatpush1.msra.mxu0 %v3286
      %3502 = vmatprep.subr.mxu0 0.0
      %3503 = vmatpush1.msra.mxu0 %v3287
      %3504 = vmatprep.subr.mxu0 0.0
      %3505 = vmatpush1.msra.mxu0 %v3288
      %3506 = vmatprep.subr.mxu0 0.0
      %3507 = vmatpush1.msra.mxu0 %v3289
      %3508 = vmatprep.subr.mxu0 0.0
      %3509 = vmatpush1.msra.mxu0 %v3290
      %3510 = vmatprep.subr.mxu0 0.0
      %3511 = vmatpush1.msra.mxu0 %v3291
      %3512 = vmatprep.subr.mxu0 0.0
      %3513 = vmatpush1.msra.mxu0 %v3292
      %3514 = vmatprep.subr.mxu0 0.0
      %3515 = vmatpush1.msra.mxu0 %v3293
      %3516 = vmatprep.subr.mxu0 0.0
      %3517 = vmatpush1.msra.mxu0 %v3294
      %3518 = vmatprep.subr.mxu0 0.0
      %3519 = vmatpush1.msra.mxu0 %v3295
      %3520 = vmatprep.subr.mxu0 0.0
      %3521 = vmatpush1.msra.mxu0 %v3296
      %3522 = vmatprep.subr.mxu0 0.0
      %3523 = vmatpush1.msra.mxu0 %v3297
      %3524 = vmatprep.subr.mxu0 0.0
      %3525 = vmatpush1.msra.mxu0 %v3298
      %3526 = vmatprep.subr.mxu0 0.0
      %3527 = vmatpush1.msra.mxu0 %v3299
      %3528 = vmatprep.subr.mxu0 0.0
      %3529 = vmatpush1.msra.mxu0 %v3300
      %3530 = vmatprep.subr.mxu0 0.0
      %3531 = vmatpush1.msra.mxu0 %v3301
      %3532 = vmatprep.subr.mxu0 0.0
      %3533 = vmatpush1.msra.mxu0 %v3302
      %3534 = vmatprep.subr.mxu0 0.0
      %3535 = vmatpush1.msra.mxu0 %v3303
      %3536 = vmatprep.subr.mxu0 0.0
      %3537 = vmatpush1.msra.mxu0 %v3304
      %3538 = vmatprep.subr.mxu0 0.0
      %3539 = vmatpush1.msra.mxu0 %v3305
      %3540 = vmatprep.subr.mxu0 0.0
      %3541 = vmatpush1.msra.mxu0 %v3306
      %3542 = vmatprep.subr.mxu0 0.0
      %3543 = vmatpush1.msra.mxu0 %v3307
      %3544 = vmatprep.subr.mxu0 0.0
      %3545 = vmatpush1.msra.mxu0 %v3308
      %3546 = vmatprep.subr.mxu0 0.0
      %3547 = vmatpush1.msra.mxu0 %v3309
      %3548 = vmatprep.subr.mxu0 0.0
      %3549 = vmatpush1.msra.mxu0 %v3310
      %3550 = vmatprep.subr.mxu0 0.0
      %3551 = vmatpush1.msra.mxu0 %v3311
      %3552 = vmatprep.subr.mxu0 0.0
      %3553 = vmatpush1.msra.mxu0 %v3312
      %3554 = vmatprep.subr.mxu0 0.0
      %3555 = vmatpush1.msra.mxu0 %v3313
      %3556 = vmatprep.subr.mxu0 0.0
      %3557 = vmatpush1.msra.mxu0 %v3314
      %3558 = vmatprep.mubr.f32.mxu0 %v3216
      %3559 = vmatmul.mubr.f32.gmra.mrb[0].mxu0 %v3215
      %v3560 = vpop.f32.mrb[0].mxu0
      %v3561 = vadd.f32 %v3491, %v3560
      %v3562 = vpop.f32.mrb[0].mxu0
      %3563 = vdwg.mxu0
      %3564 = vmatprep.subr.mxu0 0.0
      %3565 = vmatpush1.msra.mxu0 %v3315
      %3566 = vmatprep.subr.mxu0 0.0
      %3567 = vmatpush1.msra.mxu0 %v3316
      %3568 = vmatprep.subr.mxu0 0.0
      %3569 = vmatpush1.msra.mxu0 %v3317
      %3570 = vmatprep.subr.mxu0 0.0
      %3571 = vmatpush1.msra.mxu0 %v3318
      %3572 = vmatprep.subr.mxu0 0.0
      %3573 = vmatpush1.msra.mxu0 %v3319
      %3574 = vmatprep.subr.mxu0 0.0
      %3575 = vmatpush1.msra.mxu0 %v3320
      %3576 = vmatprep.subr.mxu0 0.0
      %3577 = vmatpush1.msra.mxu0 %v3321
      %3578 = vmatprep.subr.mxu0 0.0
      %3579 = vmatpush1.msra.mxu0 %v3322
      %3580 = vmatprep.subr.mxu0 0.0
      %3581 = vmatpush1.msra.mxu0 %v3323
      %3582 = vmatprep.subr.mxu0 0.0
      %3583 = vmatpush1.msra.mxu0 %v3324
      %3584 = vmatprep.subr.mxu0 0.0
      %3585 = vmatpush1.msra.mxu0 %v3325
      %3586 = vmatprep.subr.mxu0 0.0
      %3587 = vmatpush1.msra.mxu0 %v3326
      %3588 = vmatprep.subr.mxu0 0.0
      %3589 = vmatpush1.msra.mxu0 %v3327
      %3590 = vmatprep.subr.mxu0 0.0
      %3591 = vmatpush1.msra.mxu0 %v3328
      %3592 = vmatprep.subr.mxu0 0.0
      %3593 = vmatpush1.msra.mxu0 %v3329
      %3594 = vmatprep.subr.mxu0 0.0
      %3595 = vmatpush1.msra.mxu0 %v3330
      %3596 = vmatprep.subr.mxu0 0.0
      %3597 = vmatpush1.msra.mxu0 %v3331
      %3598 = vmatprep.subr.mxu0 0.0
      %3599 = vmatpush1.msra.mxu0 %v3332
      %3600 = vmatprep.subr.mxu0 0.0
      %3601 = vmatpush1.msra.mxu0 %v3333
      %3602 = vmatprep.subr.mxu0 0.0
      %3603 = vmatpush1.msra.mxu0 %v3334
      %3604 = vmatprep.subr.mxu0 0.0
      %3605 = vmatpush1.msra.mxu0 %v3335
      %3606 = vmatprep.subr.mxu0 0.0
      %3607 = vmatpush1.msra.mxu0 %v3336
      %3608 = vmatprep.subr.mxu0 0.0
      %3609 = vmatpush1.msra.mxu0 %v3337
      %3610 = vmatprep.subr.mxu0 0.0
      %3611 = vmatpush1.msra.mxu0 %v3338
      %3612 = vmatprep.subr.mxu0 0.0
      %3613 = vmatpush1.msra.mxu0 %v3339
      %3614 = vmatprep.subr.mxu0 0.0
      %3615 = vmatpush1.msra.mxu0 %v3340
      %3616 = vmatprep.subr.mxu0 0.0
      %3617 = vmatpush1.msra.mxu0 %v3341
      %3618 = vmatprep.subr.mxu0 0.0
      %3619 = vmatpush1.msra.mxu0 %v3342
      %3620 = vmatprep.subr.mxu0 0.0
      %3621 = vmatpush1.msra.mxu0 %v3343
      %3622 = vmatprep.subr.mxu0 0.0
      %3623 = vmatpush1.msra.mxu0 %v3344
      %3624 = vmatprep.subr.mxu0 0.0
      %3625 = vmatpush1.msra.mxu0 %v3345
      %3626 = vmatprep.subr.mxu0 0.0
      %3627 = vmatpush1.msra.mxu0 %v3346
      %3628 = vmatprep.mubr.f32.mxu0 %v3218
      %3629 = vmatmul.mubr.f32.gmra.mrb[0].mxu0 %v3217
      %v3630 = vpop.f32.mrb[0].mxu0
      %v3631 = vadd.f32 %v3561, %v3630
      %v3632 = vpop.f32.mrb[0].mxu0
      %3633 = vdwg.mxu0
      %3634 = vst [vmem:[#allocation18] sm:$0x3] %v3631
    $region81: #{tpu_custom_call.1} parent=1 // pred_fallthru
      _
    // Predicated region
    $region82: #{tpu_custom_call.1} parent=1 // pred_check
      _
    $region83: #{tpu_custom_call.1} parent=1 // pred_check_branch
      %3636 = sbr.rel (0) target = $region85
    $region84: #{tpu_custom_call.1} parent=1 // pred_region
      %s3638 = ssub.s32 32, 32
      %3639 = vsyncadd [#allocation5], %s3638
      %s3641 = sshll.u32 [#allocation18], 4
      %s3642 = int_to_ptr.vmem [resolvable:$true] %s3641
      %3644 = dma.vmem_to_hbm [thread:$0]  %s3642, 32, %s9, [#allocation5]
    $region85: #{tpu_custom_call.1} parent=1 // pred_fallthru
      _
    // Predicated region
    $region86: #{tpu_custom_call.1} parent=1 // pred_check
      _
    $region87: #{tpu_custom_call.1} parent=1 // pred_check_branch
      %3646 = sbr.rel (0) target = $region89
    $region88: #{tpu_custom_call.1} parent=1 // pred_region
      %3647 = dma.done [#allocation5], 32
    $region89: #{tpu_custom_call.1} parent=1 // pred_fallthru
      _
    %3648 = vsyncpa [#allocation4], 1
    %3649 = vsyncpa [#allocation7], 1
    %3650 = vsyncpa [#allocation10], 1
    %3651 = vsyncpa [#allocation13], 1
    %3652 = vsyncpa [#allocation16], 1
    %3653 = vsyncpa [#allocation5], 1

</llo_original>
